<compile_context>
chip_gen: v7x
topology: tpu7x:2x2x1
jax: 0.10.0
libtpu: 0.0.40
codegen_flags: <defaults>
</compile_context>

<pallas_src>
import functools

import jax
import jax.numpy as jnp
from jax.experimental import pallas as pl
from jax.experimental.pallas import tpu as pltpu

_VMEM_LIMIT = 64 * 1024 * 1024  # fits v7x physical VMEM; > default scoped on v5e/v6e


def _round_up(x, m):
    return ((x + m - 1) // m) * m


def _pick_tile(extent, candidates):
    for cand in candidates:
        if extent % cand == 0:
            return cand
    return extent


# ---------------------------------------------------------------------------
# Kernel 1: GRU recurrence with the input projection fused in.
#   x_ref   : (T, TB, Ep)   bf16 embedding chunk
#   wih_ref : (Ep, 3*Hp)    bf16 fused input->hidden weights, gate order (r,z,n)
#   bih_ref : (1, 3*Hp)     f32 fused input biases
#   whh_ref : (Hp, 3*Hp)    bf16 fused hidden->hidden weights
#   bhh_ref : (1, 3*Hp)     f32 fused hidden biases
#   lat_ref : (T, TB, Hp)   bf16 output latent states for this chunk
#   h_ref   : (TB, Hp)      f32 VMEM scratch carrying the hidden state
#   gi_ref  : (T, TB, 3*Hp) f32 VMEM scratch holding the chunk's input proj.
# ---------------------------------------------------------------------------
def _gru_fused_kernel(x_ref, wih_ref, bih_ref, whh_ref, bhh_ref,
                      lat_ref, h_ref, gi_ref):
    T, TB, Ep = x_ref.shape
    Hp = whh_ref.shape[0]

    # New batch tile starts -> reset hidden state at its first time chunk.
    # (Time is the innermost grid axis; h persists across time chunks.)
    @pl.when(pl.program_id(1) == 0)
    def _():
        h_ref[...] = jnp.zeros_like(h_ref)

    # Fused input projection for the whole chunk: one MXU-friendly GEMM
    # (T*TB rows), kept entirely in VMEM (no gi HBM round trip).
    x_flat = x_ref[...].reshape(T * TB, Ep)
    gi = jnp.dot(x_flat, wih_ref[...], preferred_element_type=jnp.float32)
    gi_ref[...] = (gi + bih_ref[...]).reshape(T, TB, 3 * Hp)

    def step(t, carry):
        h = h_ref[...]                                           # (TB, Hp) f32
        gi_t = gi_ref[t]                                         # (TB, 3Hp) f32
        # Single fused hidden->hidden matmul for all three gates (bf16 MXU).
        gh = jnp.dot(h.astype(whh_ref.dtype), whh_ref[...],
                     preferred_element_type=jnp.float32) + bhh_ref[...]
        # PyTorch GRU gate order: r, z, n.  Gate math stays f32.
        r = jax.nn.sigmoid(gi_t[:, :Hp] + gh[:, :Hp])
        z = jax.nn.sigmoid(gi_t[:, Hp:2 * Hp] + gh[:, Hp:2 * Hp])
        n = jnp.tanh(gi_t[:, 2 * Hp:] + r * gh[:, 2 * Hp:])
        h_new = (1.0 - z) * n + z * h
        h_ref[...] = h_new
        lat_ref[t] = h_new.astype(lat_ref.dtype)
        return carry

    # Capped unroll: keeps LLO scheduler visibility without vreg blowup.
    jax.lax.fori_loop(0, T, step, 0, unroll=min(8, T))


# ---------------------------------------------------------------------------
# Kernel 2: batched dense layer  y = act(x @ w + b), tiled over M and N.
# Used for the prediction head (hoisted out of the recurrence).
# ---------------------------------------------------------------------------
def _dense_kernel(x_ref, w_ref, b_ref, o_ref, *, activation):
    y = jnp.dot(x_ref[...], w_ref[...], preferred_element_type=jnp.float32)
    y = y + b_ref[...]
    if activation == "sigmoid":
        y = jax.nn.sigmoid(y)
    o_ref[...] = y.astype(o_ref.dtype)


def _dense(x, w, b, activation=None, max_tile_m=512, max_tile_n=512):
    """x: (M, K) bf16, w: (K, N) bf16, b: (1, N) f32 -> (M, N) f32.
    M % 8 == 0, K and N multiples of 128."""
    M, K = x.shape
    N = w.shape[1]
    tm = _pick_tile(M, [c for c in (512, 256, 128, 64, 32, 16, 8)
                        if c <= max_tile_m])
    tn = _pick_tile(N, [c for c in (1024, 512, 256, 128)
                        if c <= max_tile_n])

    grid_spec = pltpu.PrefetchScalarGridSpec(
        num_scalar_prefetch=0,
        grid=(M // tm, N // tn),
        in_specs=[
            pl.BlockSpec((tm, K), lambda i, j: (i, 0)),
            pl.BlockSpec((K, tn), lambda i, j: (0, j)),
            pl.BlockSpec((1, tn), lambda i, j: (0, j)),
        ],
        out_specs=pl.BlockSpec((tm, tn), lambda i, j: (i, j)),
    )
    return pl.pallas_call(
        functools.partial(_dense_kernel, activation=activation),
        out_shape=jax.ShapeDtypeStruct((M, N), jnp.float32),
        grid_spec=grid_spec,
        compiler_params=pltpu.CompilerParams(
            dimension_semantics=("parallel", "parallel"),
            vmem_limit_bytes=_VMEM_LIMIT),
    )(x, w, b)


# ---------------------------------------------------------------------------
# Wrapper
# ---------------------------------------------------------------------------
def dkt_forward_pallas(concept_seq, correct_seq, params, *, time_chunk=32):
    """DKT forward. concept_seq/correct_seq: (B, S) int32. Returns (B, S, C)."""
    emb_table = params["interaction_emb"]      # (2*num_concept, E)
    w_ih = params["w_ih"]                      # (3, E, H)  gate order (r, z, n)
    w_hh = params["w_hh"]                      # (3, H, H)
    b_ih = params["b_ih"]                      # (3, H)
    b_hh = params["b_hh"]                      # (3, H)
    w_p = params["w_p"]                        # (H, C)
    b_p = params["b_p"]                        # (1, C)
    num_concept = params["num_concept"]

    B, S = concept_seq.shape
    E = emb_table.shape[1]
    H = w_hh.shape[-1]
    C = w_p.shape[-1]

    f32, bf16 = jnp.float32, jnp.bfloat16
    # Padded (lane/sublane-aligned) sizes. Zero padding keeps the math exact.
    Ep, Hp, Cp = _round_up(E, 128), _round_up(H, 128), _round_up(C, 128)

    # Batch tile: as large as possible (MXU row utilization) but keep >=2
    # tiles when the batch allows it, so the "parallel" batch axis can still
    # split across v7x's two TensorCores.
    Bp8 = _round_up(B, 8)
    if Bp8 <= 16:
        TB = Bp8
    else:
        TB = min(64, _round_up(Bp8 // 2, 8))
    Bp = _round_up(B, TB)

    T = min(time_chunk, S)                    # timesteps per grid step
    Sp = _round_up(S, T)

    # ---- glue (plain JAX): interaction id + embedding gather, then pad ----
    # Gather directly into (S, B, E): transpose the cheap int32 index, not
    # the activation; emit bf16 to halve HBM traffic.
    interaction_seq = concept_seq + num_concept * correct_seq          # (B, S)
    x = jnp.take(emb_table.astype(bf16), interaction_seq.T, axis=0)    # (S, B, E)
    x = jnp.pad(x, ((0, Sp - S), (0, Bp - B), (0, Ep - E)))            # (Sp, Bp, Ep)

    # ---- parameter repacking: per-gate zero-pad then fuse along lanes -----
    def pad2(m, rows, cols, dtype):
        return jnp.pad(m.astype(dtype),
                       ((0, rows - m.shape[0]), (0, cols - m.shape[1])))

    w_ih_cat = jnp.concatenate([pad2(w_ih[g], Ep, Hp, bf16) for g in range(3)],
                               axis=1)                                          # (Ep, 3Hp)
    w_hh_cat = jnp.concatenate([pad2(w_hh[g], Hp, Hp, bf16) for g in range(3)],
                               axis=1)                                          # (Hp, 3Hp)
    b_ih_cat = jnp.concatenate(
        [jnp.pad(b_ih[g].astype(f32), (0, Hp - H)) for g in range(3)])[None, :]  # (1, 3Hp)
    b_hh_cat = jnp.concatenate(
        [jnp.pad(b_hh[g].astype(f32), (0, Hp - H)) for g in range(3)])[None, :]  # (1, 3Hp)
    w_p_pad = pad2(w_p, Hp, Cp, bf16)                                            # (Hp, Cp)
    b_p_pad = jnp.pad(b_p.astype(f32), ((0, 0), (0, Cp - C)))                    # (1, Cp)

    # ---- 1) GRU recurrence (input projection fused), batch-parallel --------
    grid = (Bp // TB, Sp // T)
    grid_spec = pltpu.PrefetchScalarGridSpec(
        num_scalar_prefetch=0,
        grid=grid,
        in_specs=[
            pl.BlockSpec((T, TB, Ep), lambda b, t: (t, b, 0)),
            pl.BlockSpec((Ep, 3 * Hp), lambda b, t: (0, 0)),
            pl.BlockSpec((1, 3 * Hp), lambda b, t: (0, 0)),
            pl.BlockSpec((Hp, 3 * Hp), lambda b, t: (0, 0)),
            pl.BlockSpec((1, 3 * Hp), lambda b, t: (0, 0)),
        ],
        out_specs=pl.BlockSpec((T, TB, Hp), lambda b, t: (t, b, 0)),
        scratch_shapes=[
            pltpu.VMEM((TB, Hp), jnp.float32),           # hidden state carry
            pltpu.VMEM((T, TB, 3 * Hp), jnp.float32),    # chunk input projection
        ],
    )
    latent = pl.pallas_call(
        _gru_fused_kernel,
        out_shape=jax.ShapeDtypeStruct((Sp, Bp, Hp), bf16),
        grid_spec=grid_spec,
        compiler_params=pltpu.CompilerParams(
            dimension_semantics=("parallel", "arbitrary"),
            vmem_limit_bytes=_VMEM_LIMIT),
    )(x, w_ih_cat, b_ih_cat, w_hh_cat, b_hh_cat)

    # ---- 2) hoisted prediction head: one big M/N-tiled GEMM + sigmoid ------
    # TODO(synk): on v5e/v6e (128 MiB VMEM) the head could instead be fused
    # into the recurrence epilogue to drop the latent HBM round trip; kept
    # separate (and N-tiled) here so it also fits v7x's 64 MiB VMEM.
    scores = _dense(latent.reshape(Sp * Bp, Hp), w_p_pad, b_p_pad,
                    activation="sigmoid")                              # (Sp*Bp, Cp)
    scores = scores.reshape(Sp, Bp, Cp)

    # Unpad and return batch_first (B, S, C) like PyTorch.
    return jnp.transpose(scores[:S, :B, :C], (1, 0, 2))


# ---------------------------------------------------------------------------
# Pure-JAX reference (PyTorch GRU equations) for correctness check.
# ---------------------------------------------------------------------------
def _reference_forward(concept_seq, correct_seq, params):
    emb_table = params["interaction_emb"]
    w_ih, w_hh = params["w_ih"], params["w_hh"]
    b_ih, b_hh = params["b_ih"], params["b_hh"]
    w_p, b_p = params["w_p"], params["b_p"]
    num_concept = params["num_concept"]

    interaction_seq = concept_seq + num_concept * correct_seq
    x = jnp.take(emb_table, interaction_seq, axis=0)   # (B, S, E)
    B, S, _ = x.shape
    H = w_hh.shape[-1]

    def step(h, x_t):
        gi = [x_t @ w_ih[i] + b_ih[i] for i in range(3)]
        gh = [h @ w_hh[i] + b_hh[i] for i in range(3)]
        r = jax.nn.sigmoid(gi[0] + gh[0])
        z = jax.nn.sigmoid(gi[1] + gh[1])
        n = jnp.tanh(gi[2] + r * gh[2])
        h_new = (1.0 - z) * n + z * h
        return h_new, h_new

    h0 = jnp.zeros((B, H), jnp.float32)
    _, latent = jax.lax.scan(step, h0, jnp.transpose(x, (1, 0, 2)))   # (S, B, H)
    latent = jnp.transpose(latent, (1, 0, 2))                          # (B, S, H)
    return jax.nn.sigmoid(latent @ w_p + b_p[0])                       # (B, S, C)


def _init_params(key, num_concept, dim_emb, dim_latent):
    ks = jax.random.split(key, 8)
    scale = 0.1
    return {
        "num_concept": num_concept,
        "interaction_emb": scale * jax.random.normal(
            ks[0], (2 * num_concept, dim_emb), jnp.float32),
        "w_ih": scale * jax.random.normal(ks[1], (3, dim_emb, dim_latent), jnp.float32),
        "w_hh": scale * jax.random.normal(ks[2], (3, dim_latent, dim_latent), jnp.float32),
        "b_ih": scale * jax.random.normal(ks[3], (3, dim_latent), jnp.float32),
        "b_hh": scale * jax.random.normal(ks[4], (3, dim_latent), jnp.float32),
        "w_p": scale * jax.random.normal(ks[5], (dim_latent, num_concept), jnp.float32),
        "b_p": scale * jax.random.normal(ks[6], (1, num_concept), jnp.float32),
    }


if __name__ == "__main__":
    # Small, DKT-consistent shapes.
    B, S = 4, 8
    num_concept, dim_emb, dim_latent = 16, 16, 32

    key = jax.random.PRNGKey(0)
    k_p, k_c, k_r = jax.random.split(key, 3)
    params = _init_params(k_p, num_concept, dim_emb, dim_latent)

    concept_seq = jax.random.randint(k_c, (B, S), 0, num_concept, dtype=jnp.int32)
    correct_seq = jax.random.randint(k_r, (B, S), 0, 2, dtype=jnp.int32)

    out = dkt_forward_pallas(concept_seq, correct_seq, params)
    out = jax.block_until_ready(out)

    ref = _reference_forward(concept_seq, correct_seq, params)
    assert out.shape == (B, S, num_concept)
    # bf16 weights/activations inside the kernel -> keep a modest tolerance.
    assert jnp.allclose(out, ref, atol=2e-3, rtol=2e-3), "mismatch vs reference"

    print("KERNEL_OK")
</pallas_src>

<mosaic_0001>
module attributes {stable_mosaic.version = 11 : i64} {
  func.func @_gru_fused_kernel(%arg0: i32, %arg1: i32, %arg2: memref<8x8x128xbf16, #tpu.memory_space<vmem>>, %arg3: memref<128x384xbf16, #tpu.memory_space<vmem>>, %arg4: memref<1x384xf32, #tpu.memory_space<vmem>>, %arg5: memref<128x384xbf16, #tpu.memory_space<vmem>>, %arg6: memref<1x384xf32, #tpu.memory_space<vmem>>, %arg7: memref<8x8x128xbf16, #tpu.memory_space<vmem>>, %arg8: memref<8x128xf32, #tpu.memory_space<vmem>>, %arg9: memref<8x8x384xf32, #tpu.memory_space<vmem>>) attributes {dimension_semantics = [#tpu.dimension_semantics<parallel>, #tpu.dimension_semantics<arbitrary>], iteration_bounds = array<i64: 1, 1>, scalar_prefetch = 0 : i64, scratch_operands = 2 : i64, tpu.core_type = #tpu.core_type<tc>, window_params = [{transform_indices = @transform_0, window_bounds = array<i64: 8, 8, 128>}, {pipeline_mode = #tpu.pipeline_mode<synchronous>, transform_indices = @transform_1, window_bounds = array<i64: 128, 384>}, {pipeline_mode = #tpu.pipeline_mode<synchronous>, transform_indices = @transform_2, window_bounds = array<i64: 1, 384>}, {pipeline_mode = #tpu.pipeline_mode<synchronous>, transform_indices = @transform_3, window_bounds = array<i64: 128, 384>}, {pipeline_mode = #tpu.pipeline_mode<synchronous>, transform_indices = @transform_4, window_bounds = array<i64: 1, 384>}, {transform_indices = @transform_5, window_bounds = array<i64: 8, 8, 128>}]} {
    %c0_i32 = arith.constant 0 : i32
    %0 = arith.cmpi eq, %arg1, %c0_i32 : i32
    %1 = arith.extui %0 : i1 to i32
    %c0_i32_0 = arith.constant 0 : i32
    %2 = arith.cmpi ne, %1, %c0_i32_0 : i32
    scf.if %2 {
      %cst_139 = arith.constant 0.000000e+00 : f32
      %348 = vector.broadcast %cst_139 : f32 to vector<8x128xf32>
      %c0_140 = arith.constant 0 : index
      %c0_141 = arith.constant 0 : index
      %349 = vector.load %arg8[%c0_140, %c0_141] : memref<8x128xf32, #tpu.memory_space<vmem>>, vector<8x128xf32>
      tpu.vector_store %arg8[%c0_140, %c0_141], %348 {strides = array<i32>} : memref<8x128xf32, #tpu.memory_space<vmem>>, vector<8x128xf32>,
    } else {
    }
    %c0 = arith.constant 0 : index
    %c0_1 = arith.constant 0 : index
    %c0_2 = arith.constant 0 : index
    %3 = vector.load %arg2[%c0, %c0_1, %c0_2] : memref<8x8x128xbf16, #tpu.memory_space<vmem>>, vector<8x8x128xbf16>
    %4 = vector.shape_cast %3 : vector<8x8x128xbf16> to vector<64x128xbf16>
    %c0_3 = arith.constant 0 : index
    %c0_4 = arith.constant 0 : index
    %5 = vector.load %arg3[%c0_3, %c0_4] : memref<128x384xbf16, #tpu.memory_space<vmem>>, vector<128x384xbf16>
    %cst = arith.constant dense<0.000000e+00> : vector<64x384xf32>
    %6 = tpu.matmul %4, %5, %cst {dimension_numbers = #tpu.dot_dimension_numbers<[1], [0], [0], [1], [0, 0, 1, 1], [], []>} : vector<64x128xbf16>, vector<128x384xbf16>, vector<64x384xf32> -> vector<64x384xf32>
    %c0_5 = arith.constant 0 : index
    %c0_6 = arith.constant 0 : index
    %7 = vector.load %arg4[%c0_5, %c0_6] : memref<1x384xf32, #tpu.memory_space<vmem>>, vector<1x384xf32>
    %8 = vector.broadcast %7 : vector<1x384xf32> to vector<64x384xf32>
    %9 = arith.addf %6, %8 : vector<64x384xf32>
    %10 = vector.shape_cast %9 : vector<64x384xf32> to vector<8x8x384xf32>
    %c0_7 = arith.constant 0 : index
    %c0_8 = arith.constant 0 : index
    %c0_9 = arith.constant 0 : index
    %11 = vector.load %arg9[%c0_7, %c0_8, %c0_9] : memref<8x8x384xf32, #tpu.memory_space<vmem>>, vector<8x8x384xf32>
    tpu.vector_store %arg9[%c0_7, %c0_8, %c0_9], %10 {strides = array<i32>} : memref<8x8x384xf32, #tpu.memory_space<vmem>>, vector<8x8x384xf32>,
    %c0_i32_10 = arith.constant 0 : i32
    %c0_11 = arith.constant 0 : index
    %c0_12 = arith.constant 0 : index
    %12 = vector.load %arg8[%c0_11, %c0_12] : memref<8x128xf32, #tpu.memory_space<vmem>>, vector<8x128xf32>
    %13 = arith.index_cast %c0_i32_10 : i32 to index
    %c0_13 = arith.constant 0 : index
    %c0_14 = arith.constant 0 : index
    %14 = vector.load %arg9[%13, %c0_13, %c0_14] : memref<8x8x384xf32, #tpu.memory_space<vmem>>, vector<1x8x384xf32>
    %15 = vector.shape_cast %14 : vector<1x8x384xf32> to vector<8x384xf32>
    %16 = arith.truncf %12 : vector<8x128xf32> to vector<8x128xbf16>
    %c0_15 = arith.constant 0 : index
    %c0_16 = arith.constant 0 : index
    %17 = vector.load %arg5[%c0_15, %c0_16] : memref<128x384xbf16, #tpu.memory_space<vmem>>, vector<128x384xbf16>
    %cst_17 = arith.constant dense<0.000000e+00> : vector<8x384xf32>
    %18 = tpu.matmul %16, %17, %cst_17 {dimension_numbers = #tpu.dot_dimension_numbers<[1], [0], [0], [1], [0, 0, 1, 1], [], []>} : vector<8x128xbf16>, vector<128x384xbf16>, vector<8x384xf32> -> vector<8x384xf32>
    %c0_18 = arith.constant 0 : index
    %c0_19 = arith.constant 0 : index
    %19 = vector.load %arg6[%c0_18, %c0_19] : memref<1x384xf32, #tpu.memory_space<vmem>>, vector<1x384xf32>
    %20 = vector.broadcast %19 : vector<1x384xf32> to vector<8x384xf32>
    %21 = arith.addf %18, %20 : vector<8x384xf32>
    %22 = vector.extract_strided_slice %15 {offsets = [0, 0], sizes = [8, 128], strides = [1, 1]} : vector<8x384xf32> to vector<8x128xf32>
    %23 = vector.extract_strided_slice %21 {offsets = [0, 0], sizes = [8, 128], strides = [1, 1]} : vector<8x384xf32> to vector<8x128xf32>
    %24 = arith.addf %22, %23 : vector<8x128xf32>
    %25 = arith.negf %24 : vector<8x128xf32>
    %26 = math.exp %25 : vector<8x128xf32>
    %cst_20 = arith.constant 1.000000e+00 : f32
    %27 = vector.broadcast %cst_20 : f32 to vector<8x128xf32>
    %28 = arith.addf %27, %26 : vector<8x128xf32>
    %29 = arith.divf %27, %28 : vector<8x128xf32>
    %30 = vector.extract_strided_slice %15 {offsets = [0, 128], sizes = [8, 128], strides = [1, 1]} : vector<8x384xf32> to vector<8x128xf32>
    %31 = vector.extract_strided_slice %21 {offsets = [0, 128], sizes = [8, 128], strides = [1, 1]} : vector<8x384xf32> to vector<8x128xf32>
    %32 = arith.addf %30, %31 : vector<8x128xf32>
    %33 = arith.negf %32 : vector<8x128xf32>
    %34 = math.exp %33 : vector<8x128xf32>
    %cst_21 = arith.constant 1.000000e+00 : f32
    %35 = vector.broadcast %cst_21 : f32 to vector<8x128xf32>
    %36 = arith.addf %35, %34 : vector<8x128xf32>
    %37 = arith.divf %35, %36 : vector<8x128xf32>
    %38 = vector.extract_strided_slice %15 {offsets = [0, 256], sizes = [8, 128], strides = [1, 1]} : vector<8x384xf32> to vector<8x128xf32>
    %39 = vector.extract_strided_slice %21 {offsets = [0, 256], sizes = [8, 128], strides = [1, 1]} : vector<8x384xf32> to vector<8x128xf32>
    %40 = arith.mulf %29, %39 : vector<8x128xf32>
    %41 = arith.addf %38, %40 : vector<8x128xf32>
    %42 = math.tanh %41 : vector<8x128xf32>
    %cst_22 = arith.constant 1.000000e+00 : f32
    %43 = vector.broadcast %cst_22 : f32 to vector<8x128xf32>
    %44 = arith.subf %43, %37 : vector<8x128xf32>
    %45 = arith.mulf %44, %42 : vector<8x128xf32>
    %46 = arith.mulf %37, %12 : vector<8x128xf32>
    %47 = arith.addf %45, %46 : vector<8x128xf32>
    %c0_23 = arith.constant 0 : index
    %c0_24 = arith.constant 0 : index
    %48 = vector.load %arg8[%c0_23, %c0_24] : memref<8x128xf32, #tpu.memory_space<vmem>>, vector<8x128xf32>
    tpu.vector_store %arg8[%c0_23, %c0_24], %47 {strides = array<i32>} : memref<8x128xf32, #tpu.memory_space<vmem>>, vector<8x128xf32>,
    %49 = arith.truncf %47 : vector<8x128xf32> to vector<8x128xbf16>
    %50 = arith.index_cast %c0_i32_10 : i32 to index
    %c0_25 = arith.constant 0 : index
    %c0_26 = arith.constant 0 : index
    %51 = vector.load %arg7[%50, %c0_25, %c0_26] : memref<8x8x128xbf16, #tpu.memory_space<vmem>>, vector<1x8x128xbf16>
    %52 = vector.shape_cast %51 : vector<1x8x128xbf16> to vector<8x128xbf16>
    %53 = vector.shape_cast %49 : vector<8x128xbf16> to vector<1x8x128xbf16>
    tpu.vector_store %arg7[%50, %c0_25, %c0_26], %53 {strides = array<i32>} : memref<8x8x128xbf16, #tpu.memory_space<vmem>>, vector<1x8x128xbf16>,
    %c1_i32 = arith.constant 1 : i32
    %c0_27 = arith.constant 0 : index
    %c0_28 = arith.constant 0 : index
    %54 = vector.load %arg8[%c0_27, %c0_28] : memref<8x128xf32, #tpu.memory_space<vmem>>, vector<8x128xf32>
    %55 = arith.index_cast %c1_i32 : i32 to index
    %c0_29 = arith.constant 0 : index
    %c0_30 = arith.constant 0 : index
    %56 = vector.load %arg9[%55, %c0_29, %c0_30] : memref<8x8x384xf32, #tpu.memory_space<vmem>>, vector<1x8x384xf32>
    %57 = vector.shape_cast %56 : vector<1x8x384xf32> to vector<8x384xf32>
    %58 = arith.truncf %54 : vector<8x128xf32> to vector<8x128xbf16>
    %c0_31 = arith.constant 0 : index
    %c0_32 = arith.constant 0 : index
    %59 = vector.load %arg5[%c0_31, %c0_32] : memref<128x384xbf16, #tpu.memory_space<vmem>>, vector<128x384xbf16>
    %cst_33 = arith.constant dense<0.000000e+00> : vector<8x384xf32>
    %60 = tpu.matmul %58, %59, %cst_33 {dimension_numbers = #tpu.dot_dimension_numbers<[1], [0], [0], [1], [0, 0, 1, 1], [], []>} : vector<8x128xbf16>, vector<128x384xbf16>, vector<8x384xf32> -> vector<8x384xf32>
    %c0_34 = arith.constant 0 : index
    %c0_35 = arith.constant 0 : index
    %61 = vector.load %arg6[%c0_34, %c0_35] : memref<1x384xf32, #tpu.memory_space<vmem>>, vector<1x384xf32>
    %62 = vector.broadcast %61 : vector<1x384xf32> to vector<8x384xf32>
    %63 = arith.addf %60, %62 : vector<8x384xf32>
    %64 = vector.extract_strided_slice %57 {offsets = [0, 0], sizes = [8, 128], strides = [1, 1]} : vector<8x384xf32> to vector<8x128xf32>
    %65 = vector.extract_strided_slice %63 {offsets = [0, 0], sizes = [8, 128], strides = [1, 1]} : vector<8x384xf32> to vector<8x128xf32>
    %66 = arith.addf %64, %65 : vector<8x128xf32>
    %67 = arith.negf %66 : vector<8x128xf32>
    %68 = math.exp %67 : vector<8x128xf32>
    %cst_36 = arith.constant 1.000000e+00 : f32
    %69 = vector.broadcast %cst_36 : f32 to vector<8x128xf32>
    %70 = arith.addf %69, %68 : vector<8x128xf32>
    %71 = arith.divf %69, %70 : vector<8x128xf32>
    %72 = vector.extract_strided_slice %57 {offsets = [0, 128], sizes = [8, 128], strides = [1, 1]} : vector<8x384xf32> to vector<8x128xf32>
    %73 = vector.extract_strided_slice %63 {offsets = [0, 128], sizes = [8, 128], strides = [1, 1]} : vector<8x384xf32> to vector<8x128xf32>
    %74 = arith.addf %72, %73 : vector<8x128xf32>
    %75 = arith.negf %74 : vector<8x128xf32>
    %76 = math.exp %75 : vector<8x128xf32>
    %cst_37 = arith.constant 1.000000e+00 : f32
    %77 = vector.broadcast %cst_37 : f32 to vector<8x128xf32>
    %78 = arith.addf %77, %76 : vector<8x128xf32>
    %79 = arith.divf %77, %78 : vector<8x128xf32>
    %80 = vector.extract_strided_slice %57 {offsets = [0, 256], sizes = [8, 128], strides = [1, 1]} : vector<8x384xf32> to vector<8x128xf32>
    %81 = vector.extract_strided_slice %63 {offsets = [0, 256], sizes = [8, 128], strides = [1, 1]} : vector<8x384xf32> to vector<8x128xf32>
    %82 = arith.mulf %71, %81 : vector<8x128xf32>
    %83 = arith.addf %80, %82 : vector<8x128xf32>
    %84 = math.tanh %83 : vector<8x128xf32>
    %cst_38 = arith.constant 1.000000e+00 : f32
    %85 = vector.broadcast %cst_38 : f32 to vector<8x128xf32>
    %86 = arith.subf %85, %79 : vector<8x128xf32>
    %87 = arith.mulf %86, %84 : vector<8x128xf32>
    %88 = arith.mulf %79, %54 : vector<8x128xf32>
    %89 = arith.addf %87, %88 : vector<8x128xf32>
    %c0_39 = arith.constant 0 : index
    %c0_40 = arith.constant 0 : index
    %90 = vector.load %arg8[%c0_39, %c0_40] : memref<8x128xf32, #tpu.memory_space<vmem>>, vector<8x128xf32>
    tpu.vector_store %arg8[%c0_39, %c0_40], %89 {strides = array<i32>} : memref<8x128xf32, #tpu.memory_space<vmem>>, vector<8x128xf32>,
    %91 = arith.truncf %89 : vector<8x128xf32> to vector<8x128xbf16>
    %92 = arith.index_cast %c1_i32 : i32 to index
    %c0_41 = arith.constant 0 : index
    %c0_42 = arith.constant 0 : index
    %93 = vector.load %arg7[%92, %c0_41, %c0_42] : memref<8x8x128xbf16, #tpu.memory_space<vmem>>, vector<1x8x128xbf16>
    %94 = vector.shape_cast %93 : vector<1x8x128xbf16> to vector<8x128xbf16>
    %95 = vector.shape_cast %91 : vector<8x128xbf16> to vector<1x8x128xbf16>
    tpu.vector_store %arg7[%92, %c0_41, %c0_42], %95 {strides = array<i32>} : memref<8x8x128xbf16, #tpu.memory_space<vmem>>, vector<1x8x128xbf16>,
    %c2_i32 = arith.constant 2 : i32
    %c0_43 = arith.constant 0 : index
    %c0_44 = arith.constant 0 : index
    %96 = vector.load %arg8[%c0_43, %c0_44] : memref<8x128xf32, #tpu.memory_space<vmem>>, vector<8x128xf32>
    %97 = arith.index_cast %c2_i32 : i32 to index
    %c0_45 = arith.constant 0 : index
    %c0_46 = arith.constant 0 : index
    %98 = vector.load %arg9[%97, %c0_45, %c0_46] : memref<8x8x384xf32, #tpu.memory_space<vmem>>, vector<1x8x384xf32>
    %99 = vector.shape_cast %98 : vector<1x8x384xf32> to vector<8x384xf32>
    %100 = arith.truncf %96 : vector<8x128xf32> to vector<8x128xbf16>
    %c0_47 = arith.constant 0 : index
    %c0_48 = arith.constant 0 : index
    %101 = vector.load %arg5[%c0_47, %c0_48] : memref<128x384xbf16, #tpu.memory_space<vmem>>, vector<128x384xbf16>
    %cst_49 = arith.constant dense<0.000000e+00> : vector<8x384xf32>
    %102 = tpu.matmul %100, %101, %cst_49 {dimension_numbers = #tpu.dot_dimension_numbers<[1], [0], [0], [1], [0, 0, 1, 1], [], []>} : vector<8x128xbf16>, vector<128x384xbf16>, vector<8x384xf32> -> vector<8x384xf32>
    %c0_50 = arith.constant 0 : index
    %c0_51 = arith.constant 0 : index
    %103 = vector.load %arg6[%c0_50, %c0_51] : memref<1x384xf32, #tpu.memory_space<vmem>>, vector<1x384xf32>
    %104 = vector.broadcast %103 : vector<1x384xf32> to vector<8x384xf32>
    %105 = arith.addf %102, %104 : vector<8x384xf32>
    %106 = vector.extract_strided_slice %99 {offsets = [0, 0], sizes = [8, 128], strides = [1, 1]} : vector<8x384xf32> to vector<8x128xf32>
    %107 = vector.extract_strided_slice %105 {offsets = [0, 0], sizes = [8, 128], strides = [1, 1]} : vector<8x384xf32> to vector<8x128xf32>
    %108 = arith.addf %106, %107 : vector<8x128xf32>
    %109 = arith.negf %108 : vector<8x128xf32>
    %110 = math.exp %109 : vector<8x128xf32>
    %cst_52 = arith.constant 1.000000e+00 : f32
    %111 = vector.broadcast %cst_52 : f32 to vector<8x128xf32>
    %112 = arith.addf %111, %110 : vector<8x128xf32>
    %113 = arith.divf %111, %112 : vector<8x128xf32>
    %114 = vector.extract_strided_slice %99 {offsets = [0, 128], sizes = [8, 128], strides = [1, 1]} : vector<8x384xf32> to vector<8x128xf32>
    %115 = vector.extract_strided_slice %105 {offsets = [0, 128], sizes = [8, 128], strides = [1, 1]} : vector<8x384xf32> to vector<8x128xf32>
    %116 = arith.addf %114, %115 : vector<8x128xf32>
    %117 = arith.negf %116 : vector<8x128xf32>
    %118 = math.exp %117 : vector<8x128xf32>
    %cst_53 = arith.constant 1.000000e+00 : f32
    %119 = vector.broadcast %cst_53 : f32 to vector<8x128xf32>
    %120 = arith.addf %119, %118 : vector<8x128xf32>
    %121 = arith.divf %119, %120 : vector<8x128xf32>
    %122 = vector.extract_strided_slice %99 {offsets = [0, 256], sizes = [8, 128], strides = [1, 1]} : vector<8x384xf32> to vector<8x128xf32>
    %123 = vector.extract_strided_slice %105 {offsets = [0, 256], sizes = [8, 128], strides = [1, 1]} : vector<8x384xf32> to vector<8x128xf32>
    %124 = arith.mulf %113, %123 : vector<8x128xf32>
    %125 = arith.addf %122, %124 : vector<8x128xf32>
    %126 = math.tanh %125 : vector<8x128xf32>
    %cst_54 = arith.constant 1.000000e+00 : f32
    %127 = vector.broadcast %cst_54 : f32 to vector<8x128xf32>
    %128 = arith.subf %127, %121 : vector<8x128xf32>
    %129 = arith.mulf %128, %126 : vector<8x128xf32>
    %130 = arith.mulf %121, %96 : vector<8x128xf32>
    %131 = arith.addf %129, %130 : vector<8x128xf32>
    %c0_55 = arith.constant 0 : index
    %c0_56 = arith.constant 0 : index
    %132 = vector.load %arg8[%c0_55, %c0_56] : memref<8x128xf32, #tpu.memory_space<vmem>>, vector<8x128xf32>
    tpu.vector_store %arg8[%c0_55, %c0_56], %131 {strides = array<i32>} : memref<8x128xf32, #tpu.memory_space<vmem>>, vector<8x128xf32>,
    %133 = arith.truncf %131 : vector<8x128xf32> to vector<8x128xbf16>
    %134 = arith.index_cast %c2_i32 : i32 to index
    %c0_57 = arith.constant 0 : index
    %c0_58 = arith.constant 0 : index
    %135 = vector.load %arg7[%134, %c0_57, %c0_58] : memref<8x8x128xbf16, #tpu.memory_space<vmem>>, vector<1x8x128xbf16>
    %136 = vector.shape_cast %135 : vector<1x8x128xbf16> to vector<8x128xbf16>
    %137 = vector.shape_cast %133 : vector<8x128xbf16> to vector<1x8x128xbf16>
    tpu.vector_store %arg7[%134, %c0_57, %c0_58], %137 {strides = array<i32>} : memref<8x8x128xbf16, #tpu.memory_space<vmem>>, vector<1x8x128xbf16>,
    %c3_i32 = arith.constant 3 : i32
    %c0_59 = arith.constant 0 : index
    %c0_60 = arith.constant 0 : index
    %138 = vector.load %arg8[%c0_59, %c0_60] : memref<8x128xf32, #tpu.memory_space<vmem>>, vector<8x128xf32>
    %139 = arith.index_cast %c3_i32 : i32 to index
    %c0_61 = arith.constant 0 : index
    %c0_62 = arith.constant 0 : index
    %140 = vector.load %arg9[%139, %c0_61, %c0_62] : memref<8x8x384xf32, #tpu.memory_space<vmem>>, vector<1x8x384xf32>
    %141 = vector.shape_cast %140 : vector<1x8x384xf32> to vector<8x384xf32>
    %142 = arith.truncf %138 : vector<8x128xf32> to vector<8x128xbf16>
    %c0_63 = arith.constant 0 : index
    %c0_64 = arith.constant 0 : index
    %143 = vector.load %arg5[%c0_63, %c0_64] : memref<128x384xbf16, #tpu.memory_space<vmem>>, vector<128x384xbf16>
    %cst_65 = arith.constant dense<0.000000e+00> : vector<8x384xf32>
    %144 = tpu.matmul %142, %143, %cst_65 {dimension_numbers = #tpu.dot_dimension_numbers<[1], [0], [0], [1], [0, 0, 1, 1], [], []>} : vector<8x128xbf16>, vector<128x384xbf16>, vector<8x384xf32> -> vector<8x384xf32>
    %c0_66 = arith.constant 0 : index
    %c0_67 = arith.constant 0 : index
    %145 = vector.load %arg6[%c0_66, %c0_67] : memref<1x384xf32, #tpu.memory_space<vmem>>, vector<1x384xf32>
    %146 = vector.broadcast %145 : vector<1x384xf32> to vector<8x384xf32>
    %147 = arith.addf %144, %146 : vector<8x384xf32>
    %148 = vector.extract_strided_slice %141 {offsets = [0, 0], sizes = [8, 128], strides = [1, 1]} : vector<8x384xf32> to vector<8x128xf32>
    %149 = vector.extract_strided_slice %147 {offsets = [0, 0], sizes = [8, 128], strides = [1, 1]} : vector<8x384xf32> to vector<8x128xf32>
    %150 = arith.addf %148, %149 : vector<8x128xf32>
    %151 = arith.negf %150 : vector<8x128xf32>
    %152 = math.exp %151 : vector<8x128xf32>
    %cst_68 = arith.constant 1.000000e+00 : f32
    %153 = vector.broadcast %cst_68 : f32 to vector<8x128xf32>
    %154 = arith.addf %153, %152 : vector<8x128xf32>
    %155 = arith.divf %153, %154 : vector<8x128xf32>
    %156 = vector.extract_strided_slice %141 {offsets = [0, 128], sizes = [8, 128], strides = [1, 1]} : vector<8x384xf32> to vector<8x128xf32>
    %157 = vector.extract_strided_slice %147 {offsets = [0, 128], sizes = [8, 128], strides = [1, 1]} : vector<8x384xf32> to vector<8x128xf32>
    %158 = arith.addf %156, %157 : vector<8x128xf32>
    %159 = arith.negf %158 : vector<8x128xf32>
    %160 = math.exp %159 : vector<8x128xf32>
    %cst_69 = arith.constant 1.000000e+00 : f32
    %161 = vector.broadcast %cst_69 : f32 to vector<8x128xf32>
    %162 = arith.addf %161, %160 : vector<8x128xf32>
    %163 = arith.divf %161, %162 : vector<8x128xf32>
    %164 = vector.extract_strided_slice %141 {offsets = [0, 256], sizes = [8, 128], strides = [1, 1]} : vector<8x384xf32> to vector<8x128xf32>
    %165 = vector.extract_strided_slice %147 {offsets = [0, 256], sizes = [8, 128], strides = [1, 1]} : vector<8x384xf32> to vector<8x128xf32>
    %166 = arith.mulf %155, %165 : vector<8x128xf32>
    %167 = arith.addf %164, %166 : vector<8x128xf32>
    %168 = math.tanh %167 : vector<8x128xf32>
    %cst_70 = arith.constant 1.000000e+00 : f32
    %169 = vector.broadcast %cst_70 : f32 to vector<8x128xf32>
    %170 = arith.subf %169, %163 : vector<8x128xf32>
    %171 = arith.mulf %170, %168 : vector<8x128xf32>
    %172 = arith.mulf %163, %138 : vector<8x128xf32>
    %173 = arith.addf %171, %172 : vector<8x128xf32>
    %c0_71 = arith.constant 0 : index
    %c0_72 = arith.constant 0 : index
    %174 = vector.load %arg8[%c0_71, %c0_72] : memref<8x128xf32, #tpu.memory_space<vmem>>, vector<8x128xf32>
    tpu.vector_store %arg8[%c0_71, %c0_72], %173 {strides = array<i32>} : memref<8x128xf32, #tpu.memory_space<vmem>>, vector<8x128xf32>,
    %175 = arith.truncf %173 : vector<8x128xf32> to vector<8x128xbf16>
    %176 = arith.index_cast %c3_i32 : i32 to index
    %c0_73 = arith.constant 0 : index
    %c0_74 = arith.constant 0 : index
    %177 = vector.load %arg7[%176, %c0_73, %c0_74] : memref<8x8x128xbf16, #tpu.memory_space<vmem>>, vector<1x8x128xbf16>
    %178 = vector.shape_cast %177 : vector<1x8x128xbf16> to vector<8x128xbf16>
    %179 = vector.shape_cast %175 : vector<8x128xbf16> to vector<1x8x128xbf16>
    tpu.vector_store %arg7[%176, %c0_73, %c0_74], %179 {strides = array<i32>} : memref<8x8x128xbf16, #tpu.memory_space<vmem>>, vector<1x8x128xbf16>,
    %c4_i32 = arith.constant 4 : i32
    %c0_75 = arith.constant 0 : index
    %c0_76 = arith.constant 0 : index
    %180 = vector.load %arg8[%c0_75, %c0_76] : memref<8x128xf32, #tpu.memory_space<vmem>>, vector<8x128xf32>
    %181 = arith.index_cast %c4_i32 : i32 to index
    %c0_77 = arith.constant 0 : index
    %c0_78 = arith.constant 0 : index
    %182 = vector.load %arg9[%181, %c0_77, %c0_78] : memref<8x8x384xf32, #tpu.memory_space<vmem>>, vector<1x8x384xf32>
    %183 = vector.shape_cast %182 : vector<1x8x384xf32> to vector<8x384xf32>
    %184 = arith.truncf %180 : vector<8x128xf32> to vector<8x128xbf16>
    %c0_79 = arith.constant 0 : index
    %c0_80 = arith.constant 0 : index
    %185 = vector.load %arg5[%c0_79, %c0_80] : memref<128x384xbf16, #tpu.memory_space<vmem>>, vector<128x384xbf16>
    %cst_81 = arith.constant dense<0.000000e+00> : vector<8x384xf32>
    %186 = tpu.matmul %184, %185, %cst_81 {dimension_numbers = #tpu.dot_dimension_numbers<[1], [0], [0], [1], [0, 0, 1, 1], [], []>} : vector<8x128xbf16>, vector<128x384xbf16>, vector<8x384xf32> -> vector<8x384xf32>
    %c0_82 = arith.constant 0 : index
    %c0_83 = arith.constant 0 : index
    %187 = vector.load %arg6[%c0_82, %c0_83] : memref<1x384xf32, #tpu.memory_space<vmem>>, vector<1x384xf32>
    %188 = vector.broadcast %187 : vector<1x384xf32> to vector<8x384xf32>
    %189 = arith.addf %186, %188 : vector<8x384xf32>
    %190 = vector.extract_strided_slice %183 {offsets = [0, 0], sizes = [8, 128], strides = [1, 1]} : vector<8x384xf32> to vector<8x128xf32>
    %191 = vector.extract_strided_slice %189 {offsets = [0, 0], sizes = [8, 128], strides = [1, 1]} : vector<8x384xf32> to vector<8x128xf32>
    %192 = arith.addf %190, %191 : vector<8x128xf32>
    %193 = arith.negf %192 : vector<8x128xf32>
    %194 = math.exp %193 : vector<8x128xf32>
    %cst_84 = arith.constant 1.000000e+00 : f32
    %195 = vector.broadcast %cst_84 : f32 to vector<8x128xf32>
    %196 = arith.addf %195, %194 : vector<8x128xf32>
    %197 = arith.divf %195, %196 : vector<8x128xf32>
    %198 = vector.extract_strided_slice %183 {offsets = [0, 128], sizes = [8, 128], strides = [1, 1]} : vector<8x384xf32> to vector<8x128xf32>
    %199 = vector.extract_strided_slice %189 {offsets = [0, 128], sizes = [8, 128], strides = [1, 1]} : vector<8x384xf32> to vector<8x128xf32>
    %200 = arith.addf %198, %199 : vector<8x128xf32>
    %201 = arith.negf %200 : vector<8x128xf32>
    %202 = math.exp %201 : vector<8x128xf32>
    %cst_85 = arith.constant 1.000000e+00 : f32
    %203 = vector.broadcast %cst_85 : f32 to vector<8x128xf32>
    %204 = arith.addf %203, %202 : vector<8x128xf32>
    %205 = arith.divf %203, %204 : vector<8x128xf32>
    %206 = vector.extract_strided_slice %183 {offsets = [0, 256], sizes = [8, 128], strides = [1, 1]} : vector<8x384xf32> to vector<8x128xf32>
    %207 = vector.extract_strided_slice %189 {offsets = [0, 256], sizes = [8, 128], strides = [1, 1]} : vector<8x384xf32> to vector<8x128xf32>
    %208 = arith.mulf %197, %207 : vector<8x128xf32>
    %209 = arith.addf %206, %208 : vector<8x128xf32>
    %210 = math.tanh %209 : vector<8x128xf32>
    %cst_86 = arith.constant 1.000000e+00 : f32
    %211 = vector.broadcast %cst_86 : f32 to vector<8x128xf32>
    %212 = arith.subf %211, %205 : vector<8x128xf32>
    %213 = arith.mulf %212, %210 : vector<8x128xf32>
    %214 = arith.mulf %205, %180 : vector<8x128xf32>
    %215 = arith.addf %213, %214 : vector<8x128xf32>
    %c0_87 = arith.constant 0 : index
    %c0_88 = arith.constant 0 : index
    %216 = vector.load %arg8[%c0_87, %c0_88] : memref<8x128xf32, #tpu.memory_space<vmem>>, vector<8x128xf32>
    tpu.vector_store %arg8[%c0_87, %c0_88], %215 {strides = array<i32>} : memref<8x128xf32, #tpu.memory_space<vmem>>, vector<8x128xf32>,
    %217 = arith.truncf %215 : vector<8x128xf32> to vector<8x128xbf16>
    %218 = arith.index_cast %c4_i32 : i32 to index
    %c0_89 = arith.constant 0 : index
    %c0_90 = arith.constant 0 : index
    %219 = vector.load %arg7[%218, %c0_89, %c0_90] : memref<8x8x128xbf16, #tpu.memory_space<vmem>>, vector<1x8x128xbf16>
    %220 = vector.shape_cast %219 : vector<1x8x128xbf16> to vector<8x128xbf16>
    %221 = vector.shape_cast %217 : vector<8x128xbf16> to vector<1x8x128xbf16>
    tpu.vector_store %arg7[%218, %c0_89, %c0_90], %221 {strides = array<i32>} : memref<8x8x128xbf16, #tpu.memory_space<vmem>>, vector<1x8x128xbf16>,
    %c5_i32 = arith.constant 5 : i32
    %c0_91 = arith.constant 0 : index
    %c0_92 = arith.constant 0 : index
    %222 = vector.load %arg8[%c0_91, %c0_92] : memref<8x128xf32, #tpu.memory_space<vmem>>, vector<8x128xf32>
    %223 = arith.index_cast %c5_i32 : i32 to index
    %c0_93 = arith.constant 0 : index
    %c0_94 = arith.constant 0 : index
    %224 = vector.load %arg9[%223, %c0_93, %c0_94] : memref<8x8x384xf32, #tpu.memory_space<vmem>>, vector<1x8x384xf32>
    %225 = vector.shape_cast %224 : vector<1x8x384xf32> to vector<8x384xf32>
    %226 = arith.truncf %222 : vector<8x128xf32> to vector<8x128xbf16>
    %c0_95 = arith.constant 0 : index
    %c0_96 = arith.constant 0 : index
    %227 = vector.load %arg5[%c0_95, %c0_96] : memref<128x384xbf16, #tpu.memory_space<vmem>>, vector<128x384xbf16>
    %cst_97 = arith.constant dense<0.000000e+00> : vector<8x384xf32>
    %228 = tpu.matmul %226, %227, %cst_97 {dimension_numbers = #tpu.dot_dimension_numbers<[1], [0], [0], [1], [0, 0, 1, 1], [], []>} : vector<8x128xbf16>, vector<128x384xbf16>, vector<8x384xf32> -> vector<8x384xf32>
    %c0_98 = arith.constant 0 : index
    %c0_99 = arith.constant 0 : index
    %229 = vector.load %arg6[%c0_98, %c0_99] : memref<1x384xf32, #tpu.memory_space<vmem>>, vector<1x384xf32>
    %230 = vector.broadcast %229 : vector<1x384xf32> to vector<8x384xf32>
    %231 = arith.addf %228, %230 : vector<8x384xf32>
    %232 = vector.extract_strided_slice %225 {offsets = [0, 0], sizes = [8, 128], strides = [1, 1]} : vector<8x384xf32> to vector<8x128xf32>
    %233 = vector.extract_strided_slice %231 {offsets = [0, 0], sizes = [8, 128], strides = [1, 1]} : vector<8x384xf32> to vector<8x128xf32>
    %234 = arith.addf %232, %233 : vector<8x128xf32>
    %235 = arith.negf %234 : vector<8x128xf32>
    %236 = math.exp %235 : vector<8x128xf32>
    %cst_100 = arith.constant 1.000000e+00 : f32
    %237 = vector.broadcast %cst_100 : f32 to vector<8x128xf32>
    %238 = arith.addf %237, %236 : vector<8x128xf32>
    %239 = arith.divf %237, %238 : vector<8x128xf32>
    %240 = vector.extract_strided_slice %225 {offsets = [0, 128], sizes = [8, 128], strides = [1, 1]} : vector<8x384xf32> to vector<8x128xf32>
    %241 = vector.extract_strided_slice %231 {offsets = [0, 128], sizes = [8, 128], strides = [1, 1]} : vector<8x384xf32> to vector<8x128xf32>
    %242 = arith.addf %240, %241 : vector<8x128xf32>
    %243 = arith.negf %242 : vector<8x128xf32>
    %244 = math.exp %243 : vector<8x128xf32>
    %cst_101 = arith.constant 1.000000e+00 : f32
    %245 = vector.broadcast %cst_101 : f32 to vector<8x128xf32>
    %246 = arith.addf %245, %244 : vector<8x128xf32>
    %247 = arith.divf %245, %246 : vector<8x128xf32>
    %248 = vector.extract_strided_slice %225 {offsets = [0, 256], sizes = [8, 128], strides = [1, 1]} : vector<8x384xf32> to vector<8x128xf32>
    %249 = vector.extract_strided_slice %231 {offsets = [0, 256], sizes = [8, 128], strides = [1, 1]} : vector<8x384xf32> to vector<8x128xf32>
    %250 = arith.mulf %239, %249 : vector<8x128xf32>
    %251 = arith.addf %248, %250 : vector<8x128xf32>
    %252 = math.tanh %251 : vector<8x128xf32>
    %cst_102 = arith.constant 1.000000e+00 : f32
    %253 = vector.broadcast %cst_102 : f32 to vector<8x128xf32>
    %254 = arith.subf %253, %247 : vector<8x128xf32>
    %255 = arith.mulf %254, %252 : vector<8x128xf32>
    %256 = arith.mulf %247, %222 : vector<8x128xf32>
    %257 = arith.addf %255, %256 : vector<8x128xf32>
    %c0_103 = arith.constant 0 : index
    %c0_104 = arith.constant 0 : index
    %258 = vector.load %arg8[%c0_103, %c0_104] : memref<8x128xf32, #tpu.memory_space<vmem>>, vector<8x128xf32>
    tpu.vector_store %arg8[%c0_103, %c0_104], %257 {strides = array<i32>} : memref<8x128xf32, #tpu.memory_space<vmem>>, vector<8x128xf32>,
    %259 = arith.truncf %257 : vector<8x128xf32> to vector<8x128xbf16>
    %260 = arith.index_cast %c5_i32 : i32 to index
    %c0_105 = arith.constant 0 : index
    %c0_106 = arith.constant 0 : index
    %261 = vector.load %arg7[%260, %c0_105, %c0_106] : memref<8x8x128xbf16, #tpu.memory_space<vmem>>, vector<1x8x128xbf16>
    %262 = vector.shape_cast %261 : vector<1x8x128xbf16> to vector<8x128xbf16>
    %263 = vector.shape_cast %259 : vector<8x128xbf16> to vector<1x8x128xbf16>
    tpu.vector_store %arg7[%260, %c0_105, %c0_106], %263 {strides = array<i32>} : memref<8x8x128xbf16, #tpu.memory_space<vmem>>, vector<1x8x128xbf16>,
    %c6_i32 = arith.constant 6 : i32
    %c0_107 = arith.constant 0 : index
    %c0_108 = arith.constant 0 : index
    %264 = vector.load %arg8[%c0_107, %c0_108] : memref<8x128xf32, #tpu.memory_space<vmem>>, vector<8x128xf32>
    %265 = arith.index_cast %c6_i32 : i32 to index
    %c0_109 = arith.constant 0 : index
    %c0_110 = arith.constant 0 : index
    %266 = vector.load %arg9[%265, %c0_109, %c0_110] : memref<8x8x384xf32, #tpu.memory_space<vmem>>, vector<1x8x384xf32>
    %267 = vector.shape_cast %266 : vector<1x8x384xf32> to vector<8x384xf32>
    %268 = arith.truncf %264 : vector<8x128xf32> to vector<8x128xbf16>
    %c0_111 = arith.constant 0 : index
    %c0_112 = arith.constant 0 : index
    %269 = vector.load %arg5[%c0_111, %c0_112] : memref<128x384xbf16, #tpu.memory_space<vmem>>, vector<128x384xbf16>
    %cst_113 = arith.constant dense<0.000000e+00> : vector<8x384xf32>
    %270 = tpu.matmul %268, %269, %cst_113 {dimension_numbers = #tpu.dot_dimension_numbers<[1], [0], [0], [1], [0, 0, 1, 1], [], []>} : vector<8x128xbf16>, vector<128x384xbf16>, vector<8x384xf32> -> vector<8x384xf32>
    %c0_114 = arith.constant 0 : index
    %c0_115 = arith.constant 0 : index
    %271 = vector.load %arg6[%c0_114, %c0_115] : memref<1x384xf32, #tpu.memory_space<vmem>>, vector<1x384xf32>
    %272 = vector.broadcast %271 : vector<1x384xf32> to vector<8x384xf32>
    %273 = arith.addf %270, %272 : vector<8x384xf32>
    %274 = vector.extract_strided_slice %267 {offsets = [0, 0], sizes = [8, 128], strides = [1, 1]} : vector<8x384xf32> to vector<8x128xf32>
    %275 = vector.extract_strided_slice %273 {offsets = [0, 0], sizes = [8, 128], strides = [1, 1]} : vector<8x384xf32> to vector<8x128xf32>
    %276 = arith.addf %274, %275 : vector<8x128xf32>
    %277 = arith.negf %276 : vector<8x128xf32>
    %278 = math.exp %277 : vector<8x128xf32>
    %cst_116 = arith.constant 1.000000e+00 : f32
    %279 = vector.broadcast %cst_116 : f32 to vector<8x128xf32>
    %280 = arith.addf %279, %278 : vector<8x128xf32>
    %281 = arith.divf %279, %280 : vector<8x128xf32>
    %282 = vector.extract_strided_slice %267 {offsets = [0, 128], sizes = [8, 128], strides = [1, 1]} : vector<8x384xf32> to vector<8x128xf32>
    %283 = vector.extract_strided_slice %273 {offsets = [0, 128], sizes = [8, 128], strides = [1, 1]} : vector<8x384xf32> to vector<8x128xf32>
    %284 = arith.addf %282, %283 : vector<8x128xf32>
    %285 = arith.negf %284 : vector<8x128xf32>
    %286 = math.exp %285 : vector<8x128xf32>
    %cst_117 = arith.constant 1.000000e+00 : f32
    %287 = vector.broadcast %cst_117 : f32 to vector<8x128xf32>
    %288 = arith.addf %287, %286 : vector<8x128xf32>
    %289 = arith.divf %287, %288 : vector<8x128xf32>
    %290 = vector.extract_strided_slice %267 {offsets = [0, 256], sizes = [8, 128], strides = [1, 1]} : vector<8x384xf32> to vector<8x128xf32>
    %291 = vector.extract_strided_slice %273 {offsets = [0, 256], sizes = [8, 128], strides = [1, 1]} : vector<8x384xf32> to vector<8x128xf32>
    %292 = arith.mulf %281, %291 : vector<8x128xf32>
    %293 = arith.addf %290, %292 : vector<8x128xf32>
    %294 = math.tanh %293 : vector<8x128xf32>
    %cst_118 = arith.constant 1.000000e+00 : f32
    %295 = vector.broadcast %cst_118 : f32 to vector<8x128xf32>
    %296 = arith.subf %295, %289 : vector<8x128xf32>
    %297 = arith.mulf %296, %294 : vector<8x128xf32>
    %298 = arith.mulf %289, %264 : vector<8x128xf32>
    %299 = arith.addf %297, %298 : vector<8x128xf32>
    %c0_119 = arith.constant 0 : index
    %c0_120 = arith.constant 0 : index
    %300 = vector.load %arg8[%c0_119, %c0_120] : memref<8x128xf32, #tpu.memory_space<vmem>>, vector<8x128xf32>
    tpu.vector_store %arg8[%c0_119, %c0_120], %299 {strides = array<i32>} : memref<8x128xf32, #tpu.memory_space<vmem>>, vector<8x128xf32>,
    %301 = arith.truncf %299 : vector<8x128xf32> to vector<8x128xbf16>
    %302 = arith.index_cast %c6_i32 : i32 to index
    %c0_121 = arith.constant 0 : index
    %c0_122 = arith.constant 0 : index
    %303 = vector.load %arg7[%302, %c0_121, %c0_122] : memref<8x8x128xbf16, #tpu.memory_space<vmem>>, vector<1x8x128xbf16>
    %304 = vector.shape_cast %303 : vector<1x8x128xbf16> to vector<8x128xbf16>
    %305 = vector.shape_cast %301 : vector<8x128xbf16> to vector<1x8x128xbf16>
    tpu.vector_store %arg7[%302, %c0_121, %c0_122], %305 {strides = array<i32>} : memref<8x8x128xbf16, #tpu.memory_space<vmem>>, vector<1x8x128xbf16>,
    %c7_i32 = arith.constant 7 : i32
    %c0_123 = arith.constant 0 : index
    %c0_124 = arith.constant 0 : index
    %306 = vector.load %arg8[%c0_123, %c0_124] : memref<8x128xf32, #tpu.memory_space<vmem>>, vector<8x128xf32>
    %307 = arith.index_cast %c7_i32 : i32 to index
    %c0_125 = arith.constant 0 : index
    %c0_126 = arith.constant 0 : index
    %308 = vector.load %arg9[%307, %c0_125, %c0_126] : memref<8x8x384xf32, #tpu.memory_space<vmem>>, vector<1x8x384xf32>
    %309 = vector.shape_cast %308 : vector<1x8x384xf32> to vector<8x384xf32>
    %310 = arith.truncf %306 : vector<8x128xf32> to vector<8x128xbf16>
    %c0_127 = arith.constant 0 : index
    %c0_128 = arith.constant 0 : index
    %311 = vector.load %arg5[%c0_127, %c0_128] : memref<128x384xbf16, #tpu.memory_space<vmem>>, vector<128x384xbf16>
    %cst_129 = arith.constant dense<0.000000e+00> : vector<8x384xf32>
    %312 = tpu.matmul %310, %311, %cst_129 {dimension_numbers = #tpu.dot_dimension_numbers<[1], [0], [0], [1], [0, 0, 1, 1], [], []>} : vector<8x128xbf16>, vector<128x384xbf16>, vector<8x384xf32> -> vector<8x384xf32>
    %c0_130 = arith.constant 0 : index
    %c0_131 = arith.constant 0 : index
    %313 = vector.load %arg6[%c0_130, %c0_131] : memref<1x384xf32, #tpu.memory_space<vmem>>, vector<1x384xf32>
    %314 = vector.broadcast %313 : vector<1x384xf32> to vector<8x384xf32>
    %315 = arith.addf %312, %314 : vector<8x384xf32>
    %316 = vector.extract_strided_slice %309 {offsets = [0, 0], sizes = [8, 128], strides = [1, 1]} : vector<8x384xf32> to vector<8x128xf32>
    %317 = vector.extract_strided_slice %315 {offsets = [0, 0], sizes = [8, 128], strides = [1, 1]} : vector<8x384xf32> to vector<8x128xf32>
    %318 = arith.addf %316, %317 : vector<8x128xf32>
    %319 = arith.negf %318 : vector<8x128xf32>
    %320 = math.exp %319 : vector<8x128xf32>
    %cst_132 = arith.constant 1.000000e+00 : f32
    %321 = vector.broadcast %cst_132 : f32 to vector<8x128xf32>
    %322 = arith.addf %321, %320 : vector<8x128xf32>
    %323 = arith.divf %321, %322 : vector<8x128xf32>
    %324 = vector.extract_strided_slice %309 {offsets = [0, 128], sizes = [8, 128], strides = [1, 1]} : vector<8x384xf32> to vector<8x128xf32>
    %325 = vector.extract_strided_slice %315 {offsets = [0, 128], sizes = [8, 128], strides = [1, 1]} : vector<8x384xf32> to vector<8x128xf32>
    %326 = arith.addf %324, %325 : vector<8x128xf32>
    %327 = arith.negf %326 : vector<8x128xf32>
    %328 = math.exp %327 : vector<8x128xf32>
    %cst_133 = arith.constant 1.000000e+00 : f32
    %329 = vector.broadcast %cst_133 : f32 to vector<8x128xf32>
    %330 = arith.addf %329, %328 : vector<8x128xf32>
    %331 = arith.divf %329, %330 : vector<8x128xf32>
    %332 = vector.extract_strided_slice %309 {offsets = [0, 256], sizes = [8, 128], strides = [1, 1]} : vector<8x384xf32> to vector<8x128xf32>
    %333 = vector.extract_strided_slice %315 {offsets = [0, 256], sizes = [8, 128], strides = [1, 1]} : vector<8x384xf32> to vector<8x128xf32>
    %334 = arith.mulf %323, %333 : vector<8x128xf32>
    %335 = arith.addf %332, %334 : vector<8x128xf32>
    %336 = math.tanh %335 : vector<8x128xf32>
    %cst_134 = arith.constant 1.000000e+00 : f32
    %337 = vector.broadcast %cst_134 : f32 to vector<8x128xf32>
    %338 = arith.subf %337, %331 : vector<8x128xf32>
    %339 = arith.mulf %338, %336 : vector<8x128xf32>
    %340 = arith.mulf %331, %306 : vector<8x128xf32>
    %341 = arith.addf %339, %340 : vector<8x128xf32>
    %c0_135 = arith.constant 0 : index
    %c0_136 = arith.constant 0 : index
    %342 = vector.load %arg8[%c0_135, %c0_136] : memref<8x128xf32, #tpu.memory_space<vmem>>, vector<8x128xf32>
    tpu.vector_store %arg8[%c0_135, %c0_136], %341 {strides = array<i32>} : memref<8x128xf32, #tpu.memory_space<vmem>>, vector<8x128xf32>,
    %343 = arith.truncf %341 : vector<8x128xf32> to vector<8x128xbf16>
    %344 = arith.index_cast %c7_i32 : i32 to index
    %c0_137 = arith.constant 0 : index
    %c0_138 = arith.constant 0 : index
    %345 = vector.load %arg7[%344, %c0_137, %c0_138] : memref<8x8x128xbf16, #tpu.memory_space<vmem>>, vector<1x8x128xbf16>
    %346 = vector.shape_cast %345 : vector<1x8x128xbf16> to vector<8x128xbf16>
    %347 = vector.shape_cast %343 : vector<8x128xbf16> to vector<1x8x128xbf16>
    tpu.vector_store %arg7[%344, %c0_137, %c0_138], %347 {strides = array<i32>} : memref<8x8x128xbf16, #tpu.memory_space<vmem>>, vector<1x8x128xbf16>,
    %c8_i32 = arith.constant 8 : i32
    return
  }
  func.func @transform_0(%arg0: i32, %arg1: i32) -> (i32, i32, i32) {
    %c0_i32 = arith.constant 0 : i32
    %c0_i32_0 = arith.constant 0 : i32
    return %arg1, %arg0, %c0_i32 : i32, i32, i32
  }
  func.func @transform_1(%arg0: i32, %arg1: i32) -> (i32, i32) {
    %c0_i32 = arith.constant 0 : i32
    %c0_i32_0 = arith.constant 0 : i32
    %c0_i32_1 = arith.constant 0 : i32
    return %c0_i32, %c0_i32_0 : i32, i32
  }
  func.func @transform_2(%arg0: i32, %arg1: i32) -> (i32, i32) {
    %c0_i32 = arith.constant 0 : i32
    %c0_i32_0 = arith.constant 0 : i32
    %c0_i32_1 = arith.constant 0 : i32
    return %c0_i32, %c0_i32_0 : i32, i32
  }
  func.func @transform_3(%arg0: i32, %arg1: i32) -> (i32, i32) {
    %c0_i32 = arith.constant 0 : i32
    %c0_i32_0 = arith.constant 0 : i32
    %c0_i32_1 = arith.constant 0 : i32
    return %c0_i32, %c0_i32_0 : i32, i32
  }
  func.func @transform_4(%arg0: i32, %arg1: i32) -> (i32, i32) {
    %c0_i32 = arith.constant 0 : i32
    %c0_i32_0 = arith.constant 0 : i32
    %c0_i32_1 = arith.constant 0 : i32
    return %c0_i32, %c0_i32_0 : i32, i32
  }
  func.func @transform_5(%arg0: i32, %arg1: i32) -> (i32, i32, i32) {
    %c0_i32 = arith.constant 0 : i32
    %c0_i32_0 = arith.constant 0 : i32
    return %arg1, %arg0, %c0_i32 : i32, i32, i32
  }
}

</mosaic_0001>

<llo_original>
// kernel: tpu_custom_call.1
$region0: #{tpu_custom_call.1}
  #allocation0 [shape = 'u32[]', space=smem, size = 0x4, offset = 0x4, fixed_abs, tag = 'smem constant byte address 0x4 - core index']
  #allocation1 [shape = 'u32[144,128]{1,0:T(1,128)}', space=vmem, size = 0x12000, scoped, tag = 'internal scratch']
  #allocation2 [shape = 'f32[8,128]{1,0:T(8,128)}', space=vmem, size = 0x1000, scoped, tag = 'scratch operand']
  #allocation3 [shape = 'f32[8,8,384]{2,1,0:T(8,128)}', space=vmem, size = 0x18000, scoped, tag = 'scratch operand']
  %s0 = inlined_call_operand.hbm [shape: bf16[8,8,128], index: 0, kind: input, shape index: {}]
  %s1 = inlined_call_operand.hbm [shape: bf16[128,384], index: 1, kind: input, shape index: {}]
  %s2 = inlined_call_operand.hbm [shape: f32[1,384], index: 2, kind: input, shape index: {}]
  %s3 = inlined_call_operand.hbm [shape: bf16[128,384], index: 3, kind: input, shape index: {}]
  %s4 = inlined_call_operand.hbm [shape: f32[1,384], index: 4, kind: input, shape index: {}]
  %s5 = inlined_call_operand.hbm [shape: bf16[8,8,128], index: 5, kind: output, shape index: {}]
  %s6 = sld [smem:[#allocation0]]
  $region54: #{tpu_custom_call.1} parent=0
    _
  %s8 = ssub.s32 1, %s6
  %s9 = scalar_select 0, %s8, %s6
  $region1: #{tpu_custom_call.1} parent=0
    #allocation4 [shape = 'u8[16384]{0}', space=vmem, size = 0x4000, scoped, tag = 'input window, operand 0, single buffered']
    #allocation5 [shape = 's32[1]{0}', space=sflag, size = 0x4, scoped, tag = 'scoped memory for tpu_custom_call.1']
    #allocation6 [shape = 's32[1]{0}', space=sflag, size = 0x4, scoped, tag = 'scoped memory for tpu_custom_call.1']
    #allocation7 [shape = 'u8[98304]{0}', space=vmem, size = 0x18000, scoped, tag = 'input window, operand 1, single buffered']
    #allocation8 [shape = 's32[1]{0}', space=sflag, size = 0x4, scoped, tag = 'scoped memory for tpu_custom_call.1']
    #allocation9 [shape = 'u8[1536]{0}', space=vmem, size = 0x800, scoped, tag = 'input window, operand 2, single buffered']
    #allocation10 [shape = 'u8[98304]{0}', space=vmem, size = 0x18000, scoped, tag = 'input window, operand 3, single buffered']
    #allocation11 [shape = 's32[1]{0}', space=sflag, size = 0x4, scoped, tag = 'scoped memory for tpu_custom_call.1']
    #allocation12 [shape = 'u8[1536]{0}', space=vmem, size = 0x800, scoped, tag = 'input window, operand 4, single buffered']
    #allocation13 [shape = 'u8[16384]{0}', space=vmem, size = 0x4000, scoped, tag = 'output window, operand 0, single buffered']
    %10 = vsyncpa [#allocation5], 0
    %11 = vsyncpa [#allocation8], 0
    %12 = vsyncpa [#allocation11], 0
    %13 = vsyncpa [#allocation6], 0
    // Predicated region
    $region2: #{tpu_custom_call.1} parent=1 // pred_check
      _
    $region3: #{tpu_custom_call.1} parent=1 // pred_check_branch
      %15 = sbr.rel (0) target = $region5
    $region4: #{tpu_custom_call.1} parent=1 // pred_region
      %s17 = ssub.s32 512, 512
      %18 = vsyncadd [#allocation5], %s17
      %s19 = sshll.u32 [#allocation4], 4
      %s20 = int_to_ptr.vmem [resolvable:$true] %s19
      %25 = dma.hbm_to_vmem [thread:$0]  %s0, 512, %s20, [#allocation5], 64, 64, 4
    $region5: #{tpu_custom_call.1} parent=1 // pred_fallthru
      _
    // Predicated region
    $region6: #{tpu_custom_call.1} parent=1 // pred_check
      _
    $region7: #{tpu_custom_call.1} parent=1 // pred_check_branch
      %27 = sbr.rel (0) target = $region9
    $region8: #{tpu_custom_call.1} parent=1 // pred_region
      %s29 = ssub.s32 3072, 3072
      %30 = vsyncadd [#allocation8], %s29
      %s31 = sshll.u32 [#allocation7], 4
      %s32 = int_to_ptr.vmem [resolvable:$true] %s31
      %37 = dma.hbm_to_vmem [thread:$0]  %s1, 3072, %s32, [#allocation8], 192, 192, 12
    $region9: #{tpu_custom_call.1} parent=1 // pred_fallthru
      _
    // Predicated region
    $region10: #{tpu_custom_call.1} parent=1 // pred_check
      _
    $region11: #{tpu_custom_call.1} parent=1 // pred_check_branch
      %39 = sbr.rel (0) target = $region13
    $region12: #{tpu_custom_call.1} parent=1 // pred_region
      %s41 = ssub.s32 48, 48
      %42 = vsyncadd [#allocation8], %s41
      %s44 = sshll.u32 [#allocation9], 4
      %s45 = int_to_ptr.vmem [resolvable:$true] %s44
      %47 = dma.hbm_to_vmem [thread:$0]  %s2, 48, %s45, [#allocation8]
    $region13: #{tpu_custom_call.1} parent=1 // pred_fallthru
      _
    // Predicated region
    $region14: #{tpu_custom_call.1} parent=1 // pred_check
      _
    $region15: #{tpu_custom_call.1} parent=1 // pred_check_branch
      %49 = sbr.rel (0) target = $region17
    $region16: #{tpu_custom_call.1} parent=1 // pred_region
      %s51 = ssub.s32 3072, 3072
      %52 = vsyncadd [#allocation11], %s51
      %s53 = sshll.u32 [#allocation10], 4
      %s54 = int_to_ptr.vmem [resolvable:$true] %s53
      %59 = dma.hbm_to_vmem [thread:$0]  %s3, 3072, %s54, [#allocation11], 192, 192, 12
    $region17: #{tpu_custom_call.1} parent=1 // pred_fallthru
      _
    // Predicated region
    $region18: #{tpu_custom_call.1} parent=1 // pred_check
      _
    $region19: #{tpu_custom_call.1} parent=1 // pred_check_branch
      %61 = sbr.rel (0) target = $region21
    $region20: #{tpu_custom_call.1} parent=1 // pred_region
      %s63 = ssub.s32 48, 48
      %64 = vsyncadd [#allocation11], %s63
      %s66 = sshll.u32 [#allocation12], 4
      %s67 = int_to_ptr.vmem [resolvable:$true] %s66
      %69 = dma.hbm_to_vmem [thread:$0]  %s4, 48, %s67, [#allocation11]
    $region21: #{tpu_custom_call.1} parent=1 // pred_fallthru
      _
    // Predicated region
    $region22: #{tpu_custom_call.1} parent=1 // pred_check
      _
    $region23: #{tpu_custom_call.1} parent=1 // pred_check_branch
      %71 = sbr.rel (0) target = $region25
    $region24: #{tpu_custom_call.1} parent=1 // pred_region
      %72 = dma.done [#allocation5], 512
    $region25: #{tpu_custom_call.1} parent=1 // pred_fallthru
      _
    // Predicated region
    $region26: #{tpu_custom_call.1} parent=1 // pred_check
      _
    $region27: #{tpu_custom_call.1} parent=1 // pred_check_branch
      %74 = sbr.rel (0) target = $region29
    $region28: #{tpu_custom_call.1} parent=1 // pred_region
      %75 = dma.done [#allocation8], 3072
    $region29: #{tpu_custom_call.1} parent=1 // pred_fallthru
      _
    // Predicated region
    $region30: #{tpu_custom_call.1} parent=1 // pred_check
      _
    $region31: #{tpu_custom_call.1} parent=1 // pred_check_branch
      %77 = sbr.rel (0) target = $region33
    $region32: #{tpu_custom_call.1} parent=1 // pred_region
      %78 = dma.done [#allocation8], 48
    $region33: #{tpu_custom_call.1} parent=1 // pred_fallthru
      _
    // Predicated region
    $region34: #{tpu_custom_call.1} parent=1 // pred_check
      _
    $region35: #{tpu_custom_call.1} parent=1 // pred_check_branch
      %80 = sbr.rel (0) target = $region37
    $region36: #{tpu_custom_call.1} parent=1 // pred_region
      %81 = dma.done [#allocation11], 3072
    $region37: #{tpu_custom_call.1} parent=1 // pred_fallthru
      _
    // Predicated region
    $region38: #{tpu_custom_call.1} parent=1 // pred_check
      _
    $region39: #{tpu_custom_call.1} parent=1 // pred_check_branch
      %83 = sbr.rel (0) target = $region41
    $region40: #{tpu_custom_call.1} parent=1 // pred_region
      %84 = dma.done [#allocation11], 48
    $region41: #{tpu_custom_call.1} parent=1 // pred_fallthru
      _
    %p86 = scmp.eq.s32.totalorder 0, 0
    // Predicated region
    $region42: #{tpu_custom_call.1} parent=1 // pred_check
      %p87 = pneg %p86
    $region43: #{tpu_custom_call.1} parent=1 // pred_check_branch
      %89 = sbr.rel (%p87) target = $region45
    $region44: #{tpu_custom_call.1} parent=1 // pred_region
      %90 = vst [vmem:[#allocation2] sm:$0xff] 0.0
    $region45: #{tpu_custom_call.1} parent=1 // pred_fallthru
      _
    %v91 = vld [vmem:[#allocation4] sm:$0xf]
    %v92 = vld [vmem:[#allocation4 + $0x4] sm:$0xf]
    %v93 = vld [vmem:[#allocation4 + $0x8] sm:$0xf]
    %v94 = vld [vmem:[#allocation4 + $0xc] sm:$0xf]
    %v95 = vld [vmem:[#allocation4 + $0x10] sm:$0xf]
    %v96 = vld [vmem:[#allocation4 + $0x14] sm:$0xf]
    %v97 = vld [vmem:[#allocation4 + $0x18] sm:$0xf]
    %v98 = vld [vmem:[#allocation4 + $0x1c] sm:$0xf]
    %v99 = vld [vmem:[#allocation7] sm:$0xff]
    %v100 = vld [vmem:[#allocation7 + $0x8] sm:$0xf]
    %v101 = vld [vmem:[#allocation7 + $0xc] sm:$0xff]
    %v102 = vld [vmem:[#allocation7 + $0x14] sm:$0xf]
    %v103 = vld [vmem:[#allocation7 + $0x18] sm:$0xff]
    %v104 = vld [vmem:[#allocation7 + $0x20] sm:$0xf]
    %v105 = vld [vmem:[#allocation7 + $0x24] sm:$0xff]
    %v106 = vld [vmem:[#allocation7 + $0x2c] sm:$0xf]
    %v107 = vld [vmem:[#allocation7 + $0x30] sm:$0xff]
    %v108 = vld [vmem:[#allocation7 + $0x38] sm:$0xf]
    %v109 = vld [vmem:[#allocation7 + $0x3c] sm:$0xff]
    %v110 = vld [vmem:[#allocation7 + $0x44] sm:$0xf]
    %v111 = vld [vmem:[#allocation7 + $0x48] sm:$0xff]
    %v112 = vld [vmem:[#allocation7 + $0x50] sm:$0xf]
    %v113 = vld [vmem:[#allocation7 + $0x54] sm:$0xff]
    %v114 = vld [vmem:[#allocation7 + $0x5c] sm:$0xf]
    %v115 = vld [vmem:[#allocation7 + $0x60] sm:$0xff]
    %v116 = vld [vmem:[#allocation7 + $0x68] sm:$0xf]
    %v117 = vld [vmem:[#allocation7 + $0x6c] sm:$0xff]
    %v118 = vld [vmem:[#allocation7 + $0x74] sm:$0xf]
    %v119 = vld [vmem:[#allocation7 + $0x78] sm:$0xff]
    %v120 = vld [vmem:[#allocation7 + $0x80] sm:$0xf]
    %v121 = vld [vmem:[#allocation7 + $0x84] sm:$0xff]
    %v122 = vld [vmem:[#allocation7 + $0x8c] sm:$0xf]
    %v123 = vld [vmem:[#allocation7 + $0x90] sm:$0xff]
    %v124 = vld [vmem:[#allocation7 + $0x98] sm:$0xf]
    %v125 = vld [vmem:[#allocation7 + $0x9c] sm:$0xff]
    %v126 = vld [vmem:[#allocation7 + $0xa4] sm:$0xf]
    %v127 = vld [vmem:[#allocation7 + $0xa8] sm:$0xff]
    %v128 = vld [vmem:[#allocation7 + $0xb0] sm:$0xf]
    %v129 = vld [vmem:[#allocation7 + $0xb4] sm:$0xff]
    %v130 = vld [vmem:[#allocation7 + $0xbc] sm:$0xf]
    %v131 = vld [vmem:[#allocation9] sm:$0x7]
    %v133 = vlaneseq
    %v134 = vshrl.u32 %v133, 7
    %v135 = vsub.s32 0, %v134
    %v136 = vrot.slane %v131, %v135
    %v137 = vlaneseq
    %v138 = vshrl.u32 %v137, 7
    %v139 = vsub.s32 1, %v138
    %v140 = vrot.slane %v131, %v139
    %v141 = vlaneseq
    %v142 = vshrl.u32 %v141, 7
    %v143 = vsub.s32 2, %v142
    %v144 = vrot.slane %v131, %v143
    %v156 = vunpack.c.l.b16 %v91
    %v157 = vunpack.c.l.b16 %v92
    %v158 = vunpack.c.l.b16 %v93
    %v159 = vunpack.c.l.b16 %v94
    %v160 = vunpack.c.l.b16 %v95
    %v161 = vunpack.c.l.b16 %v96
    %v162 = vunpack.c.l.b16 %v97
    %v163 = vunpack.c.l.b16 %v98
    %v164 = vpack.c.b16 %v157, %v156
    %v165 = vpack.c.b16 %v159, %v158
    %v166 = vpack.c.b16 %v161, %v160
    %v167 = vpack.c.b16 %v163, %v162
    %v204 = vunpack.c.l.b16 %v99
    %v205 = vunpack.c.h.b16 %v99
    %v206 = vunpack.c.l.b16 %v100
    %v207 = vunpack.c.l.b16 %v101
    %v208 = vunpack.c.h.b16 %v101
    %v209 = vunpack.c.l.b16 %v102
    %v210 = vunpack.c.l.b16 %v103
    %v211 = vunpack.c.h.b16 %v103
    %v212 = vunpack.c.l.b16 %v104
    %v213 = vunpack.c.l.b16 %v105
    %v214 = vunpack.c.h.b16 %v105
    %v215 = vunpack.c.l.b16 %v106
    %v216 = vunpack.c.l.b16 %v107
    %v217 = vunpack.c.h.b16 %v107
    %v218 = vunpack.c.l.b16 %v108
    %v219 = vunpack.c.l.b16 %v109
    %v220 = vunpack.c.h.b16 %v109
    %v221 = vunpack.c.l.b16 %v110
    %v222 = vunpack.c.l.b16 %v111
    %v223 = vunpack.c.h.b16 %v111
    %v224 = vunpack.c.l.b16 %v112
    %v225 = vunpack.c.l.b16 %v113
    %v226 = vunpack.c.h.b16 %v113
    %v227 = vunpack.c.l.b16 %v114
    %v228 = vunpack.c.l.b16 %v115
    %v229 = vunpack.c.h.b16 %v115
    %v230 = vunpack.c.l.b16 %v116
    %v231 = vunpack.c.l.b16 %v117
    %v232 = vunpack.c.h.b16 %v117
    %v233 = vunpack.c.l.b16 %v118
    %v234 = vunpack.c.l.b16 %v119
    %v235 = vunpack.c.h.b16 %v119
    %v236 = vunpack.c.l.b16 %v120
    %v237 = vunpack.c.l.b16 %v121
    %v238 = vunpack.c.h.b16 %v121
    %v239 = vunpack.c.l.b16 %v122
    %v240 = vunpack.c.l.b16 %v123
    %v241 = vunpack.c.h.b16 %v123
    %v242 = vunpack.c.l.b16 %v124
    %v243 = vunpack.c.l.b16 %v125
    %v244 = vunpack.c.h.b16 %v125
    %v245 = vunpack.c.l.b16 %v126
    %v246 = vunpack.c.l.b16 %v127
    %v247 = vunpack.c.h.b16 %v127
    %v248 = vunpack.c.l.b16 %v128
    %v249 = vunpack.c.l.b16 %v129
    %v250 = vunpack.c.h.b16 %v129
    %v251 = vunpack.c.l.b16 %v130
    %v252 = vpack.c.b16 %v207, %v204
    %v253 = vpack.c.b16 %v208, %v205
    %v254 = vpack.c.b16 %v209, %v206
    %v255 = vpack.c.b16 %v213, %v210
    %v256 = vpack.c.b16 %v214, %v211
    %v257 = vpack.c.b16 %v215, %v212
    %v258 = vpack.c.b16 %v219, %v216
    %v259 = vpack.c.b16 %v220, %v217
    %v260 = vpack.c.b16 %v221, %v218
    %v261 = vpack.c.b16 %v225, %v222
    %v262 = vpack.c.b16 %v226, %v223
    %v263 = vpack.c.b16 %v227, %v224
    %v264 = vpack.c.b16 %v231, %v228
    %v265 = vpack.c.b16 %v232, %v229
    %v266 = vpack.c.b16 %v233, %v230
    %v267 = vpack.c.b16 %v237, %v234
    %v268 = vpack.c.b16 %v238, %v235
    %v269 = vpack.c.b16 %v239, %v236
    %v270 = vpack.c.b16 %v243, %v240
    %v271 = vpack.c.b16 %v244, %v241
    %v272 = vpack.c.b16 %v245, %v242
    %v273 = vpack.c.b16 %v249, %v246
    %v274 = vpack.c.b16 %v250, %v247
    %v275 = vpack.c.b16 %v251, %v248
    %300 = vmatprep.subr.bf16.mxu0 %v253
    %301 = vmatpush1.bf16.msra.mxu0 %v252
    %302 = vmatprep.subr.bf16.mxu0 %v256
    %303 = vmatpush1.bf16.msra.mxu0 %v255
    %304 = vmatprep.subr.bf16.mxu0 %v259
    %305 = vmatpush1.bf16.msra.mxu0 %v258
    %306 = vmatprep.subr.bf16.mxu0 %v262
    %307 = vmatpush1.bf16.msra.mxu0 %v261
    %308 = vmatprep.subr.bf16.mxu0 %v265
    %309 = vmatpush1.bf16.msra.mxu0 %v264
    %310 = vmatprep.subr.bf16.mxu0 %v268
    %311 = vmatpush1.bf16.msra.mxu0 %v267
    %312 = vmatprep.subr.bf16.mxu0 %v271
    %313 = vmatpush1.bf16.msra.mxu0 %v270
    %314 = vmatprep.subr.bf16.mxu0 %v274
    %315 = vmatpush1.bf16.msra.mxu0 %v273
    %316 = vmatprep.subr.bf16.mxu0 0
    %317 = vmatpush1.bf16.msra.mxu0 0
    %318 = vmatprep.subr.bf16.mxu0 0
    %319 = vmatpush1.bf16.msra.mxu0 0
    %320 = vmatprep.subr.bf16.mxu0 0
    %321 = vmatpush1.bf16.msra.mxu0 0
    %322 = vmatprep.subr.bf16.mxu0 0
    %323 = vmatpush1.bf16.msra.mxu0 0
    %324 = vmatprep.subr.bf16.mxu0 0
    %325 = vmatpush1.bf16.msra.mxu0 0
    %326 = vmatprep.subr.bf16.mxu0 0
    %327 = vmatpush1.bf16.msra.mxu0 0
    %328 = vmatprep.subr.bf16.mxu0 0
    %329 = vmatpush1.bf16.msra.mxu0 0
    %330 = vmatprep.subr.bf16.mxu0 0
    %331 = vmatpush1.bf16.msra.mxu0 0
    %332 = vmatprep.mubr.bf16.mxu0 0
    %333 = vmatmul.mubr.bf16.gmra.mrb[0].mxu0 %v164
    %v334 = vpop.f32.mrb[0].mxu0
    %v335 = vadd.f32 %v136, %v334
    %v336 = vpop.f32.mrb[0].mxu0
    %v337 = vadd.f32 %v140, %v336
    %v338 = vpop.f32.mrb[0].mxu0
    %v339 = vadd.f32 %v136, %v338
    %v340 = vpop.f32.mrb[0].mxu0
    %v341 = vadd.f32 %v140, %v340
    %342 = vmatprep.mubr.bf16.mxu0 0
    %343 = vmatmul.mubr.bf16.gmra.mrb[0].mxu0 %v165
    %v344 = vpop.f32.mrb[0].mxu0
    %v345 = vadd.f32 %v136, %v344
    %v346 = vpop.f32.mrb[0].mxu0
    %v347 = vadd.f32 %v140, %v346
    %v348 = vpop.f32.mrb[0].mxu0
    %v349 = vadd.f32 %v136, %v348
    %v350 = vpop.f32.mrb[0].mxu0
    %v351 = vadd.f32 %v140, %v350
    %352 = vmatprep.mubr.bf16.mxu0 0
    %353 = vmatmul.mubr.bf16.gmra.mrb[0].mxu0 %v166
    %v354 = vpop.f32.mrb[0].mxu0
    %v355 = vadd.f32 %v136, %v354
    %v356 = vpop.f32.mrb[0].mxu0
    %v357 = vadd.f32 %v140, %v356
    %v358 = vpop.f32.mrb[0].mxu0
    %v359 = vadd.f32 %v136, %v358
    %v360 = vpop.f32.mrb[0].mxu0
    %v361 = vadd.f32 %v140, %v360
    %362 = vmatprep.mubr.bf16.mxu0 0
    %363 = vmatmul.mubr.bf16.gmra.mrb[0].mxu0 %v167
    %v364 = vpop.f32.mrb[0].mxu0
    %v365 = vadd.f32 %v136, %v364
    %v366 = vpop.f32.mrb[0].mxu0
    %v367 = vadd.f32 %v140, %v366
    %v368 = vpop.f32.mrb[0].mxu0
    %v369 = vadd.f32 %v136, %v368
    %v370 = vpop.f32.mrb[0].mxu0
    %v371 = vadd.f32 %v140, %v370
    %372 = vdwg.mxu0
    %373 = vmatprep.subr.bf16.mxu0 0
    %374 = vmatpush1.bf16.msra.mxu0 %v254
    %375 = vmatprep.subr.bf16.mxu0 0
    %376 = vmatpush1.bf16.msra.mxu0 %v257
    %377 = vmatprep.subr.bf16.mxu0 0
    %378 = vmatpush1.bf16.msra.mxu0 %v260
    %379 = vmatprep.subr.bf16.mxu0 0
    %380 = vmatpush1.bf16.msra.mxu0 %v263
    %381 = vmatprep.subr.bf16.mxu0 0
    %382 = vmatpush1.bf16.msra.mxu0 %v266
    %383 = vmatprep.subr.bf16.mxu0 0
    %384 = vmatpush1.bf16.msra.mxu0 %v269
    %385 = vmatprep.subr.bf16.mxu0 0
    %386 = vmatpush1.bf16.msra.mxu0 %v272
    %387 = vmatprep.subr.bf16.mxu0 0
    %388 = vmatpush1.bf16.msra.mxu0 %v275
    %389 = vmatprep.subr.bf16.mxu0 0
    %390 = vmatpush1.bf16.msra.mxu0 0
    %391 = vmatprep.subr.bf16.mxu0 0
    %392 = vmatpush1.bf16.msra.mxu0 0
    %393 = vmatprep.subr.bf16.mxu0 0
    %394 = vmatpush1.bf16.msra.mxu0 0
    %395 = vmatprep.subr.bf16.mxu0 0
    %396 = vmatpush1.bf16.msra.mxu0 0
    %397 = vmatprep.subr.bf16.mxu0 0
    %398 = vmatpush1.bf16.msra.mxu0 0
    %399 = vmatprep.subr.bf16.mxu0 0
    %400 = vmatpush1.bf16.msra.mxu0 0
    %401 = vmatprep.subr.bf16.mxu0 0
    %402 = vmatpush1.bf16.msra.mxu0 0
    %403 = vmatprep.subr.bf16.mxu0 0
    %404 = vmatpush1.bf16.msra.mxu0 0
    %405 = vmatprep.mubr.bf16.mxu0 0
    %406 = vmatmul.mubr.bf16.gmra.mrb[0].mxu0 %v164
    %v407 = vpop.f32.mrb[0].mxu0
    %v408 = vadd.f32 %v144, %v407
    %v409 = vpop.f32.mrb[0].mxu0
    %v410 = vpop.f32.mrb[0].mxu0
    %v411 = vadd.f32 %v144, %v410
    %v412 = vpop.f32.mrb[0].mxu0
    %413 = vmatprep.mubr.bf16.mxu0 0
    %414 = vmatmul.mubr.bf16.gmra.mrb[0].mxu0 %v165
    %v415 = vpop.f32.mrb[0].mxu0
    %v416 = vadd.f32 %v144, %v415
    %v417 = vpop.f32.mrb[0].mxu0
    %v418 = vpop.f32.mrb[0].mxu0
    %v419 = vadd.f32 %v144, %v418
    %v420 = vpop.f32.mrb[0].mxu0
    %421 = vmatprep.mubr.bf16.mxu0 0
    %422 = vmatmul.mubr.bf16.gmra.mrb[0].mxu0 %v166
    %v423 = vpop.f32.mrb[0].mxu0
    %v424 = vadd.f32 %v144, %v423
    %v425 = vpop.f32.mrb[0].mxu0
    %v426 = vpop.f32.mrb[0].mxu0
    %v427 = vadd.f32 %v144, %v426
    %v428 = vpop.f32.mrb[0].mxu0
    %429 = vmatprep.mubr.bf16.mxu0 0
    %430 = vmatmul.mubr.bf16.gmra.mrb[0].mxu0 %v167
    %v431 = vpop.f32.mrb[0].mxu0
    %v432 = vadd.f32 %v144, %v431
    %v433 = vpop.f32.mrb[0].mxu0
    %v434 = vpop.f32.mrb[0].mxu0
    %v435 = vadd.f32 %v144, %v434
    %v436 = vpop.f32.mrb[0].mxu0
    %437 = vdwg.mxu0
    %438 = vst [vmem:[#allocation3] sm:$0xff] %v335
    %439 = vst [vmem:[#allocation3 + $0x8] sm:$0xff] %v337
    %440 = vst [vmem:[#allocation3 + $0x10] sm:$0xff] %v408
    %441 = vst [vmem:[#allocation3 + $0x18] sm:$0xff] %v339
    %442 = vst [vmem:[#allocation3 + $0x20] sm:$0xff] %v341
    %443 = vst [vmem:[#allocation3 + $0x28] sm:$0xff] %v411
    %444 = vst [vmem:[#allocation3 + $0x30] sm:$0xff] %v345
    %445 = vst [vmem:[#allocation3 + $0x38] sm:$0xff] %v347
    %446 = vst [vmem:[#allocation3 + $0x40] sm:$0xff] %v416
    %447 = vst [vmem:[#allocation3 + $0x48] sm:$0xff] %v349
    %448 = vst [vmem:[#allocation3 + $0x50] sm:$0xff] %v351
    %449 = vst [vmem:[#allocation3 + $0x58] sm:$0xff] %v419
    %450 = vst [vmem:[#allocation3 + $0x60] sm:$0xff] %v355
    %451 = vst [vmem:[#allocation3 + $0x68] sm:$0xff] %v357
    %452 = vst [vmem:[#allocation3 + $0x70] sm:$0xff] %v424
    %453 = vst [vmem:[#allocation3 + $0x78] sm:$0xff] %v359
    %454 = vst [vmem:[#allocation3 + $0x80] sm:$0xff] %v361
    %455 = vst [vmem:[#allocation3 + $0x88] sm:$0xff] %v427
    %456 = vst [vmem:[#allocation3 + $0x90] sm:$0xff] %v365
    %457 = vst [vmem:[#allocation3 + $0x98] sm:$0xff] %v367
    %458 = vst [vmem:[#allocation3 + $0xa0] sm:$0xff] %v432
    %459 = vst [vmem:[#allocation3 + $0xa8] sm:$0xff] %v369
    %460 = vst [vmem:[#allocation3 + $0xb0] sm:$0xff] %v371
    %461 = vst [vmem:[#allocation3 + $0xb8] sm:$0xff] %v435
    %v462 = vld [vmem:[#allocation2] sm:$0xff]
    %v463 = vld [vmem:[#allocation3] sm:$0xff]
    %v464 = vld [vmem:[#allocation3 + $0x8] sm:$0xff]
    %v465 = vld [vmem:[#allocation3 + $0x10] sm:$0xff]
    %v466 = vpack.c.bf16 %v462, %v462
    %v467 = vld [vmem:[#allocation10] sm:$0xff]
    %v468 = vld [vmem:[#allocation10 + $0x8] sm:$0xf]
    %v469 = vld [vmem:[#allocation10 + $0xc] sm:$0xff]
    %v470 = vld [vmem:[#allocation10 + $0x14] sm:$0xf]
    %v471 = vld [vmem:[#allocation10 + $0x18] sm:$0xff]
    %v472 = vld [vmem:[#allocation10 + $0x20] sm:$0xf]
    %v473 = vld [vmem:[#allocation10 + $0x24] sm:$0xff]
    %v474 = vld [vmem:[#allocation10 + $0x2c] sm:$0xf]
    %v475 = vld [vmem:[#allocation10 + $0x30] sm:$0xff]
    %v476 = vld [vmem:[#allocation10 + $0x38] sm:$0xf]
    %v477 = vld [vmem:[#allocation10 + $0x3c] sm:$0xff]
    %v478 = vld [vmem:[#allocation10 + $0x44] sm:$0xf]
    %v479 = vld [vmem:[#allocation10 + $0x48] sm:$0xff]
    %v480 = vld [vmem:[#allocation10 + $0x50] sm:$0xf]
    %v481 = vld [vmem:[#allocation10 + $0x54] sm:$0xff]
    %v482 = vld [vmem:[#allocation10 + $0x5c] sm:$0xf]
    %v483 = vld [vmem:[#allocation10 + $0x60] sm:$0xff]
    %v484 = vld [vmem:[#allocation10 + $0x68] sm:$0xf]
    %v485 = vld [vmem:[#allocation10 + $0x6c] sm:$0xff]
    %v486 = vld [vmem:[#allocation10 + $0x74] sm:$0xf]
    %v487 = vld [vmem:[#allocation10 + $0x78] sm:$0xff]
    %v488 = vld [vmem:[#allocation10 + $0x80] sm:$0xf]
    %v489 = vld [vmem:[#allocation10 + $0x84] sm:$0xff]
    %v490 = vld [vmem:[#allocation10 + $0x8c] sm:$0xf]
    %v491 = vld [vmem:[#allocation10 + $0x90] sm:$0xff]
    %v492 = vld [vmem:[#allocation10 + $0x98] sm:$0xf]
    %v493 = vld [vmem:[#allocation10 + $0x9c] sm:$0xff]
    %v494 = vld [vmem:[#allocation10 + $0xa4] sm:$0xf]
    %v495 = vld [vmem:[#allocation10 + $0xa8] sm:$0xff]
    %v496 = vld [vmem:[#allocation10 + $0xb0] sm:$0xf]
    %v497 = vld [vmem:[#allocation10 + $0xb4] sm:$0xff]
    %v498 = vld [vmem:[#allocation10 + $0xbc] sm:$0xf]
    %v499 = vld [vmem:[#allocation12] sm:$0x7]
    %v501 = vlaneseq
    %v502 = vshrl.u32 %v501, 7
    %v503 = vsub.s32 0, %v502
    %v504 = vrot.slane %v499, %v503
    %v505 = vlaneseq
    %v506 = vshrl.u32 %v505, 7
    %v507 = vsub.s32 1, %v506
    %v508 = vrot.slane %v499, %v507
    %v509 = vlaneseq
    %v510 = vshrl.u32 %v509, 7
    %v511 = vsub.s32 2, %v510
    %v512 = vrot.slane %v499, %v511
    %v548 = vunpack.c.l.b16 %v467
    %v549 = vunpack.c.h.b16 %v467
    %v550 = vunpack.c.l.b16 %v468
    %v551 = vunpack.c.l.b16 %v469
    %v552 = vunpack.c.h.b16 %v469
    %v553 = vunpack.c.l.b16 %v470
    %v554 = vunpack.c.l.b16 %v471
    %v555 = vunpack.c.h.b16 %v471
    %v556 = vunpack.c.l.b16 %v472
    %v557 = vunpack.c.l.b16 %v473
    %v558 = vunpack.c.h.b16 %v473
    %v559 = vunpack.c.l.b16 %v474
    %v560 = vunpack.c.l.b16 %v475
    %v561 = vunpack.c.h.b16 %v475
    %v562 = vunpack.c.l.b16 %v476
    %v563 = vunpack.c.l.b16 %v477
    %v564 = vunpack.c.h.b16 %v477
    %v565 = vunpack.c.l.b16 %v478
    %v566 = vunpack.c.l.b16 %v479
    %v567 = vunpack.c.h.b16 %v479
    %v568 = vunpack.c.l.b16 %v480
    %v569 = vunpack.c.l.b16 %v481
    %v570 = vunpack.c.h.b16 %v481
    %v571 = vunpack.c.l.b16 %v482
    %v572 = vunpack.c.l.b16 %v483
    %v573 = vunpack.c.h.b16 %v483
    %v574 = vunpack.c.l.b16 %v484
    %v575 = vunpack.c.l.b16 %v485
    %v576 = vunpack.c.h.b16 %v485
    %v577 = vunpack.c.l.b16 %v486
    %v578 = vunpack.c.l.b16 %v487
    %v579 = vunpack.c.h.b16 %v487
    %v580 = vunpack.c.l.b16 %v488
    %v581 = vunpack.c.l.b16 %v489
    %v582 = vunpack.c.h.b16 %v489
    %v583 = vunpack.c.l.b16 %v490
    %v584 = vunpack.c.l.b16 %v491
    %v585 = vunpack.c.h.b16 %v491
    %v586 = vunpack.c.l.b16 %v492
    %v587 = vunpack.c.l.b16 %v493
    %v588 = vunpack.c.h.b16 %v493
    %v589 = vunpack.c.l.b16 %v494
    %v590 = vunpack.c.l.b16 %v495
    %v591 = vunpack.c.h.b16 %v495
    %v592 = vunpack.c.l.b16 %v496
    %v593 = vunpack.c.l.b16 %v497
    %v594 = vunpack.c.h.b16 %v497
    %v595 = vunpack.c.l.b16 %v498
    %v596 = vpack.c.b16 %v551, %v548
    %v597 = vpack.c.b16 %v552, %v549
    %v598 = vpack.c.b16 %v553, %v550
    %v599 = vpack.c.b16 %v557, %v554
    %v600 = vpack.c.b16 %v558, %v555
    %v601 = vpack.c.b16 %v559, %v556
    %v602 = vpack.c.b16 %v563, %v560
    %v603 = vpack.c.b16 %v564, %v561
    %v604 = vpack.c.b16 %v565, %v562
    %v605 = vpack.c.b16 %v569, %v566
    %v606 = vpack.c.b16 %v570, %v567
    %v607 = vpack.c.b16 %v571, %v568
    %v608 = vpack.c.b16 %v575, %v572
    %v609 = vpack.c.b16 %v576, %v573
    %v610 = vpack.c.b16 %v577, %v574
    %v611 = vpack.c.b16 %v581, %v578
    %v612 = vpack.c.b16 %v582, %v579
    %v613 = vpack.c.b16 %v583, %v580
    %v614 = vpack.c.b16 %v587, %v584
    %v615 = vpack.c.b16 %v588, %v585
    %v616 = vpack.c.b16 %v589, %v586
    %v617 = vpack.c.b16 %v593, %v590
    %v618 = vpack.c.b16 %v594, %v591
    %v619 = vpack.c.b16 %v595, %v592
    %644 = vmatprep.subr.bf16.mxu0 %v597
    %645 = vmatpush1.bf16.msra.mxu0 %v596
    %646 = vmatprep.subr.bf16.mxu0 %v600
    %647 = vmatpush1.bf16.msra.mxu0 %v599
    %648 = vmatprep.subr.bf16.mxu0 %v603
    %649 = vmatpush1.bf16.msra.mxu0 %v602
    %650 = vmatprep.subr.bf16.mxu0 %v606
    %651 = vmatpush1.bf16.msra.mxu0 %v605
    %652 = vmatprep.subr.bf16.mxu0 %v609
    %653 = vmatpush1.bf16.msra.mxu0 %v608
    %654 = vmatprep.subr.bf16.mxu0 %v612
    %655 = vmatpush1.bf16.msra.mxu0 %v611
    %656 = vmatprep.subr.bf16.mxu0 %v615
    %657 = vmatpush1.bf16.msra.mxu0 %v614
    %658 = vmatprep.subr.bf16.mxu0 %v618
    %659 = vmatpush1.bf16.msra.mxu0 %v617
    %660 = vmatprep.subr.bf16.mxu0 0
    %661 = vmatpush1.bf16.msra.mxu0 0
    %662 = vmatprep.subr.bf16.mxu0 0
    %663 = vmatpush1.bf16.msra.mxu0 0
    %664 = vmatprep.subr.bf16.mxu0 0
    %665 = vmatpush1.bf16.msra.mxu0 0
    %666 = vmatprep.subr.bf16.mxu0 0
    %667 = vmatpush1.bf16.msra.mxu0 0
    %668 = vmatprep.subr.bf16.mxu0 0
    %669 = vmatpush1.bf16.msra.mxu0 0
    %670 = vmatprep.subr.bf16.mxu0 0
    %671 = vmatpush1.bf16.msra.mxu0 0
    %672 = vmatprep.subr.bf16.mxu0 0
    %673 = vmatpush1.bf16.msra.mxu0 0
    %674 = vmatprep.subr.bf16.mxu0 0
    %675 = vmatpush1.bf16.msra.mxu0 0
    %676 = vmatprep.mubr.bf16.mxu0 0
    %677 = vmatmul.mubr.bf16.gmra.mrb[0].mxu0 %v466
    %v678 = vpop.f32.mrb[0].mxu0
    %v679 = vadd.f32 %v504, %v678
    %v680 = vpop.f32.mrb[0].mxu0
    %v681 = vadd.f32 %v508, %v680
    %v682 = vpop.f32.mrb[0].mxu0
    %v683 = vpop.f32.mrb[0].mxu0
    %684 = vdwg.mxu0
    %685 = vmatprep.subr.bf16.mxu0 0
    %686 = vmatpush1.bf16.msra.mxu0 %v598
    %687 = vmatprep.subr.bf16.mxu0 0
    %688 = vmatpush1.bf16.msra.mxu0 %v601
    %689 = vmatprep.subr.bf16.mxu0 0
    %690 = vmatpush1.bf16.msra.mxu0 %v604
    %691 = vmatprep.subr.bf16.mxu0 0
    %692 = vmatpush1.bf16.msra.mxu0 %v607
    %693 = vmatprep.subr.bf16.mxu0 0
    %694 = vmatpush1.bf16.msra.mxu0 %v610
    %695 = vmatprep.subr.bf16.mxu0 0
    %696 = vmatpush1.bf16.msra.mxu0 %v613
    %697 = vmatprep.subr.bf16.mxu0 0
    %698 = vmatpush1.bf16.msra.mxu0 %v616
    %699 = vmatprep.subr.bf16.mxu0 0
    %700 = vmatpush1.bf16.msra.mxu0 %v619
    %701 = vmatprep.subr.bf16.mxu0 0
    %702 = vmatpush1.bf16.msra.mxu0 0
    %703 = vmatprep.subr.bf16.mxu0 0
    %704 = vmatpush1.bf16.msra.mxu0 0
    %705 = vmatprep.subr.bf16.mxu0 0
    %706 = vmatpush1.bf16.msra.mxu0 0
    %707 = vmatprep.subr.bf16.mxu0 0
    %708 = vmatpush1.bf16.msra.mxu0 0
    %709 = vmatprep.subr.bf16.mxu0 0
    %710 = vmatpush1.bf16.msra.mxu0 0
    %711 = vmatprep.subr.bf16.mxu0 0
    %712 = vmatpush1.bf16.msra.mxu0 0
    %713 = vmatprep.subr.bf16.mxu0 0
    %714 = vmatpush1.bf16.msra.mxu0 0
    %715 = vmatprep.subr.bf16.mxu0 0
    %716 = vmatpush1.bf16.msra.mxu0 0
    %717 = vmatprep.mubr.bf16.mxu0 0
    %718 = vmatmul.mubr.bf16.gmra.mrb[0].mxu0 %v466
    %v719 = vpop.f32.mrb[0].mxu0
    %v720 = vadd.f32 %v512, %v719
    %v721 = vpop.f32.mrb[0].mxu0
    %v722 = vpop.f32.mrb[0].mxu0
    %v723 = vpop.f32.mrb[0].mxu0
    %724 = vdwg.mxu0
    %v725 = vadd.f32 %v463, %v679
    %v726 = vxor.u32 %v725, 2147483648
    %v727 = vmul.f32 %v726, 1.442695
    %v728 = vpow.pop %v727
    %v729 = vadd.f32 %v728, 1.0
    %v730 = vrcp.pop %v729
    %v731 = vmul.f32 1.0, %v730
    %v732 = vadd.f32 %v464, %v681
    %v733 = vxor.u32 %v732, 2147483648
    %v734 = vmul.f32 %v733, 1.442695
    %v735 = vpow.pop %v734
    %v736 = vadd.f32 %v735, 1.0
    %v737 = vrcp.pop %v736
    %v738 = vmul.f32 1.0, %v737
    %v739 = vmul.f32 %v731, %v720
    %v740 = vadd.f32 %v465, %v739
    %v741 = vtanh.pop %v740
    %v742 = vsub.f32 1.0, %v738
    %v743 = vmul.f32 %v742, %v741
    %v744 = vmul.f32 %v738, %v462
    %v745 = vadd.f32 %v743, %v744
    %746 = vst [vmem:[#allocation2] sm:$0xff] %v745
    %v747 = vpack.c.bf16 %v745, %v745
    %748 = vst [vmem:[#allocation13] sm:$0xf] %v747
    %v749 = vld [vmem:[#allocation2] sm:$0xff]
    %s750 = scalar_lea.vmem [#allocation3], 24
    %v751 = vld [vmem:[%s750] sm:$0xff]
    %v752 = vld [vmem:[%s750 + $0x8] sm:$0xff]
    %v753 = vld [vmem:[%s750 + $0x10] sm:$0xff]
    %v754 = vpack.c.bf16 %v749, %v749
    %v755 = vld [vmem:[#allocation10] sm:$0xff]
    %v756 = vld [vmem:[#allocation10 + $0x8] sm:$0xf]
    %v757 = vld [vmem:[#allocation10 + $0xc] sm:$0xff]
    %v758 = vld [vmem:[#allocation10 + $0x14] sm:$0xf]
    %v759 = vld [vmem:[#allocation10 + $0x18] sm:$0xff]
    %v760 = vld [vmem:[#allocation10 + $0x20] sm:$0xf]
    %v761 = vld [vmem:[#allocation10 + $0x24] sm:$0xff]
    %v762 = vld [vmem:[#allocation10 + $0x2c] sm:$0xf]
    %v763 = vld [vmem:[#allocation10 + $0x30] sm:$0xff]
    %v764 = vld [vmem:[#allocation10 + $0x38] sm:$0xf]
    %v765 = vld [vmem:[#allocation10 + $0x3c] sm:$0xff]
    %v766 = vld [vmem:[#allocation10 + $0x44] sm:$0xf]
    %v767 = vld [vmem:[#allocation10 + $0x48] sm:$0xff]
    %v768 = vld [vmem:[#allocation10 + $0x50] sm:$0xf]
    %v769 = vld [vmem:[#allocation10 + $0x54] sm:$0xff]
    %v770 = vld [vmem:[#allocation10 + $0x5c] sm:$0xf]
    %v771 = vld [vmem:[#allocation10 + $0x60] sm:$0xff]
    %v772 = vld [vmem:[#allocation10 + $0x68] sm:$0xf]
    %v773 = vld [vmem:[#allocation10 + $0x6c] sm:$0xff]
    %v774 = vld [vmem:[#allocation10 + $0x74] sm:$0xf]
    %v775 = vld [vmem:[#allocation10 + $0x78] sm:$0xff]
    %v776 = vld [vmem:[#allocation10 + $0x80] sm:$0xf]
    %v777 = vld [vmem:[#allocation10 + $0x84] sm:$0xff]
    %v778 = vld [vmem:[#allocation10 + $0x8c] sm:$0xf]
    %v779 = vld [vmem:[#allocation10 + $0x90] sm:$0xff]
    %v780 = vld [vmem:[#allocation10 + $0x98] sm:$0xf]
    %v781 = vld [vmem:[#allocation10 + $0x9c] sm:$0xff]
    %v782 = vld [vmem:[#allocation10 + $0xa4] sm:$0xf]
    %v783 = vld [vmem:[#allocation10 + $0xa8] sm:$0xff]
    %v784 = vld [vmem:[#allocation10 + $0xb0] sm:$0xf]
    %v785 = vld [vmem:[#allocation10 + $0xb4] sm:$0xff]
    %v786 = vld [vmem:[#allocation10 + $0xbc] sm:$0xf]
    %v787 = vld [vmem:[#allocation12] sm:$0x7]
    %v789 = vlaneseq
    %v790 = vshrl.u32 %v789, 7
    %v791 = vsub.s32 0, %v790
    %v792 = vrot.slane %v787, %v791
    %v793 = vlaneseq
    %v794 = vshrl.u32 %v793, 7
    %v795 = vsub.s32 1, %v794
    %v796 = vrot.slane %v787, %v795
    %v797 = vlaneseq
    %v798 = vshrl.u32 %v797, 7
    %v799 = vsub.s32 2, %v798
    %v800 = vrot.slane %v787, %v799
    %v836 = vunpack.c.l.b16 %v755
    %v837 = vunpack.c.h.b16 %v755
    %v838 = vunpack.c.l.b16 %v756
    %v839 = vunpack.c.l.b16 %v757
    %v840 = vunpack.c.h.b16 %v757
    %v841 = vunpack.c.l.b16 %v758
    %v842 = vunpack.c.l.b16 %v759
    %v843 = vunpack.c.h.b16 %v759
    %v844 = vunpack.c.l.b16 %v760
    %v845 = vunpack.c.l.b16 %v761
    %v846 = vunpack.c.h.b16 %v761
    %v847 = vunpack.c.l.b16 %v762
    %v848 = vunpack.c.l.b16 %v763
    %v849 = vunpack.c.h.b16 %v763
    %v850 = vunpack.c.l.b16 %v764
    %v851 = vunpack.c.l.b16 %v765
    %v852 = vunpack.c.h.b16 %v765
    %v853 = vunpack.c.l.b16 %v766
    %v854 = vunpack.c.l.b16 %v767
    %v855 = vunpack.c.h.b16 %v767
    %v856 = vunpack.c.l.b16 %v768
    %v857 = vunpack.c.l.b16 %v769
    %v858 = vunpack.c.h.b16 %v769
    %v859 = vunpack.c.l.b16 %v770
    %v860 = vunpack.c.l.b16 %v771
    %v861 = vunpack.c.h.b16 %v771
    %v862 = vunpack.c.l.b16 %v772
    %v863 = vunpack.c.l.b16 %v773
    %v864 = vunpack.c.h.b16 %v773
    %v865 = vunpack.c.l.b16 %v774
    %v866 = vunpack.c.l.b16 %v775
    %v867 = vunpack.c.h.b16 %v775
    %v868 = vunpack.c.l.b16 %v776
    %v869 = vunpack.c.l.b16 %v777
    %v870 = vunpack.c.h.b16 %v777
    %v871 = vunpack.c.l.b16 %v778
    %v872 = vunpack.c.l.b16 %v779
    %v873 = vunpack.c.h.b16 %v779
    %v874 = vunpack.c.l.b16 %v780
    %v875 = vunpack.c.l.b16 %v781
    %v876 = vunpack.c.h.b16 %v781
    %v877 = vunpack.c.l.b16 %v782
    %v878 = vunpack.c.l.b16 %v783
    %v879 = vunpack.c.h.b16 %v783
    %v880 = vunpack.c.l.b16 %v784
    %v881 = vunpack.c.l.b16 %v785
    %v882 = vunpack.c.h.b16 %v785
    %v883 = vunpack.c.l.b16 %v786
    %v884 = vpack.c.b16 %v839, %v836
    %v885 = vpack.c.b16 %v840, %v837
    %v886 = vpack.c.b16 %v841, %v838
    %v887 = vpack.c.b16 %v845, %v842
    %v888 = vpack.c.b16 %v846, %v843
    %v889 = vpack.c.b16 %v847, %v844
    %v890 = vpack.c.b16 %v851, %v848
    %v891 = vpack.c.b16 %v852, %v849
    %v892 = vpack.c.b16 %v853, %v850
    %v893 = vpack.c.b16 %v857, %v854
    %v894 = vpack.c.b16 %v858, %v855
    %v895 = vpack.c.b16 %v859, %v856
    %v896 = vpack.c.b16 %v863, %v860
    %v897 = vpack.c.b16 %v864, %v861
    %v898 = vpack.c.b16 %v865, %v862
    %v899 = vpack.c.b16 %v869, %v866
    %v900 = vpack.c.b16 %v870, %v867
    %v901 = vpack.c.b16 %v871, %v868
    %v902 = vpack.c.b16 %v875, %v872
    %v903 = vpack.c.b16 %v876, %v873
    %v904 = vpack.c.b16 %v877, %v874
    %v905 = vpack.c.b16 %v881, %v878
    %v906 = vpack.c.b16 %v882, %v879
    %v907 = vpack.c.b16 %v883, %v880
    %932 = vmatprep.subr.bf16.mxu0 %v885
    %933 = vmatpush1.bf16.msra.mxu0 %v884
    %934 = vmatprep.subr.bf16.mxu0 %v888
    %935 = vmatpush1.bf16.msra.mxu0 %v887
    %936 = vmatprep.subr.bf16.mxu0 %v891
    %937 = vmatpush1.bf16.msra.mxu0 %v890
    %938 = vmatprep.subr.bf16.mxu0 %v894
    %939 = vmatpush1.bf16.msra.mxu0 %v893
    %940 = vmatprep.subr.bf16.mxu0 %v897
    %941 = vmatpush1.bf16.msra.mxu0 %v896
    %942 = vmatprep.subr.bf16.mxu0 %v900
    %943 = vmatpush1.bf16.msra.mxu0 %v899
    %944 = vmatprep.subr.bf16.mxu0 %v903
    %945 = vmatpush1.bf16.msra.mxu0 %v902
    %946 = vmatprep.subr.bf16.mxu0 %v906
    %947 = vmatpush1.bf16.msra.mxu0 %v905
    %948 = vmatprep.subr.bf16.mxu0 0
    %949 = vmatpush1.bf16.msra.mxu0 0
    %950 = vmatprep.subr.bf16.mxu0 0
    %951 = vmatpush1.bf16.msra.mxu0 0
    %952 = vmatprep.subr.bf16.mxu0 0
    %953 = vmatpush1.bf16.msra.mxu0 0
    %954 = vmatprep.subr.bf16.mxu0 0
    %955 = vmatpush1.bf16.msra.mxu0 0
    %956 = vmatprep.subr.bf16.mxu0 0
    %957 = vmatpush1.bf16.msra.mxu0 0
    %958 = vmatprep.subr.bf16.mxu0 0
    %959 = vmatpush1.bf16.msra.mxu0 0
    %960 = vmatprep.subr.bf16.mxu0 0
    %961 = vmatpush1.bf16.msra.mxu0 0
    %962 = vmatprep.subr.bf16.mxu0 0
    %963 = vmatpush1.bf16.msra.mxu0 0
    %964 = vmatprep.mubr.bf16.mxu0 0
    %965 = vmatmul.mubr.bf16.gmra.mrb[0].mxu0 %v754
    %v966 = vpop.f32.mrb[0].mxu0
    %v967 = vadd.f32 %v792, %v966
    %v968 = vpop.f32.mrb[0].mxu0
    %v969 = vadd.f32 %v796, %v968
    %v970 = vpop.f32.mrb[0].mxu0
    %v971 = vpop.f32.mrb[0].mxu0
    %972 = vdwg.mxu0
    %973 = vmatprep.subr.bf16.mxu0 0
    %974 = vmatpush1.bf16.msra.mxu0 %v886
    %975 = vmatprep.subr.bf16.mxu0 0
    %976 = vmatpush1.bf16.msra.mxu0 %v889
    %977 = vmatprep.subr.bf16.mxu0 0
    %978 = vmatpush1.bf16.msra.mxu0 %v892
    %979 = vmatprep.subr.bf16.mxu0 0
    %980 = vmatpush1.bf16.msra.mxu0 %v895
    %981 = vmatprep.subr.bf16.mxu0 0
    %982 = vmatpush1.bf16.msra.mxu0 %v898
    %983 = vmatprep.subr.bf16.mxu0 0
    %984 = vmatpush1.bf16.msra.mxu0 %v901
    %985 = vmatprep.subr.bf16.mxu0 0
    %986 = vmatpush1.bf16.msra.mxu0 %v904
    %987 = vmatprep.subr.bf16.mxu0 0
    %988 = vmatpush1.bf16.msra.mxu0 %v907
    %989 = vmatprep.subr.bf16.mxu0 0
    %990 = vmatpush1.bf16.msra.mxu0 0
    %991 = vmatprep.subr.bf16.mxu0 0
    %992 = vmatpush1.bf16.msra.mxu0 0
    %993 = vmatprep.subr.bf16.mxu0 0
    %994 = vmatpush1.bf16.msra.mxu0 0
    %995 = vmatprep.subr.bf16.mxu0 0
    %996 = vmatpush1.bf16.msra.mxu0 0
    %997 = vmatprep.subr.bf16.mxu0 0
    %998 = vmatpush1.bf16.msra.mxu0 0
    %999 = vmatprep.subr.bf16.mxu0 0
    %1000 = vmatpush1.bf16.msra.mxu0 0
    %1001 = vmatprep.subr.bf16.mxu0 0
    %1002 = vmatpush1.bf16.msra.mxu0 0
    %1003 = vmatprep.subr.bf16.mxu0 0
    %1004 = vmatpush1.bf16.msra.mxu0 0
    %1005 = vmatprep.mubr.bf16.mxu0 0
    %1006 = vmatmul.mubr.bf16.gmra.mrb[0].mxu0 %v754
    %v1007 = vpop.f32.mrb[0].mxu0
    %v1008 = vadd.f32 %v800, %v1007
    %v1009 = vpop.f32.mrb[0].mxu0
    %v1010 = vpop.f32.mrb[0].mxu0
    %v1011 = vpop.f32.mrb[0].mxu0
    %1012 = vdwg.mxu0
    %v1013 = vadd.f32 %v751, %v967
    %v1014 = vxor.u32 %v1013, 2147483648
    %v1015 = vmul.f32 %v1014, 1.442695
    %v1016 = vpow.pop %v1015
    %v1017 = vadd.f32 %v1016, 1.0
    %v1018 = vrcp.pop %v1017
    %v1019 = vmul.f32 1.0, %v1018
    %v1020 = vadd.f32 %v752, %v969
    %v1021 = vxor.u32 %v1020, 2147483648
    %v1022 = vmul.f32 %v1021, 1.442695
    %v1023 = vpow.pop %v1022
    %v1024 = vadd.f32 %v1023, 1.0
    %v1025 = vrcp.pop %v1024
    %v1026 = vmul.f32 1.0, %v1025
    %v1027 = vmul.f32 %v1019, %v1008
    %v1028 = vadd.f32 %v753, %v1027
    %v1029 = vtanh.pop %v1028
    %v1030 = vsub.f32 1.0, %v1026
    %v1031 = vmul.f32 %v1030, %v1029
    %v1032 = vmul.f32 %v1026, %v749
    %v1033 = vadd.f32 %v1031, %v1032
    %1034 = vst [vmem:[#allocation2] sm:$0xff] %v1033
    %v1035 = vpack.c.bf16 %v1033, %v1033
    %s1036 = scalar_lea.vmem [#allocation13], 4
    %1037 = vst [vmem:[%s1036] sm:$0xf] %v1035
    %v1038 = vld [vmem:[#allocation2] sm:$0xff]
    %s1039 = scalar_lea.vmem [#allocation3], 48
    %v1040 = vld [vmem:[%s1039] sm:$0xff]
    %v1041 = vld [vmem:[%s1039 + $0x8] sm:$0xff]
    %v1042 = vld [vmem:[%s1039 + $0x10] sm:$0xff]
    %v1043 = vpack.c.bf16 %v1038, %v1038
    %v1044 = vld [vmem:[#allocation10] sm:$0xff]
    %v1045 = vld [vmem:[#allocation10 + $0x8] sm:$0xf]
    %v1046 = vld [vmem:[#allocation10 + $0xc] sm:$0xff]
    %v1047 = vld [vmem:[#allocation10 + $0x14] sm:$0xf]
    %v1048 = vld [vmem:[#allocation10 + $0x18] sm:$0xff]
    %v1049 = vld [vmem:[#allocation10 + $0x20] sm:$0xf]
    %v1050 = vld [vmem:[#allocation10 + $0x24] sm:$0xff]
    %v1051 = vld [vmem:[#allocation10 + $0x2c] sm:$0xf]
    %v1052 = vld [vmem:[#allocation10 + $0x30] sm:$0xff]
    %v1053 = vld [vmem:[#allocation10 + $0x38] sm:$0xf]
    %v1054 = vld [vmem:[#allocation10 + $0x3c] sm:$0xff]
    %v1055 = vld [vmem:[#allocation10 + $0x44] sm:$0xf]
    %v1056 = vld [vmem:[#allocation10 + $0x48] sm:$0xff]
    %v1057 = vld [vmem:[#allocation10 + $0x50] sm:$0xf]
    %v1058 = vld [vmem:[#allocation10 + $0x54] sm:$0xff]
    %v1059 = vld [vmem:[#allocation10 + $0x5c] sm:$0xf]
    %v1060 = vld [vmem:[#allocation10 + $0x60] sm:$0xff]
    %v1061 = vld [vmem:[#allocation10 + $0x68] sm:$0xf]
    %v1062 = vld [vmem:[#allocation10 + $0x6c] sm:$0xff]
    %v1063 = vld [vmem:[#allocation10 + $0x74] sm:$0xf]
    %v1064 = vld [vmem:[#allocation10 + $0x78] sm:$0xff]
    %v1065 = vld [vmem:[#allocation10 + $0x80] sm:$0xf]
    %v1066 = vld [vmem:[#allocation10 + $0x84] sm:$0xff]
    %v1067 = vld [vmem:[#allocation10 + $0x8c] sm:$0xf]
    %v1068 = vld [vmem:[#allocation10 + $0x90] sm:$0xff]
    %v1069 = vld [vmem:[#allocation10 + $0x98] sm:$0xf]
    %v1070 = vld [vmem:[#allocation10 + $0x9c] sm:$0xff]
    %v1071 = vld [vmem:[#allocation10 + $0xa4] sm:$0xf]
    %v1072 = vld [vmem:[#allocation10 + $0xa8] sm:$0xff]
    %v1073 = vld [vmem:[#allocation10 + $0xb0] sm:$0xf]
    %v1074 = vld [vmem:[#allocation10 + $0xb4] sm:$0xff]
    %v1075 = vld [vmem:[#allocation10 + $0xbc] sm:$0xf]
    %v1076 = vld [vmem:[#allocation12] sm:$0x7]
    %v1078 = vlaneseq
    %v1079 = vshrl.u32 %v1078, 7
    %v1080 = vsub.s32 0, %v1079
    %v1081 = vrot.slane %v1076, %v1080
    %v1082 = vlaneseq
    %v1083 = vshrl.u32 %v1082, 7
    %v1084 = vsub.s32 1, %v1083
    %v1085 = vrot.slane %v1076, %v1084
    %v1086 = vlaneseq
    %v1087 = vshrl.u32 %v1086, 7
    %v1088 = vsub.s32 2, %v1087
    %v1089 = vrot.slane %v1076, %v1088
    %v1125 = vunpack.c.l.b16 %v1044
    %v1126 = vunpack.c.h.b16 %v1044
    %v1127 = vunpack.c.l.b16 %v1045
    %v1128 = vunpack.c.l.b16 %v1046
    %v1129 = vunpack.c.h.b16 %v1046
    %v1130 = vunpack.c.l.b16 %v1047
    %v1131 = vunpack.c.l.b16 %v1048
    %v1132 = vunpack.c.h.b16 %v1048
    %v1133 = vunpack.c.l.b16 %v1049
    %v1134 = vunpack.c.l.b16 %v1050
    %v1135 = vunpack.c.h.b16 %v1050
    %v1136 = vunpack.c.l.b16 %v1051
    %v1137 = vunpack.c.l.b16 %v1052
    %v1138 = vunpack.c.h.b16 %v1052
    %v1139 = vunpack.c.l.b16 %v1053
    %v1140 = vunpack.c.l.b16 %v1054
    %v1141 = vunpack.c.h.b16 %v1054
    %v1142 = vunpack.c.l.b16 %v1055
    %v1143 = vunpack.c.l.b16 %v1056
    %v1144 = vunpack.c.h.b16 %v1056
    %v1145 = vunpack.c.l.b16 %v1057
    %v1146 = vunpack.c.l.b16 %v1058
    %v1147 = vunpack.c.h.b16 %v1058
    %v1148 = vunpack.c.l.b16 %v1059
    %v1149 = vunpack.c.l.b16 %v1060
    %v1150 = vunpack.c.h.b16 %v1060
    %v1151 = vunpack.c.l.b16 %v1061
    %v1152 = vunpack.c.l.b16 %v1062
    %v1153 = vunpack.c.h.b16 %v1062
    %v1154 = vunpack.c.l.b16 %v1063
    %v1155 = vunpack.c.l.b16 %v1064
    %v1156 = vunpack.c.h.b16 %v1064
    %v1157 = vunpack.c.l.b16 %v1065
    %v1158 = vunpack.c.l.b16 %v1066
    %v1159 = vunpack.c.h.b16 %v1066
    %v1160 = vunpack.c.l.b16 %v1067
    %v1161 = vunpack.c.l.b16 %v1068
    %v1162 = vunpack.c.h.b16 %v1068
    %v1163 = vunpack.c.l.b16 %v1069
    %v1164 = vunpack.c.l.b16 %v1070
    %v1165 = vunpack.c.h.b16 %v1070
    %v1166 = vunpack.c.l.b16 %v1071
    %v1167 = vunpack.c.l.b16 %v1072
    %v1168 = vunpack.c.h.b16 %v1072
    %v1169 = vunpack.c.l.b16 %v1073
    %v1170 = vunpack.c.l.b16 %v1074
    %v1171 = vunpack.c.h.b16 %v1074
    %v1172 = vunpack.c.l.b16 %v1075
    %v1173 = vpack.c.b16 %v1128, %v1125
    %v1174 = vpack.c.b16 %v1129, %v1126
    %v1175 = vpack.c.b16 %v1130, %v1127
    %v1176 = vpack.c.b16 %v1134, %v1131
    %v1177 = vpack.c.b16 %v1135, %v1132
    %v1178 = vpack.c.b16 %v1136, %v1133
    %v1179 = vpack.c.b16 %v1140, %v1137
    %v1180 = vpack.c.b16 %v1141, %v1138
    %v1181 = vpack.c.b16 %v1142, %v1139
    %v1182 = vpack.c.b16 %v1146, %v1143
    %v1183 = vpack.c.b16 %v1147, %v1144
    %v1184 = vpack.c.b16 %v1148, %v1145
    %v1185 = vpack.c.b16 %v1152, %v1149
    %v1186 = vpack.c.b16 %v1153, %v1150
    %v1187 = vpack.c.b16 %v1154, %v1151
    %v1188 = vpack.c.b16 %v1158, %v1155
    %v1189 = vpack.c.b16 %v1159, %v1156
    %v1190 = vpack.c.b16 %v1160, %v1157
    %v1191 = vpack.c.b16 %v1164, %v1161
    %v1192 = vpack.c.b16 %v1165, %v1162
    %v1193 = vpack.c.b16 %v1166, %v1163
    %v1194 = vpack.c.b16 %v1170, %v1167
    %v1195 = vpack.c.b16 %v1171, %v1168
    %v1196 = vpack.c.b16 %v1172, %v1169
    %1221 = vmatprep.subr.bf16.mxu0 %v1174
    %1222 = vmatpush1.bf16.msra.mxu0 %v1173
    %1223 = vmatprep.subr.bf16.mxu0 %v1177
    %1224 = vmatpush1.bf16.msra.mxu0 %v1176
    %1225 = vmatprep.subr.bf16.mxu0 %v1180
    %1226 = vmatpush1.bf16.msra.mxu0 %v1179
    %1227 = vmatprep.subr.bf16.mxu0 %v1183
    %1228 = vmatpush1.bf16.msra.mxu0 %v1182
    %1229 = vmatprep.subr.bf16.mxu0 %v1186
    %1230 = vmatpush1.bf16.msra.mxu0 %v1185
    %1231 = vmatprep.subr.bf16.mxu0 %v1189
    %1232 = vmatpush1.bf16.msra.mxu0 %v1188
    %1233 = vmatprep.subr.bf16.mxu0 %v1192
    %1234 = vmatpush1.bf16.msra.mxu0 %v1191
    %1235 = vmatprep.subr.bf16.mxu0 %v1195
    %1236 = vmatpush1.bf16.msra.mxu0 %v1194
    %1237 = vmatprep.subr.bf16.mxu0 0
    %1238 = vmatpush1.bf16.msra.mxu0 0
    %1239 = vmatprep.subr.bf16.mxu0 0
    %1240 = vmatpush1.bf16.msra.mxu0 0
    %1241 = vmatprep.subr.bf16.mxu0 0
    %1242 = vmatpush1.bf16.msra.mxu0 0
    %1243 = vmatprep.subr.bf16.mxu0 0
    %1244 = vmatpush1.bf16.msra.mxu0 0
    %1245 = vmatprep.subr.bf16.mxu0 0
    %1246 = vmatpush1.bf16.msra.mxu0 0
    %1247 = vmatprep.subr.bf16.mxu0 0
    %1248 = vmatpush1.bf16.msra.mxu0 0
    %1249 = vmatprep.subr.bf16.mxu0 0
    %1250 = vmatpush1.bf16.msra.mxu0 0
    %1251 = vmatprep.subr.bf16.mxu0 0
    %1252 = vmatpush1.bf16.msra.mxu0 0
    %1253 = vmatprep.mubr.bf16.mxu0 0
    %1254 = vmatmul.mubr.bf16.gmra.mrb[0].mxu0 %v1043
    %v1255 = vpop.f32.mrb[0].mxu0
    %v1256 = vadd.f32 %v1081, %v1255
    %v1257 = vpop.f32.mrb[0].mxu0
    %v1258 = vadd.f32 %v1085, %v1257
    %v1259 = vpop.f32.mrb[0].mxu0
    %v1260 = vpop.f32.mrb[0].mxu0
    %1261 = vdwg.mxu0
    %1262 = vmatprep.subr.bf16.mxu0 0
    %1263 = vmatpush1.bf16.msra.mxu0 %v1175
    %1264 = vmatprep.subr.bf16.mxu0 0
    %1265 = vmatpush1.bf16.msra.mxu0 %v1178
    %1266 = vmatprep.subr.bf16.mxu0 0
    %1267 = vmatpush1.bf16.msra.mxu0 %v1181
    %1268 = vmatprep.subr.bf16.mxu0 0
    %1269 = vmatpush1.bf16.msra.mxu0 %v1184
    %1270 = vmatprep.subr.bf16.mxu0 0
    %1271 = vmatpush1.bf16.msra.mxu0 %v1187
    %1272 = vmatprep.subr.bf16.mxu0 0
    %1273 = vmatpush1.bf16.msra.mxu0 %v1190
    %1274 = vmatprep.subr.bf16.mxu0 0
    %1275 = vmatpush1.bf16.msra.mxu0 %v1193
    %1276 = vmatprep.subr.bf16.mxu0 0
    %1277 = vmatpush1.bf16.msra.mxu0 %v1196
    %1278 = vmatprep.subr.bf16.mxu0 0
    %1279 = vmatpush1.bf16.msra.mxu0 0
    %1280 = vmatprep.subr.bf16.mxu0 0
    %1281 = vmatpush1.bf16.msra.mxu0 0
    %1282 = vmatprep.subr.bf16.mxu0 0
    %1283 = vmatpush1.bf16.msra.mxu0 0
    %1284 = vmatprep.subr.bf16.mxu0 0
    %1285 = vmatpush1.bf16.msra.mxu0 0
    %1286 = vmatprep.subr.bf16.mxu0 0
    %1287 = vmatpush1.bf16.msra.mxu0 0
    %1288 = vmatprep.subr.bf16.mxu0 0
    %1289 = vmatpush1.bf16.msra.mxu0 0
    %1290 = vmatprep.subr.bf16.mxu0 0
    %1291 = vmatpush1.bf16.msra.mxu0 0
    %1292 = vmatprep.subr.bf16.mxu0 0
    %1293 = vmatpush1.bf16.msra.mxu0 0
    %1294 = vmatprep.mubr.bf16.mxu0 0
    %1295 = vmatmul.mubr.bf16.gmra.mrb[0].mxu0 %v1043
    %v1296 = vpop.f32.mrb[0].mxu0
    %v1297 = vadd.f32 %v1089, %v1296
    %v1298 = vpop.f32.mrb[0].mxu0
    %v1299 = vpop.f32.mrb[0].mxu0
    %v1300 = vpop.f32.mrb[0].mxu0
    %1301 = vdwg.mxu0
    %v1302 = vadd.f32 %v1040, %v1256
    %v1303 = vxor.u32 %v1302, 2147483648
    %v1304 = vmul.f32 %v1303, 1.442695
    %v1305 = vpow.pop %v1304
    %v1306 = vadd.f32 %v1305, 1.0
    %v1307 = vrcp.pop %v1306
    %v1308 = vmul.f32 1.0, %v1307
    %v1309 = vadd.f32 %v1041, %v1258
    %v1310 = vxor.u32 %v1309, 2147483648
    %v1311 = vmul.f32 %v1310, 1.442695
    %v1312 = vpow.pop %v1311
    %v1313 = vadd.f32 %v1312, 1.0
    %v1314 = vrcp.pop %v1313
    %v1315 = vmul.f32 1.0, %v1314
    %v1316 = vmul.f32 %v1308, %v1297
    %v1317 = vadd.f32 %v1042, %v1316
    %v1318 = vtanh.pop %v1317
    %v1319 = vsub.f32 1.0, %v1315
    %v1320 = vmul.f32 %v1319, %v1318
    %v1321 = vmul.f32 %v1315, %v1038
    %v1322 = vadd.f32 %v1320, %v1321
    %1323 = vst [vmem:[#allocation2] sm:$0xff] %v1322
    %v1324 = vpack.c.bf16 %v1322, %v1322
    %s1325 = scalar_lea.vmem [#allocation13], 8
    %1326 = vst [vmem:[%s1325] sm:$0xf] %v1324
    %v1327 = vld [vmem:[#allocation2] sm:$0xff]
    %s1328 = scalar_lea.vmem [#allocation3], 72
    %v1329 = vld [vmem:[%s1328] sm:$0xff]
    %v1330 = vld [vmem:[%s1328 + $0x8] sm:$0xff]
    %v1331 = vld [vmem:[%s1328 + $0x10] sm:$0xff]
    %v1332 = vpack.c.bf16 %v1327, %v1327
    %v1333 = vld [vmem:[#allocation10] sm:$0xff]
    %v1334 = vld [vmem:[#allocation10 + $0x8] sm:$0xf]
    %v1335 = vld [vmem:[#allocation10 + $0xc] sm:$0xff]
    %v1336 = vld [vmem:[#allocation10 + $0x14] sm:$0xf]
    %v1337 = vld [vmem:[#allocation10 + $0x18] sm:$0xff]
    %v1338 = vld [vmem:[#allocation10 + $0x20] sm:$0xf]
    %v1339 = vld [vmem:[#allocation10 + $0x24] sm:$0xff]
    %v1340 = vld [vmem:[#allocation10 + $0x2c] sm:$0xf]
    %v1341 = vld [vmem:[#allocation10 + $0x30] sm:$0xff]
    %v1342 = vld [vmem:[#allocation10 + $0x38] sm:$0xf]
    %v1343 = vld [vmem:[#allocation10 + $0x3c] sm:$0xff]
    %v1344 = vld [vmem:[#allocation10 + $0x44] sm:$0xf]
    %v1345 = vld [vmem:[#allocation10 + $0x48] sm:$0xff]
    %v1346 = vld [vmem:[#allocation10 + $0x50] sm:$0xf]
    %v1347 = vld [vmem:[#allocation10 + $0x54] sm:$0xff]
    %v1348 = vld [vmem:[#allocation10 + $0x5c] sm:$0xf]
    %v1349 = vld [vmem:[#allocation10 + $0x60] sm:$0xff]
    %v1350 = vld [vmem:[#allocation10 + $0x68] sm:$0xf]
    %v1351 = vld [vmem:[#allocation10 + $0x6c] sm:$0xff]
    %v1352 = vld [vmem:[#allocation10 + $0x74] sm:$0xf]
    %v1353 = vld [vmem:[#allocation10 + $0x78] sm:$0xff]
    %v1354 = vld [vmem:[#allocation10 + $0x80] sm:$0xf]
    %v1355 = vld [vmem:[#allocation10 + $0x84] sm:$0xff]
    %v1356 = vld [vmem:[#allocation10 + $0x8c] sm:$0xf]
    %v1357 = vld [vmem:[#allocation10 + $0x90] sm:$0xff]
    %v1358 = vld [vmem:[#allocation10 + $0x98] sm:$0xf]
    %v1359 = vld [vmem:[#allocation10 + $0x9c] sm:$0xff]
    %v1360 = vld [vmem:[#allocation10 + $0xa4] sm:$0xf]
    %v1361 = vld [vmem:[#allocation10 + $0xa8] sm:$0xff]
    %v1362 = vld [vmem:[#allocation10 + $0xb0] sm:$0xf]
    %v1363 = vld [vmem:[#allocation10 + $0xb4] sm:$0xff]
    %v1364 = vld [vmem:[#allocation10 + $0xbc] sm:$0xf]
    %v1365 = vld [vmem:[#allocation12] sm:$0x7]
    %v1367 = vlaneseq
    %v1368 = vshrl.u32 %v1367, 7
    %v1369 = vsub.s32 0, %v1368
    %v1370 = vrot.slane %v1365, %v1369
    %v1371 = vlaneseq
    %v1372 = vshrl.u32 %v1371, 7
    %v1373 = vsub.s32 1, %v1372
    %v1374 = vrot.slane %v1365, %v1373
    %v1375 = vlaneseq
    %v1376 = vshrl.u32 %v1375, 7
    %v1377 = vsub.s32 2, %v1376
    %v1378 = vrot.slane %v1365, %v1377
    %v1414 = vunpack.c.l.b16 %v1333
    %v1415 = vunpack.c.h.b16 %v1333
    %v1416 = vunpack.c.l.b16 %v1334
    %v1417 = vunpack.c.l.b16 %v1335
    %v1418 = vunpack.c.h.b16 %v1335
    %v1419 = vunpack.c.l.b16 %v1336
    %v1420 = vunpack.c.l.b16 %v1337
    %v1421 = vunpack.c.h.b16 %v1337
    %v1422 = vunpack.c.l.b16 %v1338
    %v1423 = vunpack.c.l.b16 %v1339
    %v1424 = vunpack.c.h.b16 %v1339
    %v1425 = vunpack.c.l.b16 %v1340
    %v1426 = vunpack.c.l.b16 %v1341
    %v1427 = vunpack.c.h.b16 %v1341
    %v1428 = vunpack.c.l.b16 %v1342
    %v1429 = vunpack.c.l.b16 %v1343
    %v1430 = vunpack.c.h.b16 %v1343
    %v1431 = vunpack.c.l.b16 %v1344
    %v1432 = vunpack.c.l.b16 %v1345
    %v1433 = vunpack.c.h.b16 %v1345
    %v1434 = vunpack.c.l.b16 %v1346
    %v1435 = vunpack.c.l.b16 %v1347
    %v1436 = vunpack.c.h.b16 %v1347
    %v1437 = vunpack.c.l.b16 %v1348
    %v1438 = vunpack.c.l.b16 %v1349
    %v1439 = vunpack.c.h.b16 %v1349
    %v1440 = vunpack.c.l.b16 %v1350
    %v1441 = vunpack.c.l.b16 %v1351
    %v1442 = vunpack.c.h.b16 %v1351
    %v1443 = vunpack.c.l.b16 %v1352
    %v1444 = vunpack.c.l.b16 %v1353
    %v1445 = vunpack.c.h.b16 %v1353
    %v1446 = vunpack.c.l.b16 %v1354
    %v1447 = vunpack.c.l.b16 %v1355
    %v1448 = vunpack.c.h.b16 %v1355
    %v1449 = vunpack.c.l.b16 %v1356
    %v1450 = vunpack.c.l.b16 %v1357
    %v1451 = vunpack.c.h.b16 %v1357
    %v1452 = vunpack.c.l.b16 %v1358
    %v1453 = vunpack.c.l.b16 %v1359
    %v1454 = vunpack.c.h.b16 %v1359
    %v1455 = vunpack.c.l.b16 %v1360
    %v1456 = vunpack.c.l.b16 %v1361
    %v1457 = vunpack.c.h.b16 %v1361
    %v1458 = vunpack.c.l.b16 %v1362
    %v1459 = vunpack.c.l.b16 %v1363
    %v1460 = vunpack.c.h.b16 %v1363
    %v1461 = vunpack.c.l.b16 %v1364
    %v1462 = vpack.c.b16 %v1417, %v1414
    %v1463 = vpack.c.b16 %v1418, %v1415
    %v1464 = vpack.c.b16 %v1419, %v1416
    %v1465 = vpack.c.b16 %v1423, %v1420
    %v1466 = vpack.c.b16 %v1424, %v1421
    %v1467 = vpack.c.b16 %v1425, %v1422
    %v1468 = vpack.c.b16 %v1429, %v1426
    %v1469 = vpack.c.b16 %v1430, %v1427
    %v1470 = vpack.c.b16 %v1431, %v1428
    %v1471 = vpack.c.b16 %v1435, %v1432
    %v1472 = vpack.c.b16 %v1436, %v1433
    %v1473 = vpack.c.b16 %v1437, %v1434
    %v1474 = vpack.c.b16 %v1441, %v1438
    %v1475 = vpack.c.b16 %v1442, %v1439
    %v1476 = vpack.c.b16 %v1443, %v1440
    %v1477 = vpack.c.b16 %v1447, %v1444
    %v1478 = vpack.c.b16 %v1448, %v1445
    %v1479 = vpack.c.b16 %v1449, %v1446
    %v1480 = vpack.c.b16 %v1453, %v1450
    %v1481 = vpack.c.b16 %v1454, %v1451
    %v1482 = vpack.c.b16 %v1455, %v1452
    %v1483 = vpack.c.b16 %v1459, %v1456
    %v1484 = vpack.c.b16 %v1460, %v1457
    %v1485 = vpack.c.b16 %v1461, %v1458
    %1510 = vmatprep.subr.bf16.mxu0 %v1463
    %1511 = vmatpush1.bf16.msra.mxu0 %v1462
    %1512 = vmatprep.subr.bf16.mxu0 %v1466
    %1513 = vmatpush1.bf16.msra.mxu0 %v1465
    %1514 = vmatprep.subr.bf16.mxu0 %v1469
    %1515 = vmatpush1.bf16.msra.mxu0 %v1468
    %1516 = vmatprep.subr.bf16.mxu0 %v1472
    %1517 = vmatpush1.bf16.msra.mxu0 %v1471
    %1518 = vmatprep.subr.bf16.mxu0 %v1475
    %1519 = vmatpush1.bf16.msra.mxu0 %v1474
    %1520 = vmatprep.subr.bf16.mxu0 %v1478
    %1521 = vmatpush1.bf16.msra.mxu0 %v1477
    %1522 = vmatprep.subr.bf16.mxu0 %v1481
    %1523 = vmatpush1.bf16.msra.mxu0 %v1480
    %1524 = vmatprep.subr.bf16.mxu0 %v1484
    %1525 = vmatpush1.bf16.msra.mxu0 %v1483
    %1526 = vmatprep.subr.bf16.mxu0 0
    %1527 = vmatpush1.bf16.msra.mxu0 0
    %1528 = vmatprep.subr.bf16.mxu0 0
    %1529 = vmatpush1.bf16.msra.mxu0 0
    %1530 = vmatprep.subr.bf16.mxu0 0
    %1531 = vmatpush1.bf16.msra.mxu0 0
    %1532 = vmatprep.subr.bf16.mxu0 0
    %1533 = vmatpush1.bf16.msra.mxu0 0
    %1534 = vmatprep.subr.bf16.mxu0 0
    %1535 = vmatpush1.bf16.msra.mxu0 0
    %1536 = vmatprep.subr.bf16.mxu0 0
    %1537 = vmatpush1.bf16.msra.mxu0 0
    %1538 = vmatprep.subr.bf16.mxu0 0
    %1539 = vmatpush1.bf16.msra.mxu0 0
    %1540 = vmatprep.subr.bf16.mxu0 0
    %1541 = vmatpush1.bf16.msra.mxu0 0
    %1542 = vmatprep.mubr.bf16.mxu0 0
    %1543 = vmatmul.mubr.bf16.gmra.mrb[0].mxu0 %v1332
    %v1544 = vpop.f32.mrb[0].mxu0
    %v1545 = vadd.f32 %v1370, %v1544
    %v1546 = vpop.f32.mrb[0].mxu0
    %v1547 = vadd.f32 %v1374, %v1546
    %v1548 = vpop.f32.mrb[0].mxu0
    %v1549 = vpop.f32.mrb[0].mxu0
    %1550 = vdwg.mxu0
    %1551 = vmatprep.subr.bf16.mxu0 0
    %1552 = vmatpush1.bf16.msra.mxu0 %v1464
    %1553 = vmatprep.subr.bf16.mxu0 0
    %1554 = vmatpush1.bf16.msra.mxu0 %v1467
    %1555 = vmatprep.subr.bf16.mxu0 0
    %1556 = vmatpush1.bf16.msra.mxu0 %v1470
    %1557 = vmatprep.subr.bf16.mxu0 0
    %1558 = vmatpush1.bf16.msra.mxu0 %v1473
    %1559 = vmatprep.subr.bf16.mxu0 0
    %1560 = vmatpush1.bf16.msra.mxu0 %v1476
    %1561 = vmatprep.subr.bf16.mxu0 0
    %1562 = vmatpush1.bf16.msra.mxu0 %v1479
    %1563 = vmatprep.subr.bf16.mxu0 0
    %1564 = vmatpush1.bf16.msra.mxu0 %v1482
    %1565 = vmatprep.subr.bf16.mxu0 0
    %1566 = vmatpush1.bf16.msra.mxu0 %v1485
    %1567 = vmatprep.subr.bf16.mxu0 0
    %1568 = vmatpush1.bf16.msra.mxu0 0
    %1569 = vmatprep.subr.bf16.mxu0 0
    %1570 = vmatpush1.bf16.msra.mxu0 0
    %1571 = vmatprep.subr.bf16.mxu0 0
    %1572 = vmatpush1.bf16.msra.mxu0 0
    %1573 = vmatprep.subr.bf16.mxu0 0
    %1574 = vmatpush1.bf16.msra.mxu0 0
    %1575 = vmatprep.subr.bf16.mxu0 0
    %1576 = vmatpush1.bf16.msra.mxu0 0
    %1577 = vmatprep.subr.bf16.mxu0 0
    %1578 = vmatpush1.bf16.msra.mxu0 0
    %1579 = vmatprep.subr.bf16.mxu0 0
    %1580 = vmatpush1.bf16.msra.mxu0 0
    %1581 = vmatprep.subr.bf16.mxu0 0
    %1582 = vmatpush1.bf16.msra.mxu0 0
    %1583 = vmatprep.mubr.bf16.mxu0 0
    %1584 = vmatmul.mubr.bf16.gmra.mrb[0].mxu0 %v1332
    %v1585 = vpop.f32.mrb[0].mxu0
    %v1586 = vadd.f32 %v1378, %v1585
    %v1587 = vpop.f32.mrb[0].mxu0
    %v1588 = vpop.f32.mrb[0].mxu0
    %v1589 = vpop.f32.mrb[0].mxu0
    %1590 = vdwg.mxu0
    %v1591 = vadd.f32 %v1329, %v1545
    %v1592 = vxor.u32 %v1591, 2147483648
    %v1593 = vmul.f32 %v1592, 1.442695
    %v1594 = vpow.pop %v1593
    %v1595 = vadd.f32 %v1594, 1.0
    %v1596 = vrcp.pop %v1595
    %v1597 = vmul.f32 1.0, %v1596
    %v1598 = vadd.f32 %v1330, %v1547
    %v1599 = vxor.u32 %v1598, 2147483648
    %v1600 = vmul.f32 %v1599, 1.442695
    %v1601 = vpow.pop %v1600
    %v1602 = vadd.f32 %v1601, 1.0
    %v1603 = vrcp.pop %v1602
    %v1604 = vmul.f32 1.0, %v1603
    %v1605 = vmul.f32 %v1597, %v1586
    %v1606 = vadd.f32 %v1331, %v1605
    %v1607 = vtanh.pop %v1606
    %v1608 = vsub.f32 1.0, %v1604
    %v1609 = vmul.f32 %v1608, %v1607
    %v1610 = vmul.f32 %v1604, %v1327
    %v1611 = vadd.f32 %v1609, %v1610
    %1612 = vst [vmem:[#allocation2] sm:$0xff] %v1611
    %v1613 = vpack.c.bf16 %v1611, %v1611
    %s1614 = scalar_lea.vmem [#allocation13], 12
    %1615 = vst [vmem:[%s1614] sm:$0xf] %v1613
    %v1616 = vld [vmem:[#allocation2] sm:$0xff]
    %s1617 = scalar_lea.vmem [#allocation3], 96
    %v1618 = vld [vmem:[%s1617] sm:$0xff]
    %v1619 = vld [vmem:[%s1617 + $0x8] sm:$0xff]
    %v1620 = vld [vmem:[%s1617 + $0x10] sm:$0xff]
    %v1621 = vpack.c.bf16 %v1616, %v1616
    %v1622 = vld [vmem:[#allocation10] sm:$0xff]
    %v1623 = vld [vmem:[#allocation10 + $0x8] sm:$0xf]
    %v1624 = vld [vmem:[#allocation10 + $0xc] sm:$0xff]
    %v1625 = vld [vmem:[#allocation10 + $0x14] sm:$0xf]
    %v1626 = vld [vmem:[#allocation10 + $0x18] sm:$0xff]
    %v1627 = vld [vmem:[#allocation10 + $0x20] sm:$0xf]
    %v1628 = vld [vmem:[#allocation10 + $0x24] sm:$0xff]
    %v1629 = vld [vmem:[#allocation10 + $0x2c] sm:$0xf]
    %v1630 = vld [vmem:[#allocation10 + $0x30] sm:$0xff]
    %v1631 = vld [vmem:[#allocation10 + $0x38] sm:$0xf]
    %v1632 = vld [vmem:[#allocation10 + $0x3c] sm:$0xff]
    %v1633 = vld [vmem:[#allocation10 + $0x44] sm:$0xf]
    %v1634 = vld [vmem:[#allocation10 + $0x48] sm:$0xff]
    %v1635 = vld [vmem:[#allocation10 + $0x50] sm:$0xf]
    %v1636 = vld [vmem:[#allocation10 + $0x54] sm:$0xff]
    %v1637 = vld [vmem:[#allocation10 + $0x5c] sm:$0xf]
    %v1638 = vld [vmem:[#allocation10 + $0x60] sm:$0xff]
    %v1639 = vld [vmem:[#allocation10 + $0x68] sm:$0xf]
    %v1640 = vld [vmem:[#allocation10 + $0x6c] sm:$0xff]
    %v1641 = vld [vmem:[#allocation10 + $0x74] sm:$0xf]
    %v1642 = vld [vmem:[#allocation10 + $0x78] sm:$0xff]
    %v1643 = vld [vmem:[#allocation10 + $0x80] sm:$0xf]
    %v1644 = vld [vmem:[#allocation10 + $0x84] sm:$0xff]
    %v1645 = vld [vmem:[#allocation10 + $0x8c] sm:$0xf]
    %v1646 = vld [vmem:[#allocation10 + $0x90] sm:$0xff]
    %v1647 = vld [vmem:[#allocation10 + $0x98] sm:$0xf]
    %v1648 = vld [vmem:[#allocation10 + $0x9c] sm:$0xff]
    %v1649 = vld [vmem:[#allocation10 + $0xa4] sm:$0xf]
    %v1650 = vld [vmem:[#allocation10 + $0xa8] sm:$0xff]
    %v1651 = vld [vmem:[#allocation10 + $0xb0] sm:$0xf]
    %v1652 = vld [vmem:[#allocation10 + $0xb4] sm:$0xff]
    %v1653 = vld [vmem:[#allocation10 + $0xbc] sm:$0xf]
    %v1654 = vld [vmem:[#allocation12] sm:$0x7]
    %v1656 = vlaneseq
    %v1657 = vshrl.u32 %v1656, 7
    %v1658 = vsub.s32 0, %v1657
    %v1659 = vrot.slane %v1654, %v1658
    %v1660 = vlaneseq
    %v1661 = vshrl.u32 %v1660, 7
    %v1662 = vsub.s32 1, %v1661
    %v1663 = vrot.slane %v1654, %v1662
    %v1664 = vlaneseq
    %v1665 = vshrl.u32 %v1664, 7
    %v1666 = vsub.s32 2, %v1665
    %v1667 = vrot.slane %v1654, %v1666
    %v1703 = vunpack.c.l.b16 %v1622
    %v1704 = vunpack.c.h.b16 %v1622
    %v1705 = vunpack.c.l.b16 %v1623
    %v1706 = vunpack.c.l.b16 %v1624
    %v1707 = vunpack.c.h.b16 %v1624
    %v1708 = vunpack.c.l.b16 %v1625
    %v1709 = vunpack.c.l.b16 %v1626
    %v1710 = vunpack.c.h.b16 %v1626
    %v1711 = vunpack.c.l.b16 %v1627
    %v1712 = vunpack.c.l.b16 %v1628
    %v1713 = vunpack.c.h.b16 %v1628
    %v1714 = vunpack.c.l.b16 %v1629
    %v1715 = vunpack.c.l.b16 %v1630
    %v1716 = vunpack.c.h.b16 %v1630
    %v1717 = vunpack.c.l.b16 %v1631
    %v1718 = vunpack.c.l.b16 %v1632
    %v1719 = vunpack.c.h.b16 %v1632
    %v1720 = vunpack.c.l.b16 %v1633
    %v1721 = vunpack.c.l.b16 %v1634
    %v1722 = vunpack.c.h.b16 %v1634
    %v1723 = vunpack.c.l.b16 %v1635
    %v1724 = vunpack.c.l.b16 %v1636
    %v1725 = vunpack.c.h.b16 %v1636
    %v1726 = vunpack.c.l.b16 %v1637
    %v1727 = vunpack.c.l.b16 %v1638
    %v1728 = vunpack.c.h.b16 %v1638
    %v1729 = vunpack.c.l.b16 %v1639
    %v1730 = vunpack.c.l.b16 %v1640
    %v1731 = vunpack.c.h.b16 %v1640
    %v1732 = vunpack.c.l.b16 %v1641
    %v1733 = vunpack.c.l.b16 %v1642
    %v1734 = vunpack.c.h.b16 %v1642
    %v1735 = vunpack.c.l.b16 %v1643
    %v1736 = vunpack.c.l.b16 %v1644
    %v1737 = vunpack.c.h.b16 %v1644
    %v1738 = vunpack.c.l.b16 %v1645
    %v1739 = vunpack.c.l.b16 %v1646
    %v1740 = vunpack.c.h.b16 %v1646
    %v1741 = vunpack.c.l.b16 %v1647
    %v1742 = vunpack.c.l.b16 %v1648
    %v1743 = vunpack.c.h.b16 %v1648
    %v1744 = vunpack.c.l.b16 %v1649
    %v1745 = vunpack.c.l.b16 %v1650
    %v1746 = vunpack.c.h.b16 %v1650
    %v1747 = vunpack.c.l.b16 %v1651
    %v1748 = vunpack.c.l.b16 %v1652
    %v1749 = vunpack.c.h.b16 %v1652
    %v1750 = vunpack.c.l.b16 %v1653
    %v1751 = vpack.c.b16 %v1706, %v1703
    %v1752 = vpack.c.b16 %v1707, %v1704
    %v1753 = vpack.c.b16 %v1708, %v1705
    %v1754 = vpack.c.b16 %v1712, %v1709
    %v1755 = vpack.c.b16 %v1713, %v1710
    %v1756 = vpack.c.b16 %v1714, %v1711
    %v1757 = vpack.c.b16 %v1718, %v1715
    %v1758 = vpack.c.b16 %v1719, %v1716
    %v1759 = vpack.c.b16 %v1720, %v1717
    %v1760 = vpack.c.b16 %v1724, %v1721
    %v1761 = vpack.c.b16 %v1725, %v1722
    %v1762 = vpack.c.b16 %v1726, %v1723
    %v1763 = vpack.c.b16 %v1730, %v1727
    %v1764 = vpack.c.b16 %v1731, %v1728
    %v1765 = vpack.c.b16 %v1732, %v1729
    %v1766 = vpack.c.b16 %v1736, %v1733
    %v1767 = vpack.c.b16 %v1737, %v1734
    %v1768 = vpack.c.b16 %v1738, %v1735
    %v1769 = vpack.c.b16 %v1742, %v1739
    %v1770 = vpack.c.b16 %v1743, %v1740
    %v1771 = vpack.c.b16 %v1744, %v1741
    %v1772 = vpack.c.b16 %v1748, %v1745
    %v1773 = vpack.c.b16 %v1749, %v1746
    %v1774 = vpack.c.b16 %v1750, %v1747
    %1799 = vmatprep.subr.bf16.mxu0 %v1752
    %1800 = vmatpush1.bf16.msra.mxu0 %v1751
    %1801 = vmatprep.subr.bf16.mxu0 %v1755
    %1802 = vmatpush1.bf16.msra.mxu0 %v1754
    %1803 = vmatprep.subr.bf16.mxu0 %v1758
    %1804 = vmatpush1.bf16.msra.mxu0 %v1757
    %1805 = vmatprep.subr.bf16.mxu0 %v1761
    %1806 = vmatpush1.bf16.msra.mxu0 %v1760
    %1807 = vmatprep.subr.bf16.mxu0 %v1764
    %1808 = vmatpush1.bf16.msra.mxu0 %v1763
    %1809 = vmatprep.subr.bf16.mxu0 %v1767
    %1810 = vmatpush1.bf16.msra.mxu0 %v1766
    %1811 = vmatprep.subr.bf16.mxu0 %v1770
    %1812 = vmatpush1.bf16.msra.mxu0 %v1769
    %1813 = vmatprep.subr.bf16.mxu0 %v1773
    %1814 = vmatpush1.bf16.msra.mxu0 %v1772
    %1815 = vmatprep.subr.bf16.mxu0 0
    %1816 = vmatpush1.bf16.msra.mxu0 0
    %1817 = vmatprep.subr.bf16.mxu0 0
    %1818 = vmatpush1.bf16.msra.mxu0 0
    %1819 = vmatprep.subr.bf16.mxu0 0
    %1820 = vmatpush1.bf16.msra.mxu0 0
    %1821 = vmatprep.subr.bf16.mxu0 0
    %1822 = vmatpush1.bf16.msra.mxu0 0
    %1823 = vmatprep.subr.bf16.mxu0 0
    %1824 = vmatpush1.bf16.msra.mxu0 0
    %1825 = vmatprep.subr.bf16.mxu0 0
    %1826 = vmatpush1.bf16.msra.mxu0 0
    %1827 = vmatprep.subr.bf16.mxu0 0
    %1828 = vmatpush1.bf16.msra.mxu0 0
    %1829 = vmatprep.subr.bf16.mxu0 0
    %1830 = vmatpush1.bf16.msra.mxu0 0
    %1831 = vmatprep.mubr.bf16.mxu0 0
    %1832 = vmatmul.mubr.bf16.gmra.mrb[0].mxu0 %v1621
    %v1833 = vpop.f32.mrb[0].mxu0
    %v1834 = vadd.f32 %v1659, %v1833
    %v1835 = vpop.f32.mrb[0].mxu0
    %v1836 = vadd.f32 %v1663, %v1835
    %v1837 = vpop.f32.mrb[0].mxu0
    %v1838 = vpop.f32.mrb[0].mxu0
    %1839 = vdwg.mxu0
    %1840 = vmatprep.subr.bf16.mxu0 0
    %1841 = vmatpush1.bf16.msra.mxu0 %v1753
    %1842 = vmatprep.subr.bf16.mxu0 0
    %1843 = vmatpush1.bf16.msra.mxu0 %v1756
    %1844 = vmatprep.subr.bf16.mxu0 0
    %1845 = vmatpush1.bf16.msra.mxu0 %v1759
    %1846 = vmatprep.subr.bf16.mxu0 0
    %1847 = vmatpush1.bf16.msra.mxu0 %v1762
    %1848 = vmatprep.subr.bf16.mxu0 0
    %1849 = vmatpush1.bf16.msra.mxu0 %v1765
    %1850 = vmatprep.subr.bf16.mxu0 0
    %1851 = vmatpush1.bf16.msra.mxu0 %v1768
    %1852 = vmatprep.subr.bf16.mxu0 0
    %1853 = vmatpush1.bf16.msra.mxu0 %v1771
    %1854 = vmatprep.subr.bf16.mxu0 0
    %1855 = vmatpush1.bf16.msra.mxu0 %v1774
    %1856 = vmatprep.subr.bf16.mxu0 0
    %1857 = vmatpush1.bf16.msra.mxu0 0
    %1858 = vmatprep.subr.bf16.mxu0 0
    %1859 = vmatpush1.bf16.msra.mxu0 0
    %1860 = vmatprep.subr.bf16.mxu0 0
    %1861 = vmatpush1.bf16.msra.mxu0 0
    %1862 = vmatprep.subr.bf16.mxu0 0
    %1863 = vmatpush1.bf16.msra.mxu0 0
    %1864 = vmatprep.subr.bf16.mxu0 0
    %1865 = vmatpush1.bf16.msra.mxu0 0
    %1866 = vmatprep.subr.bf16.mxu0 0
    %1867 = vmatpush1.bf16.msra.mxu0 0
    %1868 = vmatprep.subr.bf16.mxu0 0
    %1869 = vmatpush1.bf16.msra.mxu0 0
    %1870 = vmatprep.subr.bf16.mxu0 0
    %1871 = vmatpush1.bf16.msra.mxu0 0
    %1872 = vmatprep.mubr.bf16.mxu0 0
    %1873 = vmatmul.mubr.bf16.gmra.mrb[0].mxu0 %v1621
    %v1874 = vpop.f32.mrb[0].mxu0
    %v1875 = vadd.f32 %v1667, %v1874
    %v1876 = vpop.f32.mrb[0].mxu0
    %v1877 = vpop.f32.mrb[0].mxu0
    %v1878 = vpop.f32.mrb[0].mxu0
    %1879 = vdwg.mxu0
    %v1880 = vadd.f32 %v1618, %v1834
    %v1881 = vxor.u32 %v1880, 2147483648
    %v1882 = vmul.f32 %v1881, 1.442695
    %v1883 = vpow.pop %v1882
    %v1884 = vadd.f32 %v1883, 1.0
    %v1885 = vrcp.pop %v1884
    %v1886 = vmul.f32 1.0, %v1885
    %v1887 = vadd.f32 %v1619, %v1836
    %v1888 = vxor.u32 %v1887, 2147483648
    %v1889 = vmul.f32 %v1888, 1.442695
    %v1890 = vpow.pop %v1889
    %v1891 = vadd.f32 %v1890, 1.0
    %v1892 = vrcp.pop %v1891
    %v1893 = vmul.f32 1.0, %v1892
    %v1894 = vmul.f32 %v1886, %v1875
    %v1895 = vadd.f32 %v1620, %v1894
    %v1896 = vtanh.pop %v1895
    %v1897 = vsub.f32 1.0, %v1893
    %v1898 = vmul.f32 %v1897, %v1896
    %v1899 = vmul.f32 %v1893, %v1616
    %v1900 = vadd.f32 %v1898, %v1899
    %1901 = vst [vmem:[#allocation2] sm:$0xff] %v1900
    %v1902 = vpack.c.bf16 %v1900, %v1900
    %s1903 = scalar_lea.vmem [#allocation13], 16
    %1904 = vst [vmem:[%s1903] sm:$0xf] %v1902
    %v1905 = vld [vmem:[#allocation2] sm:$0xff]
    %s1906 = scalar_lea.vmem [#allocation3], 120
    %v1907 = vld [vmem:[%s1906] sm:$0xff]
    %v1908 = vld [vmem:[%s1906 + $0x8] sm:$0xff]
    %v1909 = vld [vmem:[%s1906 + $0x10] sm:$0xff]
    %v1910 = vpack.c.bf16 %v1905, %v1905
    %v1911 = vld [vmem:[#allocation10] sm:$0xff]
    %v1912 = vld [vmem:[#allocation10 + $0x8] sm:$0xf]
    %v1913 = vld [vmem:[#allocation10 + $0xc] sm:$0xff]
    %v1914 = vld [vmem:[#allocation10 + $0x14] sm:$0xf]
    %v1915 = vld [vmem:[#allocation10 + $0x18] sm:$0xff]
    %v1916 = vld [vmem:[#allocation10 + $0x20] sm:$0xf]
    %v1917 = vld [vmem:[#allocation10 + $0x24] sm:$0xff]
    %v1918 = vld [vmem:[#allocation10 + $0x2c] sm:$0xf]
    %v1919 = vld [vmem:[#allocation10 + $0x30] sm:$0xff]
    %v1920 = vld [vmem:[#allocation10 + $0x38] sm:$0xf]
    %v1921 = vld [vmem:[#allocation10 + $0x3c] sm:$0xff]
    %v1922 = vld [vmem:[#allocation10 + $0x44] sm:$0xf]
    %v1923 = vld [vmem:[#allocation10 + $0x48] sm:$0xff]
    %v1924 = vld [vmem:[#allocation10 + $0x50] sm:$0xf]
    %v1925 = vld [vmem:[#allocation10 + $0x54] sm:$0xff]
    %v1926 = vld [vmem:[#allocation10 + $0x5c] sm:$0xf]
    %v1927 = vld [vmem:[#allocation10 + $0x60] sm:$0xff]
    %v1928 = vld [vmem:[#allocation10 + $0x68] sm:$0xf]
    %v1929 = vld [vmem:[#allocation10 + $0x6c] sm:$0xff]
    %v1930 = vld [vmem:[#allocation10 + $0x74] sm:$0xf]
    %v1931 = vld [vmem:[#allocation10 + $0x78] sm:$0xff]
    %v1932 = vld [vmem:[#allocation10 + $0x80] sm:$0xf]
    %v1933 = vld [vmem:[#allocation10 + $0x84] sm:$0xff]
    %v1934 = vld [vmem:[#allocation10 + $0x8c] sm:$0xf]
    %v1935 = vld [vmem:[#allocation10 + $0x90] sm:$0xff]
    %v1936 = vld [vmem:[#allocation10 + $0x98] sm:$0xf]
    %v1937 = vld [vmem:[#allocation10 + $0x9c] sm:$0xff]
    %v1938 = vld [vmem:[#allocation10 + $0xa4] sm:$0xf]
    %v1939 = vld [vmem:[#allocation10 + $0xa8] sm:$0xff]
    %v1940 = vld [vmem:[#allocation10 + $0xb0] sm:$0xf]
    %v1941 = vld [vmem:[#allocation10 + $0xb4] sm:$0xff]
    %v1942 = vld [vmem:[#allocation10 + $0xbc] sm:$0xf]
    %v1943 = vld [vmem:[#allocation12] sm:$0x7]
    %v1945 = vlaneseq
    %v1946 = vshrl.u32 %v1945, 7
    %v1947 = vsub.s32 0, %v1946
    %v1948 = vrot.slane %v1943, %v1947
    %v1949 = vlaneseq
    %v1950 = vshrl.u32 %v1949, 7
    %v1951 = vsub.s32 1, %v1950
    %v1952 = vrot.slane %v1943, %v1951
    %v1953 = vlaneseq
    %v1954 = vshrl.u32 %v1953, 7
    %v1955 = vsub.s32 2, %v1954
    %v1956 = vrot.slane %v1943, %v1955
    %v1992 = vunpack.c.l.b16 %v1911
    %v1993 = vunpack.c.h.b16 %v1911
    %v1994 = vunpack.c.l.b16 %v1912
    %v1995 = vunpack.c.l.b16 %v1913
    %v1996 = vunpack.c.h.b16 %v1913
    %v1997 = vunpack.c.l.b16 %v1914
    %v1998 = vunpack.c.l.b16 %v1915
    %v1999 = vunpack.c.h.b16 %v1915
    %v2000 = vunpack.c.l.b16 %v1916
    %v2001 = vunpack.c.l.b16 %v1917
    %v2002 = vunpack.c.h.b16 %v1917
    %v2003 = vunpack.c.l.b16 %v1918
    %v2004 = vunpack.c.l.b16 %v1919
    %v2005 = vunpack.c.h.b16 %v1919
    %v2006 = vunpack.c.l.b16 %v1920
    %v2007 = vunpack.c.l.b16 %v1921
    %v2008 = vunpack.c.h.b16 %v1921
    %v2009 = vunpack.c.l.b16 %v1922
    %v2010 = vunpack.c.l.b16 %v1923
    %v2011 = vunpack.c.h.b16 %v1923
    %v2012 = vunpack.c.l.b16 %v1924
    %v2013 = vunpack.c.l.b16 %v1925
    %v2014 = vunpack.c.h.b16 %v1925
    %v2015 = vunpack.c.l.b16 %v1926
    %v2016 = vunpack.c.l.b16 %v1927
    %v2017 = vunpack.c.h.b16 %v1927
    %v2018 = vunpack.c.l.b16 %v1928
    %v2019 = vunpack.c.l.b16 %v1929
    %v2020 = vunpack.c.h.b16 %v1929
    %v2021 = vunpack.c.l.b16 %v1930
    %v2022 = vunpack.c.l.b16 %v1931
    %v2023 = vunpack.c.h.b16 %v1931
    %v2024 = vunpack.c.l.b16 %v1932
    %v2025 = vunpack.c.l.b16 %v1933
    %v2026 = vunpack.c.h.b16 %v1933
    %v2027 = vunpack.c.l.b16 %v1934
    %v2028 = vunpack.c.l.b16 %v1935
    %v2029 = vunpack.c.h.b16 %v1935
    %v2030 = vunpack.c.l.b16 %v1936
    %v2031 = vunpack.c.l.b16 %v1937
    %v2032 = vunpack.c.h.b16 %v1937
    %v2033 = vunpack.c.l.b16 %v1938
    %v2034 = vunpack.c.l.b16 %v1939
    %v2035 = vunpack.c.h.b16 %v1939
    %v2036 = vunpack.c.l.b16 %v1940
    %v2037 = vunpack.c.l.b16 %v1941
    %v2038 = vunpack.c.h.b16 %v1941
    %v2039 = vunpack.c.l.b16 %v1942
    %v2040 = vpack.c.b16 %v1995, %v1992
    %v2041 = vpack.c.b16 %v1996, %v1993
    %v2042 = vpack.c.b16 %v1997, %v1994
    %v2043 = vpack.c.b16 %v2001, %v1998
    %v2044 = vpack.c.b16 %v2002, %v1999
    %v2045 = vpack.c.b16 %v2003, %v2000
    %v2046 = vpack.c.b16 %v2007, %v2004
    %v2047 = vpack.c.b16 %v2008, %v2005
    %v2048 = vpack.c.b16 %v2009, %v2006
    %v2049 = vpack.c.b16 %v2013, %v2010
    %v2050 = vpack.c.b16 %v2014, %v2011
    %v2051 = vpack.c.b16 %v2015, %v2012
    %v2052 = vpack.c.b16 %v2019, %v2016
    %v2053 = vpack.c.b16 %v2020, %v2017
    %v2054 = vpack.c.b16 %v2021, %v2018
    %v2055 = vpack.c.b16 %v2025, %v2022
    %v2056 = vpack.c.b16 %v2026, %v2023
    %v2057 = vpack.c.b16 %v2027, %v2024
    %v2058 = vpack.c.b16 %v2031, %v2028
    %v2059 = vpack.c.b16 %v2032, %v2029
    %v2060 = vpack.c.b16 %v2033, %v2030
    %v2061 = vpack.c.b16 %v2037, %v2034
    %v2062 = vpack.c.b16 %v2038, %v2035
    %v2063 = vpack.c.b16 %v2039, %v2036
    %2088 = vmatprep.subr.bf16.mxu0 %v2041
    %2089 = vmatpush1.bf16.msra.mxu0 %v2040
    %2090 = vmatprep.subr.bf16.mxu0 %v2044
    %2091 = vmatpush1.bf16.msra.mxu0 %v2043
    %2092 = vmatprep.subr.bf16.mxu0 %v2047
    %2093 = vmatpush1.bf16.msra.mxu0 %v2046
    %2094 = vmatprep.subr.bf16.mxu0 %v2050
    %2095 = vmatpush1.bf16.msra.mxu0 %v2049
    %2096 = vmatprep.subr.bf16.mxu0 %v2053
    %2097 = vmatpush1.bf16.msra.mxu0 %v2052
    %2098 = vmatprep.subr.bf16.mxu0 %v2056
    %2099 = vmatpush1.bf16.msra.mxu0 %v2055
    %2100 = vmatprep.subr.bf16.mxu0 %v2059
    %2101 = vmatpush1.bf16.msra.mxu0 %v2058
    %2102 = vmatprep.subr.bf16.mxu0 %v2062
    %2103 = vmatpush1.bf16.msra.mxu0 %v2061
    %2104 = vmatprep.subr.bf16.mxu0 0
    %2105 = vmatpush1.bf16.msra.mxu0 0
    %2106 = vmatprep.subr.bf16.mxu0 0
    %2107 = vmatpush1.bf16.msra.mxu0 0
    %2108 = vmatprep.subr.bf16.mxu0 0
    %2109 = vmatpush1.bf16.msra.mxu0 0
    %2110 = vmatprep.subr.bf16.mxu0 0
    %2111 = vmatpush1.bf16.msra.mxu0 0
    %2112 = vmatprep.subr.bf16.mxu0 0
    %2113 = vmatpush1.bf16.msra.mxu0 0
    %2114 = vmatprep.subr.bf16.mxu0 0
    %2115 = vmatpush1.bf16.msra.mxu0 0
    %2116 = vmatprep.subr.bf16.mxu0 0
    %2117 = vmatpush1.bf16.msra.mxu0 0
    %2118 = vmatprep.subr.bf16.mxu0 0
    %2119 = vmatpush1.bf16.msra.mxu0 0
    %2120 = vmatprep.mubr.bf16.mxu0 0
    %2121 = vmatmul.mubr.bf16.gmra.mrb[0].mxu0 %v1910
    %v2122 = vpop.f32.mrb[0].mxu0
    %v2123 = vadd.f32 %v1948, %v2122
    %v2124 = vpop.f32.mrb[0].mxu0
    %v2125 = vadd.f32 %v1952, %v2124
    %v2126 = vpop.f32.mrb[0].mxu0
    %v2127 = vpop.f32.mrb[0].mxu0
    %2128 = vdwg.mxu0
    %2129 = vmatprep.subr.bf16.mxu0 0
    %2130 = vmatpush1.bf16.msra.mxu0 %v2042
    %2131 = vmatprep.subr.bf16.mxu0 0
    %2132 = vmatpush1.bf16.msra.mxu0 %v2045
    %2133 = vmatprep.subr.bf16.mxu0 0
    %2134 = vmatpush1.bf16.msra.mxu0 %v2048
    %2135 = vmatprep.subr.bf16.mxu0 0
    %2136 = vmatpush1.bf16.msra.mxu0 %v2051
    %2137 = vmatprep.subr.bf16.mxu0 0
    %2138 = vmatpush1.bf16.msra.mxu0 %v2054
    %2139 = vmatprep.subr.bf16.mxu0 0
    %2140 = vmatpush1.bf16.msra.mxu0 %v2057
    %2141 = vmatprep.subr.bf16.mxu0 0
    %2142 = vmatpush1.bf16.msra.mxu0 %v2060
    %2143 = vmatprep.subr.bf16.mxu0 0
    %2144 = vmatpush1.bf16.msra.mxu0 %v2063
    %2145 = vmatprep.subr.bf16.mxu0 0
    %2146 = vmatpush1.bf16.msra.mxu0 0
    %2147 = vmatprep.subr.bf16.mxu0 0
    %2148 = vmatpush1.bf16.msra.mxu0 0
    %2149 = vmatprep.subr.bf16.mxu0 0
    %2150 = vmatpush1.bf16.msra.mxu0 0
    %2151 = vmatprep.subr.bf16.mxu0 0
    %2152 = vmatpush1.bf16.msra.mxu0 0
    %2153 = vmatprep.subr.bf16.mxu0 0
    %2154 = vmatpush1.bf16.msra.mxu0 0
    %2155 = vmatprep.subr.bf16.mxu0 0
    %2156 = vmatpush1.bf16.msra.mxu0 0
    %2157 = vmatprep.subr.bf16.mxu0 0
    %2158 = vmatpush1.bf16.msra.mxu0 0
    %2159 = vmatprep.subr.bf16.mxu0 0
    %2160 = vmatpush1.bf16.msra.mxu0 0
    %2161 = vmatprep.mubr.bf16.mxu0 0
    %2162 = vmatmul.mubr.bf16.gmra.mrb[0].mxu0 %v1910
    %v2163 = vpop.f32.mrb[0].mxu0
    %v2164 = vadd.f32 %v1956, %v2163
    %v2165 = vpop.f32.mrb[0].mxu0
    %v2166 = vpop.f32.mrb[0].mxu0
    %v2167 = vpop.f32.mrb[0].mxu0
    %2168 = vdwg.mxu0
    %v2169 = vadd.f32 %v1907, %v2123
    %v2170 = vxor.u32 %v2169, 2147483648
    %v2171 = vmul.f32 %v2170, 1.442695
    %v2172 = vpow.pop %v2171
    %v2173 = vadd.f32 %v2172, 1.0
    %v2174 = vrcp.pop %v2173
    %v2175 = vmul.f32 1.0, %v2174
    %v2176 = vadd.f32 %v1908, %v2125
    %v2177 = vxor.u32 %v2176, 2147483648
    %v2178 = vmul.f32 %v2177, 1.442695
    %v2179 = vpow.pop %v2178
    %v2180 = vadd.f32 %v2179, 1.0
    %v2181 = vrcp.pop %v2180
    %v2182 = vmul.f32 1.0, %v2181
    %v2183 = vmul.f32 %v2175, %v2164
    %v2184 = vadd.f32 %v1909, %v2183
    %v2185 = vtanh.pop %v2184
    %v2186 = vsub.f32 1.0, %v2182
    %v2187 = vmul.f32 %v2186, %v2185
    %v2188 = vmul.f32 %v2182, %v1905
    %v2189 = vadd.f32 %v2187, %v2188
    %2190 = vst [vmem:[#allocation2] sm:$0xff] %v2189
    %v2191 = vpack.c.bf16 %v2189, %v2189
    %s2192 = scalar_lea.vmem [#allocation13], 20
    %2193 = vst [vmem:[%s2192] sm:$0xf] %v2191
    %v2194 = vld [vmem:[#allocation2] sm:$0xff]
    %s2195 = scalar_lea.vmem [#allocation3], 144
    %v2196 = vld [vmem:[%s2195] sm:$0xff]
    %v2197 = vld [vmem:[%s2195 + $0x8] sm:$0xff]
    %v2198 = vld [vmem:[%s2195 + $0x10] sm:$0xff]
    %v2199 = vpack.c.bf16 %v2194, %v2194
    %v2200 = vld [vmem:[#allocation10] sm:$0xff]
    %v2201 = vld [vmem:[#allocation10 + $0x8] sm:$0xf]
    %v2202 = vld [vmem:[#allocation10 + $0xc] sm:$0xff]
    %v2203 = vld [vmem:[#allocation10 + $0x14] sm:$0xf]
    %v2204 = vld [vmem:[#allocation10 + $0x18] sm:$0xff]
    %v2205 = vld [vmem:[#allocation10 + $0x20] sm:$0xf]
    %v2206 = vld [vmem:[#allocation10 + $0x24] sm:$0xff]
    %v2207 = vld [vmem:[#allocation10 + $0x2c] sm:$0xf]
    %v2208 = vld [vmem:[#allocation10 + $0x30] sm:$0xff]
    %v2209 = vld [vmem:[#allocation10 + $0x38] sm:$0xf]
    %v2210 = vld [vmem:[#allocation10 + $0x3c] sm:$0xff]
    %v2211 = vld [vmem:[#allocation10 + $0x44] sm:$0xf]
    %v2212 = vld [vmem:[#allocation10 + $0x48] sm:$0xff]
    %v2213 = vld [vmem:[#allocation10 + $0x50] sm:$0xf]
    %v2214 = vld [vmem:[#allocation10 + $0x54] sm:$0xff]
    %v2215 = vld [vmem:[#allocation10 + $0x5c] sm:$0xf]
    %v2216 = vld [vmem:[#allocation10 + $0x60] sm:$0xff]
    %v2217 = vld [vmem:[#allocation10 + $0x68] sm:$0xf]
    %v2218 = vld [vmem:[#allocation10 + $0x6c] sm:$0xff]
    %v2219 = vld [vmem:[#allocation10 + $0x74] sm:$0xf]
    %v2220 = vld [vmem:[#allocation10 + $0x78] sm:$0xff]
    %v2221 = vld [vmem:[#allocation10 + $0x80] sm:$0xf]
    %v2222 = vld [vmem:[#allocation10 + $0x84] sm:$0xff]
    %v2223 = vld [vmem:[#allocation10 + $0x8c] sm:$0xf]
    %v2224 = vld [vmem:[#allocation10 + $0x90] sm:$0xff]
    %v2225 = vld [vmem:[#allocation10 + $0x98] sm:$0xf]
    %v2226 = vld [vmem:[#allocation10 + $0x9c] sm:$0xff]
    %v2227 = vld [vmem:[#allocation10 + $0xa4] sm:$0xf]
    %v2228 = vld [vmem:[#allocation10 + $0xa8] sm:$0xff]
    %v2229 = vld [vmem:[#allocation10 + $0xb0] sm:$0xf]
    %v2230 = vld [vmem:[#allocation10 + $0xb4] sm:$0xff]
    %v2231 = vld [vmem:[#allocation10 + $0xbc] sm:$0xf]
    %v2232 = vld [vmem:[#allocation12] sm:$0x7]
    %v2234 = vlaneseq
    %v2235 = vshrl.u32 %v2234, 7
    %v2236 = vsub.s32 0, %v2235
    %v2237 = vrot.slane %v2232, %v2236
    %v2238 = vlaneseq
    %v2239 = vshrl.u32 %v2238, 7
    %v2240 = vsub.s32 1, %v2239
    %v2241 = vrot.slane %v2232, %v2240
    %v2242 = vlaneseq
    %v2243 = vshrl.u32 %v2242, 7
    %v2244 = vsub.s32 2, %v2243
    %v2245 = vrot.slane %v2232, %v2244
    %v2281 = vunpack.c.l.b16 %v2200
    %v2282 = vunpack.c.h.b16 %v2200
    %v2283 = vunpack.c.l.b16 %v2201
    %v2284 = vunpack.c.l.b16 %v2202
    %v2285 = vunpack.c.h.b16 %v2202
    %v2286 = vunpack.c.l.b16 %v2203
    %v2287 = vunpack.c.l.b16 %v2204
    %v2288 = vunpack.c.h.b16 %v2204
    %v2289 = vunpack.c.l.b16 %v2205
    %v2290 = vunpack.c.l.b16 %v2206
    %v2291 = vunpack.c.h.b16 %v2206
    %v2292 = vunpack.c.l.b16 %v2207
    %v2293 = vunpack.c.l.b16 %v2208
    %v2294 = vunpack.c.h.b16 %v2208
    %v2295 = vunpack.c.l.b16 %v2209
    %v2296 = vunpack.c.l.b16 %v2210
    %v2297 = vunpack.c.h.b16 %v2210
    %v2298 = vunpack.c.l.b16 %v2211
    %v2299 = vunpack.c.l.b16 %v2212
    %v2300 = vunpack.c.h.b16 %v2212
    %v2301 = vunpack.c.l.b16 %v2213
    %v2302 = vunpack.c.l.b16 %v2214
    %v2303 = vunpack.c.h.b16 %v2214
    %v2304 = vunpack.c.l.b16 %v2215
    %v2305 = vunpack.c.l.b16 %v2216
    %v2306 = vunpack.c.h.b16 %v2216
    %v2307 = vunpack.c.l.b16 %v2217
    %v2308 = vunpack.c.l.b16 %v2218
    %v2309 = vunpack.c.h.b16 %v2218
    %v2310 = vunpack.c.l.b16 %v2219
    %v2311 = vunpack.c.l.b16 %v2220
    %v2312 = vunpack.c.h.b16 %v2220
    %v2313 = vunpack.c.l.b16 %v2221
    %v2314 = vunpack.c.l.b16 %v2222
    %v2315 = vunpack.c.h.b16 %v2222
    %v2316 = vunpack.c.l.b16 %v2223
    %v2317 = vunpack.c.l.b16 %v2224
    %v2318 = vunpack.c.h.b16 %v2224
    %v2319 = vunpack.c.l.b16 %v2225
    %v2320 = vunpack.c.l.b16 %v2226
    %v2321 = vunpack.c.h.b16 %v2226
    %v2322 = vunpack.c.l.b16 %v2227
    %v2323 = vunpack.c.l.b16 %v2228
    %v2324 = vunpack.c.h.b16 %v2228
    %v2325 = vunpack.c.l.b16 %v2229
    %v2326 = vunpack.c.l.b16 %v2230
    %v2327 = vunpack.c.h.b16 %v2230
    %v2328 = vunpack.c.l.b16 %v2231
    %v2329 = vpack.c.b16 %v2284, %v2281
    %v2330 = vpack.c.b16 %v2285, %v2282
    %v2331 = vpack.c.b16 %v2286, %v2283
    %v2332 = vpack.c.b16 %v2290, %v2287
    %v2333 = vpack.c.b16 %v2291, %v2288
    %v2334 = vpack.c.b16 %v2292, %v2289
    %v2335 = vpack.c.b16 %v2296, %v2293
    %v2336 = vpack.c.b16 %v2297, %v2294
    %v2337 = vpack.c.b16 %v2298, %v2295
    %v2338 = vpack.c.b16 %v2302, %v2299
    %v2339 = vpack.c.b16 %v2303, %v2300
    %v2340 = vpack.c.b16 %v2304, %v2301
    %v2341 = vpack.c.b16 %v2308, %v2305
    %v2342 = vpack.c.b16 %v2309, %v2306
    %v2343 = vpack.c.b16 %v2310, %v2307
    %v2344 = vpack.c.b16 %v2314, %v2311
    %v2345 = vpack.c.b16 %v2315, %v2312
    %v2346 = vpack.c.b16 %v2316, %v2313
    %v2347 = vpack.c.b16 %v2320, %v2317
    %v2348 = vpack.c.b16 %v2321, %v2318
    %v2349 = vpack.c.b16 %v2322, %v2319
    %v2350 = vpack.c.b16 %v2326, %v2323
    %v2351 = vpack.c.b16 %v2327, %v2324
    %v2352 = vpack.c.b16 %v2328, %v2325
    %2377 = vmatprep.subr.bf16.mxu0 %v2330
    %2378 = vmatpush1.bf16.msra.mxu0 %v2329
    %2379 = vmatprep.subr.bf16.mxu0 %v2333
    %2380 = vmatpush1.bf16.msra.mxu0 %v2332
    %2381 = vmatprep.subr.bf16.mxu0 %v2336
    %2382 = vmatpush1.bf16.msra.mxu0 %v2335
    %2383 = vmatprep.subr.bf16.mxu0 %v2339
    %2384 = vmatpush1.bf16.msra.mxu0 %v2338
    %2385 = vmatprep.subr.bf16.mxu0 %v2342
    %2386 = vmatpush1.bf16.msra.mxu0 %v2341
    %2387 = vmatprep.subr.bf16.mxu0 %v2345
    %2388 = vmatpush1.bf16.msra.mxu0 %v2344
    %2389 = vmatprep.subr.bf16.mxu0 %v2348
    %2390 = vmatpush1.bf16.msra.mxu0 %v2347
    %2391 = vmatprep.subr.bf16.mxu0 %v2351
    %2392 = vmatpush1.bf16.msra.mxu0 %v2350
    %2393 = vmatprep.subr.bf16.mxu0 0
    %2394 = vmatpush1.bf16.msra.mxu0 0
    %2395 = vmatprep.subr.bf16.mxu0 0
    %2396 = vmatpush1.bf16.msra.mxu0 0
    %2397 = vmatprep.subr.bf16.mxu0 0
    %2398 = vmatpush1.bf16.msra.mxu0 0
    %2399 = vmatprep.subr.bf16.mxu0 0
    %2400 = vmatpush1.bf16.msra.mxu0 0
    %2401 = vmatprep.subr.bf16.mxu0 0
    %2402 = vmatpush1.bf16.msra.mxu0 0
    %2403 = vmatprep.subr.bf16.mxu0 0
    %2404 = vmatpush1.bf16.msra.mxu0 0
    %2405 = vmatprep.subr.bf16.mxu0 0
    %2406 = vmatpush1.bf16.msra.mxu0 0
    %2407 = vmatprep.subr.bf16.mxu0 0
    %2408 = vmatpush1.bf16.msra.mxu0 0
    %2409 = vmatprep.mubr.bf16.mxu0 0
    %2410 = vmatmul.mubr.bf16.gmra.mrb[0].mxu0 %v2199
    %v2411 = vpop.f32.mrb[0].mxu0
    %v2412 = vadd.f32 %v2237, %v2411
    %v2413 = vpop.f32.mrb[0].mxu0
    %v2414 = vadd.f32 %v2241, %v2413
    %v2415 = vpop.f32.mrb[0].mxu0
    %v2416 = vpop.f32.mrb[0].mxu0
    %2417 = vdwg.mxu0
    %2418 = vmatprep.subr.bf16.mxu0 0
    %2419 = vmatpush1.bf16.msra.mxu0 %v2331
    %2420 = vmatprep.subr.bf16.mxu0 0
    %2421 = vmatpush1.bf16.msra.mxu0 %v2334
    %2422 = vmatprep.subr.bf16.mxu0 0
    %2423 = vmatpush1.bf16.msra.mxu0 %v2337
    %2424 = vmatprep.subr.bf16.mxu0 0
    %2425 = vmatpush1.bf16.msra.mxu0 %v2340
    %2426 = vmatprep.subr.bf16.mxu0 0
    %2427 = vmatpush1.bf16.msra.mxu0 %v2343
    %2428 = vmatprep.subr.bf16.mxu0 0
    %2429 = vmatpush1.bf16.msra.mxu0 %v2346
    %2430 = vmatprep.subr.bf16.mxu0 0
    %2431 = vmatpush1.bf16.msra.mxu0 %v2349
    %2432 = vmatprep.subr.bf16.mxu0 0
    %2433 = vmatpush1.bf16.msra.mxu0 %v2352
    %2434 = vmatprep.subr.bf16.mxu0 0
    %2435 = vmatpush1.bf16.msra.mxu0 0
    %2436 = vmatprep.subr.bf16.mxu0 0
    %2437 = vmatpush1.bf16.msra.mxu0 0
    %2438 = vmatprep.subr.bf16.mxu0 0
    %2439 = vmatpush1.bf16.msra.mxu0 0
    %2440 = vmatprep.subr.bf16.mxu0 0
    %2441 = vmatpush1.bf16.msra.mxu0 0
    %2442 = vmatprep.subr.bf16.mxu0 0
    %2443 = vmatpush1.bf16.msra.mxu0 0
    %2444 = vmatprep.subr.bf16.mxu0 0
    %2445 = vmatpush1.bf16.msra.mxu0 0
    %2446 = vmatprep.subr.bf16.mxu0 0
    %2447 = vmatpush1.bf16.msra.mxu0 0
    %2448 = vmatprep.subr.bf16.mxu0 0
    %2449 = vmatpush1.bf16.msra.mxu0 0
    %2450 = vmatprep.mubr.bf16.mxu0 0
    %2451 = vmatmul.mubr.bf16.gmra.mrb[0].mxu0 %v2199
    %v2452 = vpop.f32.mrb[0].mxu0
    %v2453 = vadd.f32 %v2245, %v2452
    %v2454 = vpop.f32.mrb[0].mxu0
    %v2455 = vpop.f32.mrb[0].mxu0
    %v2456 = vpop.f32.mrb[0].mxu0
    %2457 = vdwg.mxu0
    %v2458 = vadd.f32 %v2196, %v2412
    %v2459 = vxor.u32 %v2458, 2147483648
    %v2460 = vmul.f32 %v2459, 1.442695
    %v2461 = vpow.pop %v2460
    %v2462 = vadd.f32 %v2461, 1.0
    %v2463 = vrcp.pop %v2462
    %v2464 = vmul.f32 1.0, %v2463
    %v2465 = vadd.f32 %v2197, %v2414
    %v2466 = vxor.u32 %v2465, 2147483648
    %v2467 = vmul.f32 %v2466, 1.442695
    %v2468 = vpow.pop %v2467
    %v2469 = vadd.f32 %v2468, 1.0
    %v2470 = vrcp.pop %v2469
    %v2471 = vmul.f32 1.0, %v2470
    %v2472 = vmul.f32 %v2464, %v2453
    %v2473 = vadd.f32 %v2198, %v2472
    %v2474 = vtanh.pop %v2473
    %v2475 = vsub.f32 1.0, %v2471
    %v2476 = vmul.f32 %v2475, %v2474
    %v2477 = vmul.f32 %v2471, %v2194
    %v2478 = vadd.f32 %v2476, %v2477
    %2479 = vst [vmem:[#allocation2] sm:$0xff] %v2478
    %v2480 = vpack.c.bf16 %v2478, %v2478
    %s2481 = scalar_lea.vmem [#allocation13], 24
    %2482 = vst [vmem:[%s2481] sm:$0xf] %v2480
    %v2483 = vld [vmem:[#allocation2] sm:$0xff]
    %s2484 = scalar_lea.vmem [#allocation3], 168
    %v2485 = vld [vmem:[%s2484] sm:$0xff]
    %v2486 = vld [vmem:[%s2484 + $0x8] sm:$0xff]
    %v2487 = vld [vmem:[%s2484 + $0x10] sm:$0xff]
    %v2488 = vpack.c.bf16 %v2483, %v2483
    %v2489 = vld [vmem:[#allocation10] sm:$0xff]
    %v2490 = vld [vmem:[#allocation10 + $0x8] sm:$0xf]
    %v2491 = vld [vmem:[#allocation10 + $0xc] sm:$0xff]
    %v2492 = vld [vmem:[#allocation10 + $0x14] sm:$0xf]
    %v2493 = vld [vmem:[#allocation10 + $0x18] sm:$0xff]
    %v2494 = vld [vmem:[#allocation10 + $0x20] sm:$0xf]
    %v2495 = vld [vmem:[#allocation10 + $0x24] sm:$0xff]
    %v2496 = vld [vmem:[#allocation10 + $0x2c] sm:$0xf]
    %v2497 = vld [vmem:[#allocation10 + $0x30] sm:$0xff]
    %v2498 = vld [vmem:[#allocation10 + $0x38] sm:$0xf]
    %v2499 = vld [vmem:[#allocation10 + $0x3c] sm:$0xff]
    %v2500 = vld [vmem:[#allocation10 + $0x44] sm:$0xf]
    %v2501 = vld [vmem:[#allocation10 + $0x48] sm:$0xff]
    %v2502 = vld [vmem:[#allocation10 + $0x50] sm:$0xf]
    %v2503 = vld [vmem:[#allocation10 + $0x54] sm:$0xff]
    %v2504 = vld [vmem:[#allocation10 + $0x5c] sm:$0xf]
    %v2505 = vld [vmem:[#allocation10 + $0x60] sm:$0xff]
    %v2506 = vld [vmem:[#allocation10 + $0x68] sm:$0xf]
    %v2507 = vld [vmem:[#allocation10 + $0x6c] sm:$0xff]
    %v2508 = vld [vmem:[#allocation10 + $0x74] sm:$0xf]
    %v2509 = vld [vmem:[#allocation10 + $0x78] sm:$0xff]
    %v2510 = vld [vmem:[#allocation10 + $0x80] sm:$0xf]
    %v2511 = vld [vmem:[#allocation10 + $0x84] sm:$0xff]
    %v2512 = vld [vmem:[#allocation10 + $0x8c] sm:$0xf]
    %v2513 = vld [vmem:[#allocation10 + $0x90] sm:$0xff]
    %v2514 = vld [vmem:[#allocation10 + $0x98] sm:$0xf]
    %v2515 = vld [vmem:[#allocation10 + $0x9c] sm:$0xff]
    %v2516 = vld [vmem:[#allocation10 + $0xa4] sm:$0xf]
    %v2517 = vld [vmem:[#allocation10 + $0xa8] sm:$0xff]
    %v2518 = vld [vmem:[#allocation10 + $0xb0] sm:$0xf]
    %v2519 = vld [vmem:[#allocation10 + $0xb4] sm:$0xff]
    %v2520 = vld [vmem:[#allocation10 + $0xbc] sm:$0xf]
    %v2521 = vld [vmem:[#allocation12] sm:$0x7]
    %v2523 = vlaneseq
    %v2524 = vshrl.u32 %v2523, 7
    %v2525 = vsub.s32 0, %v2524
    %v2526 = vrot.slane %v2521, %v2525
    %v2527 = vlaneseq
    %v2528 = vshrl.u32 %v2527, 7
    %v2529 = vsub.s32 1, %v2528
    %v2530 = vrot.slane %v2521, %v2529
    %v2531 = vlaneseq
    %v2532 = vshrl.u32 %v2531, 7
    %v2533 = vsub.s32 2, %v2532
    %v2534 = vrot.slane %v2521, %v2533
    %v2570 = vunpack.c.l.b16 %v2489
    %v2571 = vunpack.c.h.b16 %v2489
    %v2572 = vunpack.c.l.b16 %v2490
    %v2573 = vunpack.c.l.b16 %v2491
    %v2574 = vunpack.c.h.b16 %v2491
    %v2575 = vunpack.c.l.b16 %v2492
    %v2576 = vunpack.c.l.b16 %v2493
    %v2577 = vunpack.c.h.b16 %v2493
    %v2578 = vunpack.c.l.b16 %v2494
    %v2579 = vunpack.c.l.b16 %v2495
    %v2580 = vunpack.c.h.b16 %v2495
    %v2581 = vunpack.c.l.b16 %v2496
    %v2582 = vunpack.c.l.b16 %v2497
    %v2583 = vunpack.c.h.b16 %v2497
    %v2584 = vunpack.c.l.b16 %v2498
    %v2585 = vunpack.c.l.b16 %v2499
    %v2586 = vunpack.c.h.b16 %v2499
    %v2587 = vunpack.c.l.b16 %v2500
    %v2588 = vunpack.c.l.b16 %v2501
    %v2589 = vunpack.c.h.b16 %v2501
    %v2590 = vunpack.c.l.b16 %v2502
    %v2591 = vunpack.c.l.b16 %v2503
    %v2592 = vunpack.c.h.b16 %v2503
    %v2593 = vunpack.c.l.b16 %v2504
    %v2594 = vunpack.c.l.b16 %v2505
    %v2595 = vunpack.c.h.b16 %v2505
    %v2596 = vunpack.c.l.b16 %v2506
    %v2597 = vunpack.c.l.b16 %v2507
    %v2598 = vunpack.c.h.b16 %v2507
    %v2599 = vunpack.c.l.b16 %v2508
    %v2600 = vunpack.c.l.b16 %v2509
    %v2601 = vunpack.c.h.b16 %v2509
    %v2602 = vunpack.c.l.b16 %v2510
    %v2603 = vunpack.c.l.b16 %v2511
    %v2604 = vunpack.c.h.b16 %v2511
    %v2605 = vunpack.c.l.b16 %v2512
    %v2606 = vunpack.c.l.b16 %v2513
    %v2607 = vunpack.c.h.b16 %v2513
    %v2608 = vunpack.c.l.b16 %v2514
    %v2609 = vunpack.c.l.b16 %v2515
    %v2610 = vunpack.c.h.b16 %v2515
    %v2611 = vunpack.c.l.b16 %v2516
    %v2612 = vunpack.c.l.b16 %v2517
    %v2613 = vunpack.c.h.b16 %v2517
    %v2614 = vunpack.c.l.b16 %v2518
    %v2615 = vunpack.c.l.b16 %v2519
    %v2616 = vunpack.c.h.b16 %v2519
    %v2617 = vunpack.c.l.b16 %v2520
    %v2618 = vpack.c.b16 %v2573, %v2570
    %v2619 = vpack.c.b16 %v2574, %v2571
    %v2620 = vpack.c.b16 %v2575, %v2572
    %v2621 = vpack.c.b16 %v2579, %v2576
    %v2622 = vpack.c.b16 %v2580, %v2577
    %v2623 = vpack.c.b16 %v2581, %v2578
    %v2624 = vpack.c.b16 %v2585, %v2582
    %v2625 = vpack.c.b16 %v2586, %v2583
    %v2626 = vpack.c.b16 %v2587, %v2584
    %v2627 = vpack.c.b16 %v2591, %v2588
    %v2628 = vpack.c.b16 %v2592, %v2589
    %v2629 = vpack.c.b16 %v2593, %v2590
    %v2630 = vpack.c.b16 %v2597, %v2594
    %v2631 = vpack.c.b16 %v2598, %v2595
    %v2632 = vpack.c.b16 %v2599, %v2596
    %v2633 = vpack.c.b16 %v2603, %v2600
    %v2634 = vpack.c.b16 %v2604, %v2601
    %v2635 = vpack.c.b16 %v2605, %v2602
    %v2636 = vpack.c.b16 %v2609, %v2606
    %v2637 = vpack.c.b16 %v2610, %v2607
    %v2638 = vpack.c.b16 %v2611, %v2608
    %v2639 = vpack.c.b16 %v2615, %v2612
    %v2640 = vpack.c.b16 %v2616, %v2613
    %v2641 = vpack.c.b16 %v2617, %v2614
    %2666 = vmatprep.subr.bf16.mxu0 %v2619
    %2667 = vmatpush1.bf16.msra.mxu0 %v2618
    %2668 = vmatprep.subr.bf16.mxu0 %v2622
    %2669 = vmatpush1.bf16.msra.mxu0 %v2621
    %2670 = vmatprep.subr.bf16.mxu0 %v2625
    %2671 = vmatpush1.bf16.msra.mxu0 %v2624
    %2672 = vmatprep.subr.bf16.mxu0 %v2628
    %2673 = vmatpush1.bf16.msra.mxu0 %v2627
    %2674 = vmatprep.subr.bf16.mxu0 %v2631
    %2675 = vmatpush1.bf16.msra.mxu0 %v2630
    %2676 = vmatprep.subr.bf16.mxu0 %v2634
    %2677 = vmatpush1.bf16.msra.mxu0 %v2633
    %2678 = vmatprep.subr.bf16.mxu0 %v2637
    %2679 = vmatpush1.bf16.msra.mxu0 %v2636
    %2680 = vmatprep.subr.bf16.mxu0 %v2640
    %2681 = vmatpush1.bf16.msra.mxu0 %v2639
    %2682 = vmatprep.subr.bf16.mxu0 0
    %2683 = vmatpush1.bf16.msra.mxu0 0
    %2684 = vmatprep.subr.bf16.mxu0 0
    %2685 = vmatpush1.bf16.msra.mxu0 0
    %2686 = vmatprep.subr.bf16.mxu0 0
    %2687 = vmatpush1.bf16.msra.mxu0 0
    %2688 = vmatprep.subr.bf16.mxu0 0
    %2689 = vmatpush1.bf16.msra.mxu0 0
    %2690 = vmatprep.subr.bf16.mxu0 0
    %2691 = vmatpush1.bf16.msra.mxu0 0
    %2692 = vmatprep.subr.bf16.mxu0 0
    %2693 = vmatpush1.bf16.msra.mxu0 0
    %2694 = vmatprep.subr.bf16.mxu0 0
    %2695 = vmatpush1.bf16.msra.mxu0 0
    %2696 = vmatprep.subr.bf16.mxu0 0
    %2697 = vmatpush1.bf16.msra.mxu0 0
    %2698 = vmatprep.mubr.bf16.mxu0 0
    %2699 = vmatmul.mubr.bf16.gmra.mrb[0].mxu0 %v2488
    %v2700 = vpop.f32.mrb[0].mxu0
    %v2701 = vadd.f32 %v2526, %v2700
    %v2702 = vpop.f32.mrb[0].mxu0
    %v2703 = vadd.f32 %v2530, %v2702
    %v2704 = vpop.f32.mrb[0].mxu0
    %v2705 = vpop.f32.mrb[0].mxu0
    %2706 = vdwg.mxu0
    %2707 = vmatprep.subr.bf16.mxu0 0
    %2708 = vmatpush1.bf16.msra.mxu0 %v2620
    %2709 = vmatprep.subr.bf16.mxu0 0
    %2710 = vmatpush1.bf16.msra.mxu0 %v2623
    %2711 = vmatprep.subr.bf16.mxu0 0
    %2712 = vmatpush1.bf16.msra.mxu0 %v2626
    %2713 = vmatprep.subr.bf16.mxu0 0
    %2714 = vmatpush1.bf16.msra.mxu0 %v2629
    %2715 = vmatprep.subr.bf16.mxu0 0
    %2716 = vmatpush1.bf16.msra.mxu0 %v2632
    %2717 = vmatprep.subr.bf16.mxu0 0
    %2718 = vmatpush1.bf16.msra.mxu0 %v2635
    %2719 = vmatprep.subr.bf16.mxu0 0
    %2720 = vmatpush1.bf16.msra.mxu0 %v2638
    %2721 = vmatprep.subr.bf16.mxu0 0
    %2722 = vmatpush1.bf16.msra.mxu0 %v2641
    %2723 = vmatprep.subr.bf16.mxu0 0
    %2724 = vmatpush1.bf16.msra.mxu0 0
    %2725 = vmatprep.subr.bf16.mxu0 0
    %2726 = vmatpush1.bf16.msra.mxu0 0
    %2727 = vmatprep.subr.bf16.mxu0 0
    %2728 = vmatpush1.bf16.msra.mxu0 0
    %2729 = vmatprep.subr.bf16.mxu0 0
    %2730 = vmatpush1.bf16.msra.mxu0 0
    %2731 = vmatprep.subr.bf16.mxu0 0
    %2732 = vmatpush1.bf16.msra.mxu0 0
    %2733 = vmatprep.subr.bf16.mxu0 0
    %2734 = vmatpush1.bf16.msra.mxu0 0
    %2735 = vmatprep.subr.bf16.mxu0 0
    %2736 = vmatpush1.bf16.msra.mxu0 0
    %2737 = vmatprep.subr.bf16.mxu0 0
    %2738 = vmatpush1.bf16.msra.mxu0 0
    %2739 = vmatprep.mubr.bf16.mxu0 0
    %2740 = vmatmul.mubr.bf16.gmra.mrb[0].mxu0 %v2488
    %v2741 = vpop.f32.mrb[0].mxu0
    %v2742 = vadd.f32 %v2534, %v2741
    %v2743 = vpop.f32.mrb[0].mxu0
    %v2744 = vpop.f32.mrb[0].mxu0
    %v2745 = vpop.f32.mrb[0].mxu0
    %2746 = vdwg.mxu0
    %v2747 = vadd.f32 %v2485, %v2701
    %v2748 = vxor.u32 %v2747, 2147483648
    %v2749 = vmul.f32 %v2748, 1.442695
    %v2750 = vpow.pop %v2749
    %v2751 = vadd.f32 %v2750, 1.0
    %v2752 = vrcp.pop %v2751
    %v2753 = vmul.f32 1.0, %v2752
    %v2754 = vadd.f32 %v2486, %v2703
    %v2755 = vxor.u32 %v2754, 2147483648
    %v2756 = vmul.f32 %v2755, 1.442695
    %v2757 = vpow.pop %v2756
    %v2758 = vadd.f32 %v2757, 1.0
    %v2759 = vrcp.pop %v2758
    %v2760 = vmul.f32 1.0, %v2759
    %v2761 = vmul.f32 %v2753, %v2742
    %v2762 = vadd.f32 %v2487, %v2761
    %v2763 = vtanh.pop %v2762
    %v2764 = vsub.f32 1.0, %v2760
    %v2765 = vmul.f32 %v2764, %v2763
    %v2766 = vmul.f32 %v2760, %v2483
    %v2767 = vadd.f32 %v2765, %v2766
    %2768 = vst [vmem:[#allocation2] sm:$0xff] %v2767
    %v2769 = vpack.c.bf16 %v2767, %v2767
    %s2770 = scalar_lea.vmem [#allocation13], 28
    %2771 = vst [vmem:[%s2770] sm:$0xf] %v2769
    // Predicated region
    $region46: #{tpu_custom_call.1} parent=1 // pred_check
      _
    $region47: #{tpu_custom_call.1} parent=1 // pred_check_branch
      %2773 = sbr.rel (0) target = $region49
    $region48: #{tpu_custom_call.1} parent=1 // pred_region
      %s2775 = ssub.s32 512, 512
      %2776 = vsyncadd [#allocation6], %s2775
      %s2777 = sshll.u32 [#allocation13], 4
      %s2778 = int_to_ptr.vmem [resolvable:$true] %s2777
      %2783 = dma.vmem_to_hbm [thread:$0]  %s2778, 512, %s5, [#allocation6], 64, 64, 4
    $region49: #{tpu_custom_call.1} parent=1 // pred_fallthru
      _
    // Predicated region
    $region50: #{tpu_custom_call.1} parent=1 // pred_check
      _
    $region51: #{tpu_custom_call.1} parent=1 // pred_check_branch
      %2785 = sbr.rel (0) target = $region53
    $region52: #{tpu_custom_call.1} parent=1 // pred_region
      %2786 = dma.done [#allocation6], 512
    $region53: #{tpu_custom_call.1} parent=1 // pred_fallthru
      _
    %2787 = vsyncpa [#allocation5], 1
    %2788 = vsyncpa [#allocation8], 1
    %2789 = vsyncpa [#allocation11], 1
    %2790 = vsyncpa [#allocation6], 1

</llo_original>
